<compile_context>
chip_gen: v5e
topology: v5e:2x2
jax: 0.10.0
libtpu: 0.0.40
codegen_flags: <defaults>
</compile_context>

<pallas_src>
import math

import jax
import jax.numpy as jnp
import numpy as np
from jax.experimental import pallas as pl
from jax.experimental.pallas import tpu as pltpu


# ---------------------------------------------------------------------------
# small helpers
# ---------------------------------------------------------------------------

_MAX_TILE_ROWS = 1024  # rows per grid step; multiple of 8, lane-dense with D=128


def _round_up(x, m):
    return (x + m - 1) // m * m


def _pick_tile(n):
    if n >= _MAX_TILE_ROWS:
        return _MAX_TILE_ROWS
    return max(8, _round_up(n, 8))


def _pad_rows(a, n_pad):
    n = a.shape[0]
    if n == n_pad:
        return a
    pad = jnp.zeros((n_pad - n,) + a.shape[1:], a.dtype)
    return jnp.concatenate([a, pad], axis=0)


def _rope_tables(hidden_size, rope_theta):
    # inv_freq as in SpatialRotaryPositionalEmbedding (partial_rotary_factor=1)
    inv_freq = 1.0 / (rope_theta ** (jnp.arange(0, hidden_size, 2, dtype=jnp.float32)
                                     / hidden_size))
    # duplicated layout matching emb = cat(freqs, freqs)
    inv_freq_dup = jnp.concatenate([inv_freq, inv_freq]).reshape(1, hidden_size)
    return inv_freq, inv_freq_dup


# ---------------------------------------------------------------------------
# in-kernel RoPE pieces
# ---------------------------------------------------------------------------

def _rope_cos_sin(invf_row, row_start, seq_len, tile_m):
    # positions restart every `seq_len` rows (rows are flattened (batch, seq))
    row = row_start + jax.lax.broadcasted_iota(jnp.int32, (tile_m, 1), 0)
    pos = (row % seq_len).astype(jnp.float32)          # (TM, 1)
    angle = pos * invf_row                              # (TM, D) via broadcast
    return jnp.cos(angle), jnp.sin(angle)


def _rotate_half(h):
    # cat(-x2, x1): half-lane rotation on the XLU + a sign mask on the VPU
    d = h.shape[-1]
    sign = jnp.where(
        jax.lax.broadcasted_iota(jnp.int32, h.shape, 1) < (d // 2), -1.0, 1.0)
    return pltpu.roll(h, shift=d // 2, axis=1) * sign


# ---------------------------------------------------------------------------
# kernel 1: visual feature (patch-matmul + ReLU + Linear + RoPE), fused
# ---------------------------------------------------------------------------

def _make_visual_kernel(seq_len, tile_m):
    def kernel(xp_ref, wc_ref, bc_ref, wl_ref, bl_ref, invf_ref, out_ref):
        x = xp_ref[...]                                                   # (TM, K)
        # conv2d with kernel==stride==patch_size  ==  per-patch matmul (MXU)
        h = jnp.dot(x, wc_ref[...], preferred_element_type=jnp.float32) + bc_ref[...]
        h = jnp.maximum(h, 0.0)                                           # ReLU
        h = jnp.dot(h, wl_ref[...], preferred_element_type=jnp.float32) + bl_ref[...]
        cos, sin = _rope_cos_sin(invf_ref[...], pl.program_id(0) * tile_m,
                                 seq_len, tile_m)
        out_ref[...] = (h * cos + _rotate_half(h) * sin).astype(out_ref.dtype)
    return kernel


def visual_forward(params, pixel_values, cfg):
    """SimpleVisualFeature + spatial RoPE (DocformerV2VLEncoder.forward)."""
    # TODO(synk): 2-D pre-flattened pixel_values path needs static (bs, grid) metadata;
    # only the ndim==3 layout (bs, grid_h*grid_w, C*P*P) is wired up here.
    D = cfg["hidden_size"]
    max_pos = cfg["max_position_embeddings"]
    bs, n_patches, K = pixel_values.shape
    seq = min(n_patches, max_pos)                    # [:, :max_position_embeddings, :]
    x = pixel_values[:, :seq, :].reshape(bs * seq, K).astype(jnp.float32)

    n = bs * seq
    tile = _pick_tile(n)
    n_pad = _round_up(n, tile)
    x = _pad_rows(x, n_pad)

    wc = params["conv_w"].reshape(D, K).T            # (K, D)  conv as matmul
    bc = params["conv_b"].reshape(1, D)
    wl = params["lin_w"].T                           # (D, D)
    bl = params["lin_b"].reshape(1, D)
    invf_dup = params["inv_freq_dup"]                # (1, D)

    cost = pl.CostEstimate(
        flops=2 * n_pad * D * (K + D),
        transcendentals=2 * n_pad * D,
        bytes_accessed=4 * (n_pad * (K + D) + K * D + D * D + 3 * D))

    out = pl.pallas_call(
        _make_visual_kernel(seq, tile),
        out_shape=jax.ShapeDtypeStruct((n_pad, D), jnp.float32),
        grid_spec=pltpu.PrefetchScalarGridSpec(
            num_scalar_prefetch=0,
            grid=(n_pad // tile,),
            in_specs=[
                pl.BlockSpec((tile, K), lambda i: (i, 0)),   # patches (tiled rows)
                pl.BlockSpec((K, D), lambda i: (0, 0)),      # conv weight (resident)
                pl.BlockSpec((1, D), lambda i: (0, 0)),      # conv bias
                pl.BlockSpec((D, D), lambda i: (0, 0)),      # linear weight
                pl.BlockSpec((1, D), lambda i: (0, 0)),      # linear bias
                pl.BlockSpec((1, D), lambda i: (0, 0)),      # duplicated inv_freq
            ],
            out_specs=pl.BlockSpec((tile, D), lambda i: (i, 0)),
        ),
        compiler_params=pltpu.CompilerParams(dimension_semantics=("parallel",)),
        cost_estimate=cost,
    )(x, wc, bc, wl, bl, invf_dup)
    return out[:n].reshape(bs, seq, D)


# ---------------------------------------------------------------------------
# kernel 2: language embedding (gather as one-hot @ table on the MXU)
# ---------------------------------------------------------------------------

def _language_kernel(idx_ref, table_ref, out_ref):
    idx = idx_ref[...]                                        # (TM, 1) int32
    table = table_ref[...]                                    # (V, D)  f32
    tm = idx.shape[0]
    v = table.shape[0]
    iota_v = jax.lax.broadcasted_iota(jnp.int32, (tm, v), 1)
    onehot = (iota_v == idx).astype(jnp.float32)              # exact 0/1
    out_ref[...] = jnp.dot(onehot, table,
                           preferred_element_type=jnp.float32).astype(out_ref.dtype)


def language_forward(params, input_ids, cfg):
    D = cfg["hidden_size"]
    table = params["lang_emb"]                                # (vocab, D)
    V = table.shape[0]
    b, s = input_ids.shape
    n = b * s
    tile = _pick_tile(n)
    n_pad = _round_up(n, tile)
    idx = _pad_rows(input_ids.reshape(n, 1).astype(jnp.int32), n_pad)

    cost = pl.CostEstimate(
        flops=2 * n_pad * V * D, transcendentals=0,
        bytes_accessed=4 * (n_pad * (1 + D) + V * D))

    out = pl.pallas_call(
        _language_kernel,
        out_shape=jax.ShapeDtypeStruct((n_pad, D), jnp.float32),
        grid_spec=pltpu.PrefetchScalarGridSpec(
            num_scalar_prefetch=0,
            grid=(n_pad // tile,),
            in_specs=[
                pl.BlockSpec((tile, 1), lambda i: (i, 0)),    # token ids (tiled)
                pl.BlockSpec((V, D), lambda i: (0, 0)),       # embedding table (resident)
            ],
            out_specs=pl.BlockSpec((tile, D), lambda i: (i, 0)),
        ),
        compiler_params=pltpu.CompilerParams(dimension_semantics=("parallel",)),
        cost_estimate=cost,
    )(idx, table)
    return out[:n].reshape(b, s, D)


# ---------------------------------------------------------------------------
# kernel 3: spatial features (16 fused gathers per branch + x+y sum + RoPE)
# ---------------------------------------------------------------------------

def _make_spatial_kernel(seq_len, tile_m, num_slots):
    def kernel(idx_ref, tv_ref, tt_ref, invf_ref, ov_ref, ot_ref):
        idx = idx_ref[...]                                    # (TM, 16), offsets baked in
        table_v = tv_ref[...]                                 # (Vtot, D) block-diagonal
        table_t = tt_ref[...]
        tm = idx.shape[0]
        vtot = table_v.shape[0]

        # multi-hot: one 1 per lookup slot; sum over slots == concat + (x+y) add
        iota_v = jax.lax.broadcasted_iota(jnp.int32, (tm, vtot), 1)
        onehot = jnp.zeros((tm, vtot), jnp.float32)
        for c in range(num_slots):                            # static unroll (16)
            onehot = onehot + (iota_v == idx[:, c:c + 1]).astype(jnp.float32)

        emb_v = jnp.dot(onehot, table_v, preferred_element_type=jnp.float32)
        emb_t = jnp.dot(onehot, table_t, preferred_element_type=jnp.float32)

        cos, sin = _rope_cos_sin(invf_ref[...], pl.program_id(0) * tile_m,
                                 seq_len, tile_m)
        ov_ref[...] = (emb_v * cos + _rotate_half(emb_v) * sin).astype(ov_ref.dtype)
        ot_ref[...] = (emb_t * cos + _rotate_half(emb_t) * sin).astype(ot_ref.dtype)
    return kernel


def spatial_forward(params, x_features, y_features, cfg):
    D = cfg["hidden_size"]
    cs = cfg["coordinate_size"]
    b, s, nf = x_features.shape
    assert nf == 8, "spatial features must have 8 columns"

    def _prep(f):  # clamp/offset distance columns exactly like the torch forward
        f = f.astype(jnp.int32)
        return jnp.concatenate([f[..., :3], jnp.clip(f[..., 3:], -cs, cs) + cs], axis=-1)

    xf = _prep(x_features)
    yf = _prep(y_features)

    # 16 lookup slots (8 x-side + 8 y-side) -> indices into the combined tables
    idx = jnp.concatenate([xf, yf], axis=-1).reshape(b * s, 2 * nf)
    idx = idx + params["spatial_slot_offsets"][None, :]

    n = b * s
    tile = _pick_tile(n)
    n_pad = _round_up(n, tile)
    idx = _pad_rows(idx, n_pad)

    table_v = params["spatial_table_v"]                       # (Vtot, D)
    table_t = params["spatial_table_t"]
    vtot = table_v.shape[0]
    invf_dup = params["inv_freq_dup"]

    cost = pl.CostEstimate(
        flops=4 * n_pad * vtot * D, transcendentals=2 * n_pad * D,
        bytes_accessed=4 * (n_pad * (2 * nf + 2 * D) + 2 * vtot * D))

    out_v, out_t = pl.pallas_call(
        _make_spatial_kernel(s, tile, 2 * nf),
        out_shape=(jax.ShapeDtypeStruct((n_pad, D), jnp.float32),
                   jax.ShapeDtypeStruct((n_pad, D), jnp.float32)),
        grid_spec=pltpu.PrefetchScalarGridSpec(
            num_scalar_prefetch=0,
            grid=(n_pad // tile,),
            in_specs=[
                pl.BlockSpec((tile, 2 * nf), lambda i: (i, 0)),  # indices (tiled)
                pl.BlockSpec((vtot, D), lambda i: (0, 0)),       # combined table (v)
                pl.BlockSpec((vtot, D), lambda i: (0, 0)),       # combined table (t)
                pl.BlockSpec((1, D), lambda i: (0, 0)),          # duplicated inv_freq
            ],
            out_specs=(pl.BlockSpec((tile, D), lambda i: (i, 0)),
                       pl.BlockSpec((tile, D), lambda i: (i, 0))),
        ),
        compiler_params=pltpu.CompilerParams(dimension_semantics=("parallel",)),
        cost_estimate=cost,
    )(idx, table_v, table_t, invf_dup)

    return out_v[:n].reshape(b, s, D), out_t[:n].reshape(b, s, D)


# ---------------------------------------------------------------------------
# ExtractFeatures.forward
# ---------------------------------------------------------------------------

def extract_features(params, encoding, cfg):
    # image_grid_hw determines shapes in the torch code; in JAX shapes are static
    # so they are derived from pixel_values.shape (the two must be consistent).
    v_bar = visual_forward(params, encoding["pixel_values"], cfg)
    t_bar = language_forward(params, encoding["input_ids"], cfg)
    v_bar_s, t_bar_s = spatial_forward(
        params, encoding["x_features"], encoding["y_features"], cfg)
    return v_bar, t_bar, v_bar_s, t_bar_s


# ---------------------------------------------------------------------------
# parameters (deterministic, mirrors the modules actually used by forward)
# ---------------------------------------------------------------------------

def init_params(key, cfg):
    p, cin, D = cfg["patch_size"], cfg["in_channels"], cfg["hidden_size"]
    V, pad_id = cfg["vocab_size"], cfg["pad_token_id"]
    cs, cd = cfg["coordinate_size"], cfg["coordinate_dim"]
    K = cin * p * p
    keys = iter(jax.random.split(key, 32))

    def uni(shape, fi, fo):
        b = math.sqrt(6.0 / (fi + fo))
        return jax.random.uniform(next(keys), shape, jnp.float32, -b, b)

    params = {
        "conv_w": uni((D, cin, p, p), K, D),
        "conv_b": uni((D,), K, D),
        "lin_w": uni((D, D), D, D),
        "lin_b": uni((D,), D, D),
    }
    lang = 0.02 * jax.random.normal(next(keys), (V, D), jnp.float32)
    params["lang_emb"] = lang.at[pad_id].set(0.0)          # padding_idx row == 0

    def emb(rows):
        return 0.02 * jax.random.normal(next(keys), (rows, cd), jnp.float32)

    # NOTE: the reference forward routes ALL distance columns through the *_tl
    # distance tables, so only those (plus the 3 position tables per axis) are used.
    spat = {}
    for br in ("v", "t"):
        spat[f"x_tl_pos_{br}"] = emb(cs)
        spat[f"x_br_pos_{br}"] = emb(cs)
        spat[f"w_pos_{br}"] = emb(cs)
        spat[f"x_tl_dist_{br}"] = emb(2 * cs + 1)
        spat[f"y_tl_pos_{br}"] = emb(cs)
        spat[f"y_br_pos_{br}"] = emb(cs)
        spat[f"h_pos_{br}"] = emb(cs)
        spat[f"y_tl_dist_{br}"] = emb(2 * cs + 1)
    params["spatial_raw"] = spat

    def slot_tables(br):
        return ([spat[f"x_tl_pos_{br}"], spat[f"x_br_pos_{br}"], spat[f"w_pos_{br}"]]
                + [spat[f"x_tl_dist_{br}"]] * 5
                + [spat[f"y_tl_pos_{br}"], spat[f"y_br_pos_{br}"], spat[f"h_pos_{br}"]]
                + [spat[f"y_tl_dist_{br}"]] * 5)

    def build_combined(tables):
        blocks = []
        for slot, tab in enumerate(tables):
            col = (slot % 8) * cd
            blocks.append(jnp.zeros((tab.shape[0], D), jnp.float32)
                          .at[:, col:col + cd].set(tab))
        return jnp.concatenate(blocks, axis=0)

    params["spatial_table_v"] = build_combined(slot_tables("v"))
    params["spatial_table_t"] = build_combined(slot_tables("t"))

    sizes = ([cs, cs, cs] + [2 * cs + 1] * 5) * 2
    offsets = np.concatenate([[0], np.cumsum(sizes[:-1])]).astype(np.int32)
    params["spatial_slot_offsets"] = jnp.asarray(offsets)

    inv_freq, inv_freq_dup = _rope_tables(D, cfg["rope_theta"])
    params["inv_freq"] = inv_freq
    params["inv_freq_dup"] = inv_freq_dup
    return params


# ---------------------------------------------------------------------------
# pure-JAX reference (same semantics as the PyTorch forward)
# ---------------------------------------------------------------------------

def _rope_ref(x, inv_freq):
    _, s, d = x.shape
    pos = jnp.arange(s, dtype=jnp.float32)
    freqs = pos[:, None] * inv_freq[None, :]
    emb = jnp.concatenate([freqs, freqs], axis=-1)
    cos, sin = jnp.cos(emb)[None], jnp.sin(emb)[None]
    x_rot = jnp.concatenate([-x[..., d // 2:], x[..., :d // 2]], axis=-1)
    return x * cos + x_rot * sin


def reference_extract_features(params, pixel_values, input_ids, x_features, y_features, cfg):
    D, cs = cfg["hidden_size"], cfg["coordinate_size"]
    hp = jax.lax.Precision.HIGHEST

    bs, n_patches, K = pixel_values.shape
    seq = min(n_patches, cfg["max_position_embeddings"])
    x = pixel_values[:, :seq, :].astype(jnp.float32)
    h = jnp.einsum("bsk,kd->bsd", x, params["conv_w"].reshape(D, K).T,
                   precision=hp) + params["conv_b"]
    h = jax.nn.relu(h)
    h = jnp.einsum("bsk,kd->bsd", h, params["lin_w"].T, precision=hp) + params["lin_b"]
    v_bar = _rope_ref(h, params["inv_freq"])

    t_bar = jnp.take(params["lang_emb"], input_ids, axis=0)

    def prep(f):
        f = f.astype(jnp.int32)
        return jnp.concatenate([f[..., :3], jnp.clip(f[..., 3:], -cs, cs) + cs], axis=-1)
    xf, yf = prep(x_features), prep(y_features)
    spat = params["spatial_raw"]

    def branch(br):
        x_tabs = ([spat[f"x_tl_pos_{br}"], spat[f"x_br_pos_{br}"], spat[f"w_pos_{br}"]]
                  + [spat[f"x_tl_dist_{br}"]] * 5)
        y_tabs = ([spat[f"y_tl_pos_{br}"], spat[f"y_br_pos_{br}"], spat[f"h_pos_{br}"]]
                  + [spat[f"y_tl_dist_{br}"]] * 5)
        x_emb = jnp.concatenate(
            [jnp.take(t, xf[..., c], axis=0) for c, t in enumerate(x_tabs)], axis=-1)
        y_emb = jnp.concatenate(
            [jnp.take(t, yf[..., c], axis=0) for c, t in enumerate(y_tabs)], axis=-1)
        return _rope_ref(x_emb + y_emb, params["inv_freq"])

    return v_bar, t_bar, branch("v"), branch("t")


# ---------------------------------------------------------------------------
# demo / self-check
# ---------------------------------------------------------------------------

if __name__ == "__main__":
    cfg = dict(
        patch_size=4, temporal_patch_size=1, in_channels=3, hidden_size=128,
        merge_size=2, max_position_embeddings=512, rope_theta=10000.0,
        vocab_size=256, pad_token_id=0, coordinate_size=16, coordinate_dim=16,
    )
    assert cfg["coordinate_dim"] * 8 == cfg["hidden_size"]

    key = jax.random.PRNGKey(0)
    k_param, k_px, k_ids, k_xf, k_yf = jax.random.split(key, 5)
    params = init_params(k_param, cfg)

    bs, grid_h, grid_w = 2, 8, 8
    K = cfg["in_channels"] * cfg["patch_size"] ** 2
    pixel_values = jax.random.normal(k_px, (bs, grid_h * grid_w, K), jnp.float32)
    image_grid_hw = jnp.tile(jnp.array([[grid_h, grid_w]], jnp.int32), (bs, 1))

    batch, seq_len = 2, 16
    input_ids = jax.random.randint(k_ids, (batch, seq_len), 0, cfg["vocab_size"], jnp.int32)
    x_features = jnp.concatenate([
        jax.random.randint(k_xf, (batch, seq_len, 3), 0, cfg["coordinate_size"], jnp.int32),
        jax.random.randint(jax.random.fold_in(k_xf, 1), (batch, seq_len, 5), -24, 24, jnp.int32),
    ], axis=-1)
    y_features = jnp.concatenate([
        jax.random.randint(k_yf, (batch, seq_len, 3), 0, cfg["coordinate_size"], jnp.int32),
        jax.random.randint(jax.random.fold_in(k_yf, 1), (batch, seq_len, 5), -24, 24, jnp.int32),
    ], axis=-1)

    encoding = {
        "pixel_values": pixel_values,
        "image_grid_hw": image_grid_hw,
        "input_ids": input_ids,
        "x_features": x_features,
        "y_features": y_features,
    }

    v_bar, t_bar, v_bar_s, t_bar_s = extract_features(params, encoding, cfg)
    v_bar, t_bar, v_bar_s, t_bar_s = jax.block_until_ready((v_bar, t_bar, v_bar_s, t_bar_s))

    v_ref, t_ref, vs_ref, ts_ref = reference_extract_features(
        params, pixel_values, input_ids, x_features, y_features, cfg)

    assert v_bar.shape == (bs, grid_h * grid_w, cfg["hidden_size"])
    assert t_bar.shape == (batch, seq_len, cfg["hidden_size"])
    assert v_bar_s.shape == (batch, seq_len, cfg["hidden_size"])
    assert t_bar_s.shape == (batch, seq_len, cfg["hidden_size"])

    def check(a, b, name, atol):
        err = float(jnp.max(jnp.abs(a - b)))
        assert err <= atol, f"{name}: max abs err {err} > {atol}"

    check(v_bar, v_ref, "v_bar", 2e-3)
    check(t_bar, t_ref, "t_bar", 1e-5)
    check(v_bar_s, vs_ref, "v_bar_s", 1e-4)
    check(t_bar_s, ts_ref, "t_bar_s", 1e-4)

    print("KERNEL_OK")
</pallas_src>

<mosaic_0001>
module attributes {stable_mosaic.version = 11 : i64} {
  func.func @kernel(%arg0: i32, %arg1: memref<128x48xf32, #tpu.memory_space<vmem>>, %arg2: memref<48x128xf32, #tpu.memory_space<vmem>>, %arg3: memref<1x128xf32, #tpu.memory_space<vmem>>, %arg4: memref<128x128xf32, #tpu.memory_space<vmem>>, %arg5: memref<1x128xf32, #tpu.memory_space<vmem>>, %arg6: memref<1x128xf32, #tpu.memory_space<vmem>>, %arg7: memref<128x128xf32, #tpu.memory_space<vmem>>) attributes {dimension_semantics = [#tpu.dimension_semantics<parallel>], iteration_bounds = array<i64: 1>, scalar_prefetch = 0 : i64, scratch_operands = 0 : i64, tpu.core_type = #tpu.core_type<tc>, window_params = [{transform_indices = @transform_0, window_bounds = array<i64: 128, 48>}, {pipeline_mode = #tpu.pipeline_mode<synchronous>, transform_indices = @transform_1, window_bounds = array<i64: 48, 128>}, {pipeline_mode = #tpu.pipeline_mode<synchronous>, transform_indices = @transform_2, window_bounds = array<i64: 1, 128>}, {pipeline_mode = #tpu.pipeline_mode<synchronous>, transform_indices = @transform_3, window_bounds = array<i64: 128, 128>}, {pipeline_mode = #tpu.pipeline_mode<synchronous>, transform_indices = @transform_4, window_bounds = array<i64: 1, 128>}, {pipeline_mode = #tpu.pipeline_mode<synchronous>, transform_indices = @transform_5, window_bounds = array<i64: 1, 128>}, {transform_indices = @transform_6, window_bounds = array<i64: 128, 128>}]} {
    %c0 = arith.constant 0 : index
    %c0_0 = arith.constant 0 : index
    %0 = vector.load %arg1[%c0, %c0_0] : memref<128x48xf32, #tpu.memory_space<vmem>>, vector<128x48xf32>
    %c0_1 = arith.constant 0 : index
    %c0_2 = arith.constant 0 : index
    %1 = vector.load %arg2[%c0_1, %c0_2] : memref<48x128xf32, #tpu.memory_space<vmem>>, vector<48x128xf32>
    %cst = arith.constant dense<0.000000e+00> : vector<128x128xf32>
    %2 = tpu.matmul %0, %1, %cst {dimension_numbers = #tpu.dot_dimension_numbers<[1], [0], [0], [1], [0, 0, 1, 1], [], []>} : vector<128x48xf32>, vector<48x128xf32>, vector<128x128xf32> -> vector<128x128xf32>
    %c0_3 = arith.constant 0 : index
    %c0_4 = arith.constant 0 : index
    %3 = vector.load %arg3[%c0_3, %c0_4] : memref<1x128xf32, #tpu.memory_space<vmem>>, vector<1x128xf32>
    %4 = vector.broadcast %3 : vector<1x128xf32> to vector<128x128xf32>
    %5 = arith.addf %2, %4 : vector<128x128xf32>
    %cst_5 = arith.constant 0.000000e+00 : f32
    %6 = vector.broadcast %cst_5 : f32 to vector<128x128xf32>
    %7 = arith.maximumf %5, %6 : vector<128x128xf32>
    %c0_6 = arith.constant 0 : index
    %c0_7 = arith.constant 0 : index
    %8 = vector.load %arg4[%c0_6, %c0_7] : memref<128x128xf32, #tpu.memory_space<vmem>>, vector<128x128xf32>
    %cst_8 = arith.constant dense<0.000000e+00> : vector<128x128xf32>
    %9 = tpu.matmul %7, %8, %cst_8 {dimension_numbers = #tpu.dot_dimension_numbers<[1], [0], [0], [1], [0, 0, 1, 1], [], []>} : vector<128x128xf32>, vector<128x128xf32>, vector<128x128xf32> -> vector<128x128xf32>
    %c0_9 = arith.constant 0 : index
    %c0_10 = arith.constant 0 : index
    %10 = vector.load %arg5[%c0_9, %c0_10] : memref<1x128xf32, #tpu.memory_space<vmem>>, vector<1x128xf32>
    %11 = vector.broadcast %10 : vector<1x128xf32> to vector<128x128xf32>
    %12 = arith.addf %9, %11 : vector<128x128xf32>
    %c0_11 = arith.constant 0 : index
    %c0_12 = arith.constant 0 : index
    %13 = vector.load %arg6[%c0_11, %c0_12] : memref<1x128xf32, #tpu.memory_space<vmem>>, vector<1x128xf32>
    %c128_i32 = arith.constant 128 : i32
    %14 = arith.muli %arg0, %c128_i32 : i32
    %15 = tpu.iota {dimensions = array<i32: 0>} : vector<128x1xi32>
    %16 = vector.broadcast %14 : i32 to vector<128x1xi32>
    %17 = arith.addi %16, %15 : vector<128x1xi32>
    %c64_i32 = arith.constant 64 : i32
    %c0_i32 = arith.constant 0 : i32
    %18 = arith.cmpi eq, %c64_i32, %c0_i32 : i32
    %c1_i32 = arith.constant 1 : i32
    %19 = arith.select %18, %c1_i32, %c64_i32 : i32
    %20 = vector.broadcast %19 : i32 to vector<128x1xi32>
    %21 = arith.remsi %17, %20 : vector<128x1xi32>
    %c0_i32_13 = arith.constant 0 : i32
    %22 = vector.broadcast %c0_i32_13 : i32 to vector<128x1xi32>
    %23 = arith.cmpi ne, %21, %22 : vector<128x1xi32>
    %c0_i32_14 = arith.constant 0 : i32
    %24 = vector.broadcast %c0_i32_14 : i32 to vector<128x1xi32>
    %25 = arith.cmpi slt, %21, %24 : vector<128x1xi32>
    %c0_i32_15 = arith.constant 0 : i32
    %26 = arith.cmpi slt, %19, %c0_i32_15 : i32
    %27 = vector.broadcast %26 : i1 to vector<128x1xi1>
    %28 = vector.broadcast %27 : vector<128x1xi1> to vector<128x1xi1>
    %29 = arith.xori %25, %28 : vector<128x1xi1>
    %30 = arith.andi %29, %23 : vector<128x1xi1>
    %31 = vector.broadcast %19 : i32 to vector<128x1xi32>
    %32 = arith.addi %21, %31 : vector<128x1xi32>
    %33 = arith.select %30, %32, %21 : vector<128x1xi1>, vector<128x1xi32>
    %34 = arith.sitofp %33 : vector<128x1xi32> to vector<128x1xf32>
    %35 = vector.broadcast %34 : vector<128x1xf32> to vector<128x128xf32>
    %36 = vector.broadcast %13 : vector<1x128xf32> to vector<128x128xf32>
    %37 = arith.mulf %35, %36 : vector<128x128xf32>
    %38 = math.cos %37 : vector<128x128xf32>
    %39 = math.sin %37 : vector<128x128xf32>
    %40 = arith.mulf %12, %38 : vector<128x128xf32>
    %41 = tpu.iota {dimensions = array<i32: 1>} : vector<128x128xi32>
    %c64_i32_16 = arith.constant 64 : i32
    %42 = vector.broadcast %c64_i32_16 : i32 to vector<128x128xi32>
    %43 = arith.cmpi slt, %41, %42 : vector<128x128xi32>
    %cst_17 = arith.constant -1.000000e+00 : f32
    %cst_18 = arith.constant 1.000000e+00 : f32
    %44 = vector.broadcast %cst_17 : f32 to vector<128x128xf32>
    %45 = vector.broadcast %cst_18 : f32 to vector<128x128xf32>
    %46 = arith.select %43, %44, %45 : vector<128x128xi1>, vector<128x128xf32>
    %c64_i32_19 = arith.constant 64 : i32
    %47 = tpu.dynamic_rotate %12 by %c64_i32_19 dim 1 : vector<128x128xf32>, i32 -> vector<128x128xf32>
    %48 = arith.mulf %47, %46 : vector<128x128xf32>
    %49 = arith.mulf %48, %39 : vector<128x128xf32>
    %50 = arith.addf %40, %49 : vector<128x128xf32>
    %c0_20 = arith.constant 0 : index
    %c0_21 = arith.constant 0 : index
    %51 = vector.load %arg7[%c0_20, %c0_21] : memref<128x128xf32, #tpu.memory_space<vmem>>, vector<128x128xf32>
    tpu.vector_store %arg7[%c0_20, %c0_21], %50 {strides = array<i32>} : memref<128x128xf32, #tpu.memory_space<vmem>>, vector<128x128xf32>,
    return
  }
  func.func @transform_0(%arg0: i32) -> (i32, i32) {
    %c0_i32 = arith.constant 0 : i32
    %c0_i32_0 = arith.constant 0 : i32
    return %arg0, %c0_i32 : i32, i32
  }
  func.func @transform_1(%arg0: i32) -> (i32, i32) {
    %c0_i32 = arith.constant 0 : i32
    %c0_i32_0 = arith.constant 0 : i32
    %c0_i32_1 = arith.constant 0 : i32
    return %c0_i32, %c0_i32_0 : i32, i32
  }
  func.func @transform_2(%arg0: i32) -> (i32, i32) {
    %c0_i32 = arith.constant 0 : i32
    %c0_i32_0 = arith.constant 0 : i32
    %c0_i32_1 = arith.constant 0 : i32
    return %c0_i32, %c0_i32_0 : i32, i32
  }
  func.func @transform_3(%arg0: i32) -> (i32, i32) {
    %c0_i32 = arith.constant 0 : i32
    %c0_i32_0 = arith.constant 0 : i32
    %c0_i32_1 = arith.constant 0 : i32
    return %c0_i32, %c0_i32_0 : i32, i32
  }
  func.func @transform_4(%arg0: i32) -> (i32, i32) {
    %c0_i32 = arith.constant 0 : i32
    %c0_i32_0 = arith.constant 0 : i32
    %c0_i32_1 = arith.constant 0 : i32
    return %c0_i32, %c0_i32_0 : i32, i32
  }
  func.func @transform_5(%arg0: i32) -> (i32, i32) {
    %c0_i32 = arith.constant 0 : i32
    %c0_i32_0 = arith.constant 0 : i32
    %c0_i32_1 = arith.constant 0 : i32
    return %c0_i32, %c0_i32_0 : i32, i32
  }
  func.func @transform_6(%arg0: i32) -> (i32, i32) {
    %c0_i32 = arith.constant 0 : i32
    %c0_i32_0 = arith.constant 0 : i32
    return %arg0, %c0_i32 : i32, i32
  }
}

</mosaic_0001>

<llo_original>
// kernel: tpu_custom_call.1
$region0: #{tpu_custom_call.1}
  #allocation0 [shape = 'u32[]', space=smem, size = 0x4, offset = 0x4, fixed_abs, tag = 'smem constant byte address 0x4 - core index']
  #allocation1 [shape = 'u32[72,128]{1,0:T(1,128)}', space=vmem, size = 0x9000, scoped, tag = 'internal scratch']
  %s0 = inlined_call_operand.vmem [shape: f32[128,48], index: 0, kind: input, shape index: {}]
  %s1 = inlined_call_operand.vmem [shape: f32[48,128], index: 1, kind: input, shape index: {}]
  %s2 = inlined_call_operand.vmem [shape: f32[1,128], index: 2, kind: input, shape index: {}]
  %s3 = inlined_call_operand.vmem [shape: f32[128,128], index: 3, kind: input, shape index: {}]
  %s4 = inlined_call_operand.vmem [shape: f32[1,128], index: 4, kind: input, shape index: {}]
  %s5 = inlined_call_operand.vmem [shape: f32[1,128], index: 5, kind: input, shape index: {}]
  %s6 = inlined_call_operand.hbm [shape: f32[128,128], index: 6, kind: output, shape index: {}]
  %s7 = sld [smem:[#allocation0]]
  $region34: #{tpu_custom_call.1} parent=0
    _
  %s9 = ssub.s32 1, %s7
  %s10 = scalar_select 0, %s9, %s7
  $region1: #{tpu_custom_call.1} parent=0
    #allocation2 [shape = 'u8[65536]{0}', space=vmem, size = 0x10000, scoped, tag = 'output window, operand 0, single buffered']
    #allocation3 [shape = 's32[1]{0}', space=sflag, size = 0x4, scoped, tag = 'scoped memory for tpu_custom_call.1']
    %11 = vsyncpa [#allocation3], 0
    // Predicated region
    $region2: #{tpu_custom_call.1} parent=1 // pred_check
      _
    $region3: #{tpu_custom_call.1} parent=1 // pred_check_branch
      %13 = sbr.rel (0) target = $region5
    $region4: #{tpu_custom_call.1} parent=1 // pred_region
      _
    $region5: #{tpu_custom_call.1} parent=1 // pred_fallthru
      _
    // Predicated region
    $region6: #{tpu_custom_call.1} parent=1 // pred_check
      _
    $region7: #{tpu_custom_call.1} parent=1 // pred_check_branch
      %15 = sbr.rel (0) target = $region9
    $region8: #{tpu_custom_call.1} parent=1 // pred_region
      _
    $region9: #{tpu_custom_call.1} parent=1 // pred_fallthru
      _
    // Predicated region
    $region10: #{tpu_custom_call.1} parent=1 // pred_check
      _
    $region11: #{tpu_custom_call.1} parent=1 // pred_check_branch
      %17 = sbr.rel (0) target = $region13
    $region12: #{tpu_custom_call.1} parent=1 // pred_region
      _
    $region13: #{tpu_custom_call.1} parent=1 // pred_fallthru
      _
    // Predicated region
    $region14: #{tpu_custom_call.1} parent=1 // pred_check
      _
    $region15: #{tpu_custom_call.1} parent=1 // pred_check_branch
      %19 = sbr.rel (0) target = $region17
    $region16: #{tpu_custom_call.1} parent=1 // pred_region
      _
    $region17: #{tpu_custom_call.1} parent=1 // pred_fallthru
      _
    // Predicated region
    $region18: #{tpu_custom_call.1} parent=1 // pred_check
      _
    $region19: #{tpu_custom_call.1} parent=1 // pred_check_branch
      %21 = sbr.rel (0) target = $region21
    $region20: #{tpu_custom_call.1} parent=1 // pred_region
      _
    $region21: #{tpu_custom_call.1} parent=1 // pred_fallthru
      _
    // Predicated region
    $region22: #{tpu_custom_call.1} parent=1 // pred_check
      _
    $region23: #{tpu_custom_call.1} parent=1 // pred_check_branch
      %23 = sbr.rel (0) target = $region25
    $region24: #{tpu_custom_call.1} parent=1 // pred_region
      _
    $region25: #{tpu_custom_call.1} parent=1 // pred_fallthru
      _
    %v24 = vld [vmem:[%s0] sm:$0xff]
    %v25 = vld [vmem:[%s0 + $0x8] sm:$0xff]
    %v26 = vld [vmem:[%s0 + $0x10] sm:$0xff]
    %v27 = vld [vmem:[%s0 + $0x18] sm:$0xff]
    %v28 = vld [vmem:[%s0 + $0x20] sm:$0xff]
    %v29 = vld [vmem:[%s0 + $0x28] sm:$0xff]
    %v30 = vld [vmem:[%s0 + $0x30] sm:$0xff]
    %v31 = vld [vmem:[%s0 + $0x38] sm:$0xff]
    %v32 = vld [vmem:[%s0 + $0x40] sm:$0xff]
    %v33 = vld [vmem:[%s0 + $0x48] sm:$0xff]
    %v34 = vld [vmem:[%s0 + $0x50] sm:$0xff]
    %v35 = vld [vmem:[%s0 + $0x58] sm:$0xff]
    %v36 = vld [vmem:[%s0 + $0x60] sm:$0xff]
    %v37 = vld [vmem:[%s0 + $0x68] sm:$0xff]
    %v38 = vld [vmem:[%s0 + $0x70] sm:$0xff]
    %v39 = vld [vmem:[%s0 + $0x78] sm:$0xff]
    %v40 = vld [vmem:[%s1] sm:$0xff]
    %v41 = vld [vmem:[%s1 + $0x8] sm:$0xff]
    %v42 = vld [vmem:[%s1 + $0x10] sm:$0xff]
    %v43 = vld [vmem:[%s1 + $0x18] sm:$0xff]
    %v44 = vld [vmem:[%s1 + $0x20] sm:$0xff]
    %v45 = vld [vmem:[%s1 + $0x28] sm:$0xff]
    %v46 = vld [vmem:[%s2] sm:$0x1]
    %v48 = vperm.slane %v46, 0
    %vm50 = vcmask 392192
    %v52 = vsel %vm50, %v24, 0
    %v55 = vsel %vm50, %v25, 0
    %v58 = vsel %vm50, %v26, 0
    %v61 = vsel %vm50, %v27, 0
    %v64 = vsel %vm50, %v28, 0
    %v67 = vsel %vm50, %v29, 0
    %v70 = vsel %vm50, %v30, 0
    %v73 = vsel %vm50, %v31, 0
    %v76 = vsel %vm50, %v32, 0
    %v79 = vsel %vm50, %v33, 0
    %v82 = vsel %vm50, %v34, 0
    %v85 = vsel %vm50, %v35, 0
    %v88 = vsel %vm50, %v36, 0
    %v91 = vsel %vm50, %v37, 0
    %v94 = vsel %vm50, %v38, 0
    %v97 = vsel %vm50, %v39, 0
    %99 = vmatpush.msra.mxu0 0.0
    %100 = vmatpush.msra.mxu0 0.0
    %101 = vmatpush.msra.mxu0 0.0
    %102 = vmatpush.msra.mxu0 0.0
    %103 = vmatpush.msra.mxu0 0.0
    %104 = vmatpush.msra.mxu0 0.0
    %105 = vmatpush.msra.mxu0 0.0
    %106 = vmatpush.msra.mxu0 0.0
    %107 = vmatpush.msra.mxu0 0.0
    %108 = vmatpush.msra.mxu0 0.0
    %109 = vmatpush.msra.mxu0 %v45
    %110 = vmatpush.msra.mxu0 %v44
    %111 = vmatpush.msra.mxu0 %v43
    %112 = vmatpush.msra.mxu0 %v42
    %113 = vmatpush.msra.mxu0 %v41
    %114 = vmatpush.msra.mxu0 %v40
    %115 = vmatmul.f32.gmra.mxu0 %v52
    %v116 = vpop.f32.mrf.mxu0
    %v117 = vadd.f32 %v48, %v116
    %118 = vmatmul.f32.gmra.mxu0 %v55
    %v119 = vpop.f32.mrf.mxu0
    %v120 = vadd.f32 %v48, %v119
    %121 = vmatmul.f32.gmra.mxu0 %v58
    %v122 = vpop.f32.mrf.mxu0
    %v123 = vadd.f32 %v48, %v122
    %124 = vmatmul.f32.gmra.mxu0 %v61
    %v125 = vpop.f32.mrf.mxu0
    %v126 = vadd.f32 %v48, %v125
    %127 = vmatmul.f32.gmra.mxu0 %v64
    %v128 = vpop.f32.mrf.mxu0
    %v129 = vadd.f32 %v48, %v128
    %130 = vmatmul.f32.gmra.mxu0 %v67
    %v131 = vpop.f32.mrf.mxu0
    %v132 = vadd.f32 %v48, %v131
    %133 = vmatmul.f32.gmra.mxu0 %v70
    %v134 = vpop.f32.mrf.mxu0
    %v135 = vadd.f32 %v48, %v134
    %136 = vmatmul.f32.gmra.mxu0 %v73
    %v137 = vpop.f32.mrf.mxu0
    %v138 = vadd.f32 %v48, %v137
    %139 = vmatmul.f32.gmra.mxu0 %v76
    %v140 = vpop.f32.mrf.mxu0
    %v141 = vadd.f32 %v48, %v140
    %142 = vmatmul.f32.gmra.mxu0 %v79
    %v143 = vpop.f32.mrf.mxu0
    %v144 = vadd.f32 %v48, %v143
    %145 = vmatmul.f32.gmra.mxu0 %v82
    %v146 = vpop.f32.mrf.mxu0
    %v147 = vadd.f32 %v48, %v146
    %148 = vmatmul.f32.gmra.mxu0 %v85
    %v149 = vpop.f32.mrf.mxu0
    %v150 = vadd.f32 %v48, %v149
    %151 = vmatmul.f32.gmra.mxu0 %v88
    %v152 = vpop.f32.mrf.mxu0
    %v153 = vadd.f32 %v48, %v152
    %154 = vmatmul.f32.gmra.mxu0 %v91
    %v155 = vpop.f32.mrf.mxu0
    %v156 = vadd.f32 %v48, %v155
    %157 = vmatmul.f32.gmra.mxu0 %v94
    %v158 = vpop.f32.mrf.mxu0
    %v159 = vadd.f32 %v48, %v158
    %160 = vmatmul.f32.gmra.mxu0 %v97
    %v161 = vpop.f32.mrf.mxu0
    %v162 = vadd.f32 %v48, %v161
    %163 = vdwg.mxu0
    %v164 = vmax.f32 %v117, 0.0
    %v165 = vmax.f32 %v120, 0.0
    %v166 = vmax.f32 %v123, 0.0
    %v167 = vmax.f32 %v126, 0.0
    %v168 = vmax.f32 %v129, 0.0
    %v169 = vmax.f32 %v132, 0.0
    %v170 = vmax.f32 %v135, 0.0
    %v171 = vmax.f32 %v138, 0.0
    %v172 = vmax.f32 %v141, 0.0
    %v173 = vmax.f32 %v144, 0.0
    %v174 = vmax.f32 %v147, 0.0
    %v175 = vmax.f32 %v150, 0.0
    %v176 = vmax.f32 %v153, 0.0
    %v177 = vmax.f32 %v156, 0.0
    %v178 = vmax.f32 %v159, 0.0
    %v179 = vmax.f32 %v162, 0.0
    %v180 = vld [vmem:[%s3] sm:$0xff]
    %v181 = vld [vmem:[%s3 + $0x8] sm:$0xff]
    %v182 = vld [vmem:[%s3 + $0x10] sm:$0xff]
    %v183 = vld [vmem:[%s3 + $0x18] sm:$0xff]
    %v184 = vld [vmem:[%s3 + $0x20] sm:$0xff]
    %v185 = vld [vmem:[%s3 + $0x28] sm:$0xff]
    %v186 = vld [vmem:[%s3 + $0x30] sm:$0xff]
    %v187 = vld [vmem:[%s3 + $0x38] sm:$0xff]
    %v188 = vld [vmem:[%s3 + $0x40] sm:$0xff]
    %v189 = vld [vmem:[%s3 + $0x48] sm:$0xff]
    %v190 = vld [vmem:[%s3 + $0x50] sm:$0xff]
    %v191 = vld [vmem:[%s3 + $0x58] sm:$0xff]
    %v192 = vld [vmem:[%s3 + $0x60] sm:$0xff]
    %v193 = vld [vmem:[%s3 + $0x68] sm:$0xff]
    %v194 = vld [vmem:[%s3 + $0x70] sm:$0xff]
    %v195 = vld [vmem:[%s3 + $0x78] sm:$0xff]
    %v196 = vld [vmem:[%s4] sm:$0x1]
    %v198 = vperm.slane %v196, 0
    %200 = vmatpush.msra.mxu0 %v195
    %201 = vmatpush.msra.mxu0 %v194
    %202 = vmatpush.msra.mxu0 %v193
    %203 = vmatpush.msra.mxu0 %v192
    %204 = vmatpush.msra.mxu0 %v191
    %205 = vmatpush.msra.mxu0 %v190
    %206 = vmatpush.msra.mxu0 %v189
    %207 = vmatpush.msra.mxu0 %v188
    %208 = vmatpush.msra.mxu0 %v187
    %209 = vmatpush.msra.mxu0 %v186
    %210 = vmatpush.msra.mxu0 %v185
    %211 = vmatpush.msra.mxu0 %v184
    %212 = vmatpush.msra.mxu0 %v183
    %213 = vmatpush.msra.mxu0 %v182
    %214 = vmatpush.msra.mxu0 %v181
    %215 = vmatpush.msra.mxu0 %v180
    %216 = vmatmul.f32.gmra.mxu0 %v164
    %v217 = vpop.f32.mrf.mxu0
    %v218 = vadd.f32 %v198, %v217
    %219 = vmatmul.f32.gmra.mxu0 %v165
    %v220 = vpop.f32.mrf.mxu0
    %v221 = vadd.f32 %v198, %v220
    %222 = vmatmul.f32.gmra.mxu0 %v166
    %v223 = vpop.f32.mrf.mxu0
    %v224 = vadd.f32 %v198, %v223
    %225 = vmatmul.f32.gmra.mxu0 %v167
    %v226 = vpop.f32.mrf.mxu0
    %v227 = vadd.f32 %v198, %v226
    %228 = vmatmul.f32.gmra.mxu0 %v168
    %v229 = vpop.f32.mrf.mxu0
    %v230 = vadd.f32 %v198, %v229
    %231 = vmatmul.f32.gmra.mxu0 %v169
    %v232 = vpop.f32.mrf.mxu0
    %v233 = vadd.f32 %v198, %v232
    %234 = vmatmul.f32.gmra.mxu0 %v170
    %v235 = vpop.f32.mrf.mxu0
    %v236 = vadd.f32 %v198, %v235
    %237 = vmatmul.f32.gmra.mxu0 %v171
    %v238 = vpop.f32.mrf.mxu0
    %v239 = vadd.f32 %v198, %v238
    %240 = vmatmul.f32.gmra.mxu0 %v172
    %v241 = vpop.f32.mrf.mxu0
    %v242 = vadd.f32 %v198, %v241
    %243 = vmatmul.f32.gmra.mxu0 %v173
    %v244 = vpop.f32.mrf.mxu0
    %v245 = vadd.f32 %v198, %v244
    %246 = vmatmul.f32.gmra.mxu0 %v174
    %v247 = vpop.f32.mrf.mxu0
    %v248 = vadd.f32 %v198, %v247
    %249 = vmatmul.f32.gmra.mxu0 %v175
    %v250 = vpop.f32.mrf.mxu0
    %v251 = vadd.f32 %v198, %v250
    %252 = vmatmul.f32.gmra.mxu0 %v176
    %v253 = vpop.f32.mrf.mxu0
    %v254 = vadd.f32 %v198, %v253
    %255 = vmatmul.f32.gmra.mxu0 %v177
    %v256 = vpop.f32.mrf.mxu0
    %v257 = vadd.f32 %v198, %v256
    %258 = vmatmul.f32.gmra.mxu0 %v178
    %v259 = vpop.f32.mrf.mxu0
    %v260 = vadd.f32 %v198, %v259
    %261 = vmatmul.f32.gmra.mxu0 %v179
    %v262 = vpop.f32.mrf.mxu0
    %v263 = vadd.f32 %v198, %v262
    %264 = vdwg.mxu0
    %v265 = vld [vmem:[%s5] sm:$0x1]
    %s266 = smul.u32 0, 128
    %v267 = vlaneseq
    %v268 = vshrl.u32 %v267, 7
    %v269 = vadd.s32 %v268, 8
    %v270 = vadd.s32 %v268, 16
    %v271 = vadd.s32 %v268, 24
    %v272 = vadd.s32 %v268, 32
    %v273 = vadd.s32 %v268, 40
    %v274 = vadd.s32 %v268, 48
    %v275 = vadd.s32 %v268, 56
    %v276 = vadd.s32 %v268, 64
    %v277 = vadd.s32 %v268, 72
    %v278 = vadd.s32 %v268, 80
    %v279 = vadd.s32 %v268, 88
    %v280 = vadd.s32 %v268, 96
    %v281 = vadd.s32 %v268, 104
    %v282 = vadd.s32 %v268, 112
    %v283 = vadd.s32 %v268, 120
    %v284 = vstv %s266
    %v285 = vadd.s32 %v284, %v268
    %v286 = vadd.s32 %v284, %v269
    %v287 = vadd.s32 %v284, %v270
    %v288 = vadd.s32 %v284, %v271
    %v289 = vadd.s32 %v284, %v272
    %v290 = vadd.s32 %v284, %v273
    %v291 = vadd.s32 %v284, %v274
    %v292 = vadd.s32 %v284, %v275
    %v293 = vadd.s32 %v284, %v276
    %v294 = vadd.s32 %v284, %v277
    %v295 = vadd.s32 %v284, %v278
    %v296 = vadd.s32 %v284, %v279
    %v297 = vadd.s32 %v284, %v280
    %v298 = vadd.s32 %v284, %v281
    %v299 = vadd.s32 %v284, %v282
    %v300 = vadd.s32 %v284, %v283
    %vm301 = vcmp.lt.s32.totalorder %v285, 0
    %v302 = vsub.s32 0, %v285
    %v303 = vsel %vm301, %v302, %v285
    %v304 = vshrl.u32 %v303, 6
    %v305 = vand.u32 %v303, 63
    %v306 = vsub.s32 0, %v305
    %v307 = vsel %vm301, %v306, %v305
    %vm308 = vcmp.lt.s32.totalorder %v286, 0
    %v309 = vsub.s32 0, %v286
    %v310 = vsel %vm308, %v309, %v286
    %v311 = vshrl.u32 %v310, 6
    %v312 = vand.u32 %v310, 63
    %v313 = vsub.s32 0, %v312
    %v314 = vsel %vm308, %v313, %v312
    %vm315 = vcmp.lt.s32.totalorder %v287, 0
    %v316 = vsub.s32 0, %v287
    %v317 = vsel %vm315, %v316, %v287
    %v318 = vshrl.u32 %v317, 6
    %v319 = vand.u32 %v317, 63
    %v320 = vsub.s32 0, %v319
    %v321 = vsel %vm315, %v320, %v319
    %vm322 = vcmp.lt.s32.totalorder %v288, 0
    %v323 = vsub.s32 0, %v288
    %v324 = vsel %vm322, %v323, %v288
    %v325 = vshrl.u32 %v324, 6
    %v326 = vand.u32 %v324, 63
    %v327 = vsub.s32 0, %v326
    %v328 = vsel %vm322, %v327, %v326
    %vm329 = vcmp.lt.s32.totalorder %v289, 0
    %v330 = vsub.s32 0, %v289
    %v331 = vsel %vm329, %v330, %v289
    %v332 = vshrl.u32 %v331, 6
    %v333 = vand.u32 %v331, 63
    %v334 = vsub.s32 0, %v333
    %v335 = vsel %vm329, %v334, %v333
    %vm336 = vcmp.lt.s32.totalorder %v290, 0
    %v337 = vsub.s32 0, %v290
    %v338 = vsel %vm336, %v337, %v290
    %v339 = vshrl.u32 %v338, 6
    %v340 = vand.u32 %v338, 63
    %v341 = vsub.s32 0, %v340
    %v342 = vsel %vm336, %v341, %v340
    %vm343 = vcmp.lt.s32.totalorder %v291, 0
    %v344 = vsub.s32 0, %v291
    %v345 = vsel %vm343, %v344, %v291
    %v346 = vshrl.u32 %v345, 6
    %v347 = vand.u32 %v345, 63
    %v348 = vsub.s32 0, %v347
    %v349 = vsel %vm343, %v348, %v347
    %vm350 = vcmp.lt.s32.totalorder %v292, 0
    %v351 = vsub.s32 0, %v292
    %v352 = vsel %vm350, %v351, %v292
    %v353 = vshrl.u32 %v352, 6
    %v354 = vand.u32 %v352, 63
    %v355 = vsub.s32 0, %v354
    %v356 = vsel %vm350, %v355, %v354
    %vm357 = vcmp.lt.s32.totalorder %v293, 0
    %v358 = vsub.s32 0, %v293
    %v359 = vsel %vm357, %v358, %v293
    %v360 = vshrl.u32 %v359, 6
    %v361 = vand.u32 %v359, 63
    %v362 = vsub.s32 0, %v361
    %v363 = vsel %vm357, %v362, %v361
    %vm364 = vcmp.lt.s32.totalorder %v294, 0
    %v365 = vsub.s32 0, %v294
    %v366 = vsel %vm364, %v365, %v294
    %v367 = vshrl.u32 %v366, 6
    %v368 = vand.u32 %v366, 63
    %v369 = vsub.s32 0, %v368
    %v370 = vsel %vm364, %v369, %v368
    %vm371 = vcmp.lt.s32.totalorder %v295, 0
    %v372 = vsub.s32 0, %v295
    %v373 = vsel %vm371, %v372, %v295
    %v374 = vshrl.u32 %v373, 6
    %v375 = vand.u32 %v373, 63
    %v376 = vsub.s32 0, %v375
    %v377 = vsel %vm371, %v376, %v375
    %vm378 = vcmp.lt.s32.totalorder %v296, 0
    %v379 = vsub.s32 0, %v296
    %v380 = vsel %vm378, %v379, %v296
    %v381 = vshrl.u32 %v380, 6
    %v382 = vand.u32 %v380, 63
    %v383 = vsub.s32 0, %v382
    %v384 = vsel %vm378, %v383, %v382
    %vm385 = vcmp.lt.s32.totalorder %v297, 0
    %v386 = vsub.s32 0, %v297
    %v387 = vsel %vm385, %v386, %v297
    %v388 = vshrl.u32 %v387, 6
    %v389 = vand.u32 %v387, 63
    %v390 = vsub.s32 0, %v389
    %v391 = vsel %vm385, %v390, %v389
    %vm392 = vcmp.lt.s32.totalorder %v298, 0
    %v393 = vsub.s32 0, %v298
    %v394 = vsel %vm392, %v393, %v298
    %v395 = vshrl.u32 %v394, 6
    %v396 = vand.u32 %v394, 63
    %v397 = vsub.s32 0, %v396
    %v398 = vsel %vm392, %v397, %v396
    %vm399 = vcmp.lt.s32.totalorder %v299, 0
    %v400 = vsub.s32 0, %v299
    %v401 = vsel %vm399, %v400, %v299
    %v402 = vshrl.u32 %v401, 6
    %v403 = vand.u32 %v401, 63
    %v404 = vsub.s32 0, %v403
    %v405 = vsel %vm399, %v404, %v403
    %vm406 = vcmp.lt.s32.totalorder %v300, 0
    %v407 = vsub.s32 0, %v300
    %v408 = vsel %vm406, %v407, %v300
    %v409 = vshrl.u32 %v408, 6
    %v410 = vand.u32 %v408, 63
    %v411 = vsub.s32 0, %v410
    %v412 = vsel %vm406, %v411, %v410
    %vm413 = vcmp.ne.s32.totalorder %v307, 0
    %vm414 = vcmp.ne.s32.totalorder %v314, 0
    %vm415 = vcmp.ne.s32.totalorder %v321, 0
    %vm416 = vcmp.ne.s32.totalorder %v328, 0
    %vm417 = vcmp.ne.s32.totalorder %v335, 0
    %vm418 = vcmp.ne.s32.totalorder %v342, 0
    %vm419 = vcmp.ne.s32.totalorder %v349, 0
    %vm420 = vcmp.ne.s32.totalorder %v356, 0
    %vm421 = vcmp.ne.s32.totalorder %v363, 0
    %vm422 = vcmp.ne.s32.totalorder %v370, 0
    %vm423 = vcmp.ne.s32.totalorder %v377, 0
    %vm424 = vcmp.ne.s32.totalorder %v384, 0
    %vm425 = vcmp.ne.s32.totalorder %v391, 0
    %vm426 = vcmp.ne.s32.totalorder %v398, 0
    %vm427 = vcmp.ne.s32.totalorder %v405, 0
    %vm428 = vcmp.ne.s32.totalorder %v412, 0
    %vm429 = vcmp.lt.s32.totalorder %v307, 0
    %vm430 = vcmp.lt.s32.totalorder %v314, 0
    %vm431 = vcmp.lt.s32.totalorder %v321, 0
    %vm432 = vcmp.lt.s32.totalorder %v328, 0
    %vm433 = vcmp.lt.s32.totalorder %v335, 0
    %vm434 = vcmp.lt.s32.totalorder %v342, 0
    %vm435 = vcmp.lt.s32.totalorder %v349, 0
    %vm436 = vcmp.lt.s32.totalorder %v356, 0
    %vm437 = vcmp.lt.s32.totalorder %v363, 0
    %vm438 = vcmp.lt.s32.totalorder %v370, 0
    %vm439 = vcmp.lt.s32.totalorder %v377, 0
    %vm440 = vcmp.lt.s32.totalorder %v384, 0
    %vm441 = vcmp.lt.s32.totalorder %v391, 0
    %vm442 = vcmp.lt.s32.totalorder %v398, 0
    %vm443 = vcmp.lt.s32.totalorder %v405, 0
    %vm444 = vcmp.lt.s32.totalorder %v412, 0
    %vm445 = vmand %vm429, %vm413
    %vm446 = vmand %vm430, %vm414
    %vm447 = vmand %vm431, %vm415
    %vm448 = vmand %vm432, %vm416
    %vm449 = vmand %vm433, %vm417
    %vm450 = vmand %vm434, %vm418
    %vm451 = vmand %vm435, %vm419
    %vm452 = vmand %vm436, %vm420
    %vm453 = vmand %vm437, %vm421
    %vm454 = vmand %vm438, %vm422
    %vm455 = vmand %vm439, %vm423
    %vm456 = vmand %vm440, %vm424
    %vm457 = vmand %vm441, %vm425
    %vm458 = vmand %vm442, %vm426
    %vm459 = vmand %vm443, %vm427
    %vm460 = vmand %vm444, %vm428
    %v461 = vadd.s32 %v307, 64
    %v462 = vadd.s32 %v314, 64
    %v463 = vadd.s32 %v321, 64
    %v464 = vadd.s32 %v328, 64
    %v465 = vadd.s32 %v335, 64
    %v466 = vadd.s32 %v342, 64
    %v467 = vadd.s32 %v349, 64
    %v468 = vadd.s32 %v356, 64
    %v469 = vadd.s32 %v363, 64
    %v470 = vadd.s32 %v370, 64
    %v471 = vadd.s32 %v377, 64
    %v472 = vadd.s32 %v384, 64
    %v473 = vadd.s32 %v391, 64
    %v474 = vadd.s32 %v398, 64
    %v475 = vadd.s32 %v405, 64
    %v476 = vadd.s32 %v412, 64
    %v477 = vsel %vm445, %v461, %v307
    %v478 = vsel %vm446, %v462, %v314
    %v479 = vsel %vm447, %v463, %v321
    %v480 = vsel %vm448, %v464, %v328
    %v481 = vsel %vm449, %v465, %v335
    %v482 = vsel %vm450, %v466, %v342
    %v483 = vsel %vm451, %v467, %v349
    %v484 = vsel %vm452, %v468, %v356
    %v485 = vsel %vm453, %v469, %v363
    %v486 = vsel %vm454, %v470, %v370
    %v487 = vsel %vm455, %v471, %v377
    %v488 = vsel %vm456, %v472, %v384
    %v489 = vsel %vm457, %v473, %v391
    %v490 = vsel %vm458, %v474, %v398
    %v491 = vsel %vm459, %v475, %v405
    %v492 = vsel %vm460, %v476, %v412
    %v493 = vcvt.s32.f32 %v477
    %v494 = vcvt.s32.f32 %v478
    %v495 = vcvt.s32.f32 %v479
    %v496 = vcvt.s32.f32 %v480
    %v497 = vcvt.s32.f32 %v481
    %v498 = vcvt.s32.f32 %v482
    %v499 = vcvt.s32.f32 %v483
    %v500 = vcvt.s32.f32 %v484
    %v501 = vcvt.s32.f32 %v485
    %v502 = vcvt.s32.f32 %v486
    %v503 = vcvt.s32.f32 %v487
    %v504 = vcvt.s32.f32 %v488
    %v505 = vcvt.s32.f32 %v489
    %v506 = vcvt.s32.f32 %v490
    %v507 = vcvt.s32.f32 %v491
    %v508 = vcvt.s32.f32 %v492
    %v510 = vperm.slane %v265, 0
    %v512 = vmul.f32 %v493, %v510
    %v513 = vmul.f32 %v494, %v510
    %v514 = vmul.f32 %v495, %v510
    %v515 = vmul.f32 %v496, %v510
    %v516 = vmul.f32 %v497, %v510
    %v517 = vmul.f32 %v498, %v510
    %v518 = vmul.f32 %v499, %v510
    %v519 = vmul.f32 %v500, %v510
    %v520 = vmul.f32 %v501, %v510
    %v521 = vmul.f32 %v502, %v510
    %v522 = vmul.f32 %v503, %v510
    %v523 = vmul.f32 %v504, %v510
    %v524 = vmul.f32 %v505, %v510
    %v525 = vmul.f32 %v506, %v510
    %v526 = vmul.f32 %v507, %v510
    %v527 = vmul.f32 %v508, %v510
    %v528 = vand.u32 2147483647, %v512
    %vm529 = vcmp.le.f32.partialorder %v528, 0.7853982
    %vm530 = vcmp.lt.s32.totalorder %v512, 0
    %v531 = vand.u32 %v512, 2139095040
    %v532 = vshrl.u32 %v531, 23
    %v533 = vsub.s32 %v532, 127
    %v534 = vand.u32 2147483647, %v512
    %v535 = vand.u32 %v534, 8388607
    %v536 = vor.u32 %v535, 8388608
    %v537 = vsub.s32 0, %v536
    %v538 = vadd.s32 %v533, 1
    %vm539 = vcmp.gt.s32.totalorder %v538, 0
    %v540 = vsel %vm539, %v538, 0
    %v541 = vshrl.u32 %v540, 5
    %v542 = vand.u32 %v540, 31
    %v543 = vsub.s32 32, %v542
    %v544 = vshrl.u32 683565275, %v543
    %v545 = vshll.u32 683565275, %v542
    %v546 = vshrl.u32 2475754826, %v543
    %v547 = vor.u32 %v545, %v546
    %v548 = vshll.u32 2475754826, %v542
    %v549 = vshrl.u32 2131351028, %v543
    %v550 = vor.u32 %v548, %v549
    %v551 = vshll.u32 2131351028, %v542
    %v552 = vshrl.u32 2102212464, %v543
    %v553 = vor.u32 %v551, %v552
    %v554 = vshll.u32 2102212464, %v542
    %v555 = vshrl.u32 920167782, %v543
    %v556 = vor.u32 %v554, %v555
    %v557 = vshll.u32 920167782, %v542
    %v558 = vshrl.u32 1326507024, %v543
    %v559 = vor.u32 %v557, %v558
    %vm560 = vcmp.lt.s32.totalorder %v541, 1
    %vm561 = vcmp.lt.s32.totalorder %v541, 2
    %vm562 = vcmp.lt.s32.totalorder %v541, 3
    %vm563 = vcmp.lt.s32.totalorder %v541, 4
    %v564 = vsel %vm560, %v544, %v547
    %v565 = vsel %vm563, %v553, 2102212464
    %v566 = vsel %vm562, %v550, %v565
    %v567 = vsel %vm561, %v564, %v566
    %v568 = vsel %vm560, %v547, %v550
    %v569 = vsel %vm563, %v556, 920167782
    %v570 = vsel %vm562, %v553, %v569
    %v571 = vsel %vm561, %v568, %v570
    %v572 = vsel %vm560, %v550, %v553
    %v573 = vsel %vm563, %v559, 1326507024
    %v574 = vsel %vm562, %v556, %v573
    %v575 = vsel %vm561, %v572, %v574
    %v576 = vshll.u32 %v536, 8
    %v577 = vand.u32 %v576, 65535
    %v578 = vshrl.u32 %v576, 16
    %v579 = vand.u32 %v575, 65535
    %v580 = vshrl.u32 %v575, 16
    %v581 = vmul.u32 %v577, %v579
    %v582 = vmul.u32 %v577, %v580
    %v583 = vmul.u32 %v578, %v579
    %v584 = vmul.u32 %v578, %v580
    %v585 = vshll.u32 %v582, 16
    %v586 = vshrl.u32 %v582, 16
    %v587 = vshll.u32 %v583, 16
    %v588 = vshrl.u32 %v583, 16
    %vm589 = vc.u32 %v581, %v585
    %v590 = vsel %vm589, 1, 0
    %v591 = vadd.s32 %v581, %v585
    %v592 = vadd.s32 %v584, %v590
    %vm593 = vc.u32 %v591, %v587
    %v594 = vsel %vm593, 1, 0
    %v595 = vadd.s32 %v591, %v587
    %v596 = vadd.s32 %v592, %v594
    %v597 = vadd.s32 %v596, %v586
    %v598 = vadd.s32 %v597, %v588
    %v599 = vand.u32 %v576, 65535
    %v600 = vshrl.u32 %v576, 16
    %v601 = vand.u32 %v571, 65535
    %v602 = vshrl.u32 %v571, 16
    %v603 = vmul.u32 %v599, %v601
    %v604 = vmul.u32 %v599, %v602
    %v605 = vmul.u32 %v600, %v601
    %v606 = vmul.u32 %v600, %v602
    %v607 = vshll.u32 %v604, 16
    %v608 = vshrl.u32 %v604, 16
    %v609 = vshll.u32 %v605, 16
    %v610 = vshrl.u32 %v605, 16
    %vm611 = vc.u32 %v603, %v607
    %v612 = vsel %vm611, 1, 0
    %v613 = vadd.s32 %v603, %v607
    %v614 = vadd.s32 %v606, %v612
    %vm615 = vc.u32 %v613, %v609
    %v616 = vsel %vm615, 1, 0
    %v617 = vadd.s32 %v613, %v609
    %v618 = vadd.s32 %v614, %v616
    %v619 = vadd.s32 %v618, %v608
    %v620 = vadd.s32 %v619, %v610
    %v621 = vmul.u32 %v576, %v567
    %v622 = vadd.s32 %v598, %v617
    %vm623 = vc.u32 %v598, %v617
    %v624 = vadd.s32 %v620, 1
    %v625 = vsel %vm623, %v624, %v620
    %v626 = vadd.s32 %v621, %v625
    %v627 = vadd.s32 %v626, 536870912
    %v628 = vshrl.u32 %v627, 30
    %v629 = vshll.u32 %v628, 30
    %v630 = vsub.s32 %v626, %v629
    %vm631 = vcmp.lt.s32.totalorder %v630, 0
    %v632 = vsub.s32 0, %v630
    %v633 = vsel %vm631, %v632, %v630
    %v634 = vclz %v633
    %v635 = vsub.s32 %v634, 2
    %vm636 = vcmp.gt.s32.totalorder 0, %v635
    %v637 = vsel %vm636, 0, %v635
    %v638 = vsub.s32 32, %v637
    %v639 = vshll.u32 %v630, %v637
    %v640 = vshrl.u32 %v622, %v638
    %v641 = vor.u32 %v639, %v640
    %v642 = vsub.s32 4294967266, %v637
    %v643 = vadd.s32 %v642, 127
    %v644 = vshll.u32 %v643, 23
    %v645 = vor.u32 4788187, %v644
    %v646 = vand.u32 2147483647, %v645
    %v648 = vcvt.s32.f32 %v641
    %v649 = vmul.f32 %v648, %v646
    %v650 = vxor.u32 %v649, 2147483648
    %v651 = vsel %vm530, %v650, %v649
    %v652 = vsub.s32 4, %v628
    %v653 = vsel %vm530, %v652, %v628
    %v654 = vsel %vm529, %v512, %v651
    %v655 = vsel %vm529, 0, %v653
    %v656 = vmul.f32 %v654, %v654
    %v657 = vmul.f32 %v656, -0.001358992
    %v658 = vadd.f32 %v657, 0.041655596
    %v659 = vmul.f32 %v656, %v658
    %v660 = vadd.f32 %v659, -0.4999988
    %v661 = vmul.f32 %v656, %v660
    %v662 = vadd.f32 1.0, %v661
    %v663 = vmul.f32 %v654, %v654
    %v664 = vmul.f32 %v663, -0.00019511016
    %v665 = vadd.f32 %v664, 0.008332121
    %v666 = vmul.f32 %v663, %v665
    %v667 = vadd.f32 %v666, -0.16666654
    %v668 = vmul.f32 %v663, %v667
    %v669 = vadd.f32 %v668, 1.0
    %v670 = vmul.f32 %v669, %v654
    %vm671 = vweird.f32 %v512
    %v672 = vand.u32 %v655, 3
    %vm673 = vcmp.lt.s32.totalorder %v672, 2
    %vm674 = vcmp.eq.s32.totalorder %v672, 0
    %v675 = vxor.u32 %v670, 2147483648
    %v676 = vsel %vm674, %v662, %v675
    %vm677 = vcmp.eq.s32.totalorder %v672, 2
    %v678 = vxor.u32 %v662, 2147483648
    %v679 = vsel %vm677, %v678, %v670
    %v680 = vsel %vm673, %v676, %v679
    %v681 = vsel %vm671, nan, %v680
    %v682 = vand.u32 2147483647, %v513
    %vm683 = vcmp.le.f32.partialorder %v682, 0.7853982
    %vm684 = vcmp.lt.s32.totalorder %v513, 0
    %v685 = vand.u32 %v513, 2139095040
    %v686 = vshrl.u32 %v685, 23
    %v687 = vsub.s32 %v686, 127
    %v688 = vand.u32 2147483647, %v513
    %v689 = vand.u32 %v688, 8388607
    %v690 = vor.u32 %v689, 8388608
    %v691 = vsub.s32 0, %v690
    %v692 = vadd.s32 %v687, 1
    %vm693 = vcmp.gt.s32.totalorder %v692, 0
    %v694 = vsel %vm693, %v692, 0
    %v695 = vshrl.u32 %v694, 5
    %v696 = vand.u32 %v694, 31
    %v697 = vsub.s32 32, %v696
    %v698 = vshrl.u32 683565275, %v697
    %v699 = vshll.u32 683565275, %v696
    %v700 = vshrl.u32 2475754826, %v697
    %v701 = vor.u32 %v699, %v700
    %v702 = vshll.u32 2475754826, %v696
    %v703 = vshrl.u32 2131351028, %v697
    %v704 = vor.u32 %v702, %v703
    %v705 = vshll.u32 2131351028, %v696
    %v706 = vshrl.u32 2102212464, %v697
    %v707 = vor.u32 %v705, %v706
    %v708 = vshll.u32 2102212464, %v696
    %v709 = vshrl.u32 920167782, %v697
    %v710 = vor.u32 %v708, %v709
    %v711 = vshll.u32 920167782, %v696
    %v712 = vshrl.u32 1326507024, %v697
    %v713 = vor.u32 %v711, %v712
    %vm714 = vcmp.lt.s32.totalorder %v695, 1
    %vm715 = vcmp.lt.s32.totalorder %v695, 2
    %vm716 = vcmp.lt.s32.totalorder %v695, 3
    %vm717 = vcmp.lt.s32.totalorder %v695, 4
    %v718 = vsel %vm714, %v698, %v701
    %v719 = vsel %vm717, %v707, 2102212464
    %v720 = vsel %vm716, %v704, %v719
    %v721 = vsel %vm715, %v718, %v720
    %v722 = vsel %vm714, %v701, %v704
    %v723 = vsel %vm717, %v710, 920167782
    %v724 = vsel %vm716, %v707, %v723
    %v725 = vsel %vm715, %v722, %v724
    %v726 = vsel %vm714, %v704, %v707
    %v727 = vsel %vm717, %v713, 1326507024
    %v728 = vsel %vm716, %v710, %v727
    %v729 = vsel %vm715, %v726, %v728
    %v730 = vshll.u32 %v690, 8
    %v731 = vand.u32 %v730, 65535
    %v732 = vshrl.u32 %v730, 16
    %v733 = vand.u32 %v729, 65535
    %v734 = vshrl.u32 %v729, 16
    %v735 = vmul.u32 %v731, %v733
    %v736 = vmul.u32 %v731, %v734
    %v737 = vmul.u32 %v732, %v733
    %v738 = vmul.u32 %v732, %v734
    %v739 = vshll.u32 %v736, 16
    %v740 = vshrl.u32 %v736, 16
    %v741 = vshll.u32 %v737, 16
    %v742 = vshrl.u32 %v737, 16
    %vm743 = vc.u32 %v735, %v739
    %v744 = vsel %vm743, 1, 0
    %v745 = vadd.s32 %v735, %v739
    %v746 = vadd.s32 %v738, %v744
    %vm747 = vc.u32 %v745, %v741
    %v748 = vsel %vm747, 1, 0
    %v749 = vadd.s32 %v745, %v741
    %v750 = vadd.s32 %v746, %v748
    %v751 = vadd.s32 %v750, %v740
    %v752 = vadd.s32 %v751, %v742
    %v753 = vand.u32 %v730, 65535
    %v754 = vshrl.u32 %v730, 16
    %v755 = vand.u32 %v725, 65535
    %v756 = vshrl.u32 %v725, 16
    %v757 = vmul.u32 %v753, %v755
    %v758 = vmul.u32 %v753, %v756
    %v759 = vmul.u32 %v754, %v755
    %v760 = vmul.u32 %v754, %v756
    %v761 = vshll.u32 %v758, 16
    %v762 = vshrl.u32 %v758, 16
    %v763 = vshll.u32 %v759, 16
    %v764 = vshrl.u32 %v759, 16
    %vm765 = vc.u32 %v757, %v761
    %v766 = vsel %vm765, 1, 0
    %v767 = vadd.s32 %v757, %v761
    %v768 = vadd.s32 %v760, %v766
    %vm769 = vc.u32 %v767, %v763
    %v770 = vsel %vm769, 1, 0
    %v771 = vadd.s32 %v767, %v763
    %v772 = vadd.s32 %v768, %v770
    %v773 = vadd.s32 %v772, %v762
    %v774 = vadd.s32 %v773, %v764
    %v775 = vmul.u32 %v730, %v721
    %v776 = vadd.s32 %v752, %v771
    %vm777 = vc.u32 %v752, %v771
    %v778 = vadd.s32 %v774, 1
    %v779 = vsel %vm777, %v778, %v774
    %v780 = vadd.s32 %v775, %v779
    %v781 = vadd.s32 %v780, 536870912
    %v782 = vshrl.u32 %v781, 30
    %v783 = vshll.u32 %v782, 30
    %v784 = vsub.s32 %v780, %v783
    %vm785 = vcmp.lt.s32.totalorder %v784, 0
    %v786 = vsub.s32 0, %v784
    %v787 = vsel %vm785, %v786, %v784
    %v788 = vclz %v787
    %v789 = vsub.s32 %v788, 2
    %vm790 = vcmp.gt.s32.totalorder 0, %v789
    %v791 = vsel %vm790, 0, %v789
    %v792 = vsub.s32 32, %v791
    %v793 = vshll.u32 %v784, %v791
    %v794 = vshrl.u32 %v776, %v792
    %v795 = vor.u32 %v793, %v794
    %v796 = vsub.s32 4294967266, %v791
    %v797 = vadd.s32 %v796, 127
    %v798 = vshll.u32 %v797, 23
    %v799 = vor.u32 4788187, %v798
    %v800 = vand.u32 2147483647, %v799
    %v802 = vcvt.s32.f32 %v795
    %v803 = vmul.f32 %v802, %v800
    %v804 = vxor.u32 %v803, 2147483648
    %v805 = vsel %vm684, %v804, %v803
    %v806 = vsub.s32 4, %v782
    %v807 = vsel %vm684, %v806, %v782
    %v808 = vsel %vm683, %v513, %v805
    %v809 = vsel %vm683, 0, %v807
    %v810 = vmul.f32 %v808, %v808
    %v811 = vmul.f32 %v810, -0.001358992
    %v812 = vadd.f32 %v811, 0.041655596
    %v813 = vmul.f32 %v810, %v812
    %v814 = vadd.f32 %v813, -0.4999988
    %v815 = vmul.f32 %v810, %v814
    %v816 = vadd.f32 1.0, %v815
    %v817 = vmul.f32 %v808, %v808
    %v818 = vmul.f32 %v817, -0.00019511016
    %v819 = vadd.f32 %v818, 0.008332121
    %v820 = vmul.f32 %v817, %v819
    %v821 = vadd.f32 %v820, -0.16666654
    %v822 = vmul.f32 %v817, %v821
    %v823 = vadd.f32 %v822, 1.0
    %v824 = vmul.f32 %v823, %v808
    %vm825 = vweird.f32 %v513
    %v826 = vand.u32 %v809, 3
    %vm827 = vcmp.lt.s32.totalorder %v826, 2
    %vm828 = vcmp.eq.s32.totalorder %v826, 0
    %v829 = vxor.u32 %v824, 2147483648
    %v830 = vsel %vm828, %v816, %v829
    %vm831 = vcmp.eq.s32.totalorder %v826, 2
    %v832 = vxor.u32 %v816, 2147483648
    %v833 = vsel %vm831, %v832, %v824
    %v834 = vsel %vm827, %v830, %v833
    %v835 = vsel %vm825, nan, %v834
    %v836 = vand.u32 2147483647, %v514
    %vm837 = vcmp.le.f32.partialorder %v836, 0.7853982
    %vm838 = vcmp.lt.s32.totalorder %v514, 0
    %v839 = vand.u32 %v514, 2139095040
    %v840 = vshrl.u32 %v839, 23
    %v841 = vsub.s32 %v840, 127
    %v842 = vand.u32 2147483647, %v514
    %v843 = vand.u32 %v842, 8388607
    %v844 = vor.u32 %v843, 8388608
    %v845 = vsub.s32 0, %v844
    %v846 = vadd.s32 %v841, 1
    %vm847 = vcmp.gt.s32.totalorder %v846, 0
    %v848 = vsel %vm847, %v846, 0
    %v849 = vshrl.u32 %v848, 5
    %v850 = vand.u32 %v848, 31
    %v851 = vsub.s32 32, %v850
    %v852 = vshrl.u32 683565275, %v851
    %v853 = vshll.u32 683565275, %v850
    %v854 = vshrl.u32 2475754826, %v851
    %v855 = vor.u32 %v853, %v854
    %v856 = vshll.u32 2475754826, %v850
    %v857 = vshrl.u32 2131351028, %v851
    %v858 = vor.u32 %v856, %v857
    %v859 = vshll.u32 2131351028, %v850
    %v860 = vshrl.u32 2102212464, %v851
    %v861 = vor.u32 %v859, %v860
    %v862 = vshll.u32 2102212464, %v850
    %v863 = vshrl.u32 920167782, %v851
    %v864 = vor.u32 %v862, %v863
    %v865 = vshll.u32 920167782, %v850
    %v866 = vshrl.u32 1326507024, %v851
    %v867 = vor.u32 %v865, %v866
    %vm868 = vcmp.lt.s32.totalorder %v849, 1
    %vm869 = vcmp.lt.s32.totalorder %v849, 2
    %vm870 = vcmp.lt.s32.totalorder %v849, 3
    %vm871 = vcmp.lt.s32.totalorder %v849, 4
    %v872 = vsel %vm868, %v852, %v855
    %v873 = vsel %vm871, %v861, 2102212464
    %v874 = vsel %vm870, %v858, %v873
    %v875 = vsel %vm869, %v872, %v874
    %v876 = vsel %vm868, %v855, %v858
    %v877 = vsel %vm871, %v864, 920167782
    %v878 = vsel %vm870, %v861, %v877
    %v879 = vsel %vm869, %v876, %v878
    %v880 = vsel %vm868, %v858, %v861
    %v881 = vsel %vm871, %v867, 1326507024
    %v882 = vsel %vm870, %v864, %v881
    %v883 = vsel %vm869, %v880, %v882
    %v884 = vshll.u32 %v844, 8
    %v885 = vand.u32 %v884, 65535
    %v886 = vshrl.u32 %v884, 16
    %v887 = vand.u32 %v883, 65535
    %v888 = vshrl.u32 %v883, 16
    %v889 = vmul.u32 %v885, %v887
    %v890 = vmul.u32 %v885, %v888
    %v891 = vmul.u32 %v886, %v887
    %v892 = vmul.u32 %v886, %v888
    %v893 = vshll.u32 %v890, 16
    %v894 = vshrl.u32 %v890, 16
    %v895 = vshll.u32 %v891, 16
    %v896 = vshrl.u32 %v891, 16
    %vm897 = vc.u32 %v889, %v893
    %v898 = vsel %vm897, 1, 0
    %v899 = vadd.s32 %v889, %v893
    %v900 = vadd.s32 %v892, %v898
    %vm901 = vc.u32 %v899, %v895
    %v902 = vsel %vm901, 1, 0
    %v903 = vadd.s32 %v899, %v895
    %v904 = vadd.s32 %v900, %v902
    %v905 = vadd.s32 %v904, %v894
    %v906 = vadd.s32 %v905, %v896
    %v907 = vand.u32 %v884, 65535
    %v908 = vshrl.u32 %v884, 16
    %v909 = vand.u32 %v879, 65535
    %v910 = vshrl.u32 %v879, 16
    %v911 = vmul.u32 %v907, %v909
    %v912 = vmul.u32 %v907, %v910
    %v913 = vmul.u32 %v908, %v909
    %v914 = vmul.u32 %v908, %v910
    %v915 = vshll.u32 %v912, 16
    %v916 = vshrl.u32 %v912, 16
    %v917 = vshll.u32 %v913, 16
    %v918 = vshrl.u32 %v913, 16
    %vm919 = vc.u32 %v911, %v915
    %v920 = vsel %vm919, 1, 0
    %v921 = vadd.s32 %v911, %v915
    %v922 = vadd.s32 %v914, %v920
    %vm923 = vc.u32 %v921, %v917
    %v924 = vsel %vm923, 1, 0
    %v925 = vadd.s32 %v921, %v917
    %v926 = vadd.s32 %v922, %v924
    %v927 = vadd.s32 %v926, %v916
    %v928 = vadd.s32 %v927, %v918
    %v929 = vmul.u32 %v884, %v875
    %v930 = vadd.s32 %v906, %v925
    %vm931 = vc.u32 %v906, %v925
    %v932 = vadd.s32 %v928, 1
    %v933 = vsel %vm931, %v932, %v928
    %v934 = vadd.s32 %v929, %v933
    %v935 = vadd.s32 %v934, 536870912
    %v936 = vshrl.u32 %v935, 30
    %v937 = vshll.u32 %v936, 30
    %v938 = vsub.s32 %v934, %v937
    %vm939 = vcmp.lt.s32.totalorder %v938, 0
    %v940 = vsub.s32 0, %v938
    %v941 = vsel %vm939, %v940, %v938
    %v942 = vclz %v941
    %v943 = vsub.s32 %v942, 2
    %vm944 = vcmp.gt.s32.totalorder 0, %v943
    %v945 = vsel %vm944, 0, %v943
    %v946 = vsub.s32 32, %v945
    %v947 = vshll.u32 %v938, %v945
    %v948 = vshrl.u32 %v930, %v946
    %v949 = vor.u32 %v947, %v948
    %v950 = vsub.s32 4294967266, %v945
    %v951 = vadd.s32 %v950, 127
    %v952 = vshll.u32 %v951, 23
    %v953 = vor.u32 4788187, %v952
    %v954 = vand.u32 2147483647, %v953
    %v956 = vcvt.s32.f32 %v949
    %v957 = vmul.f32 %v956, %v954
    %v958 = vxor.u32 %v957, 2147483648
    %v959 = vsel %vm838, %v958, %v957
    %v960 = vsub.s32 4, %v936
    %v961 = vsel %vm838, %v960, %v936
    %v962 = vsel %vm837, %v514, %v959
    %v963 = vsel %vm837, 0, %v961
    %v964 = vmul.f32 %v962, %v962
    %v965 = vmul.f32 %v964, -0.001358992
    %v966 = vadd.f32 %v965, 0.041655596
    %v967 = vmul.f32 %v964, %v966
    %v968 = vadd.f32 %v967, -0.4999988
    %v969 = vmul.f32 %v964, %v968
    %v970 = vadd.f32 1.0, %v969
    %v971 = vmul.f32 %v962, %v962
    %v972 = vmul.f32 %v971, -0.00019511016
    %v973 = vadd.f32 %v972, 0.008332121
    %v974 = vmul.f32 %v971, %v973
    %v975 = vadd.f32 %v974, -0.16666654
    %v976 = vmul.f32 %v971, %v975
    %v977 = vadd.f32 %v976, 1.0
    %v978 = vmul.f32 %v977, %v962
    %vm979 = vweird.f32 %v514
    %v980 = vand.u32 %v963, 3
    %vm981 = vcmp.lt.s32.totalorder %v980, 2
    %vm982 = vcmp.eq.s32.totalorder %v980, 0
    %v983 = vxor.u32 %v978, 2147483648
    %v984 = vsel %vm982, %v970, %v983
    %vm985 = vcmp.eq.s32.totalorder %v980, 2
    %v986 = vxor.u32 %v970, 2147483648
    %v987 = vsel %vm985, %v986, %v978
    %v988 = vsel %vm981, %v984, %v987
    %v989 = vsel %vm979, nan, %v988
    %v990 = vand.u32 2147483647, %v515
    %vm991 = vcmp.le.f32.partialorder %v990, 0.7853982
    %vm992 = vcmp.lt.s32.totalorder %v515, 0
    %v993 = vand.u32 %v515, 2139095040
    %v994 = vshrl.u32 %v993, 23
    %v995 = vsub.s32 %v994, 127
    %v996 = vand.u32 2147483647, %v515
    %v997 = vand.u32 %v996, 8388607
    %v998 = vor.u32 %v997, 8388608
    %v999 = vsub.s32 0, %v998
    %v1000 = vadd.s32 %v995, 1
    %vm1001 = vcmp.gt.s32.totalorder %v1000, 0
    %v1002 = vsel %vm1001, %v1000, 0
    %v1003 = vshrl.u32 %v1002, 5
    %v1004 = vand.u32 %v1002, 31
    %v1005 = vsub.s32 32, %v1004
    %v1006 = vshrl.u32 683565275, %v1005
    %v1007 = vshll.u32 683565275, %v1004
    %v1008 = vshrl.u32 2475754826, %v1005
    %v1009 = vor.u32 %v1007, %v1008
    %v1010 = vshll.u32 2475754826, %v1004
    %v1011 = vshrl.u32 2131351028, %v1005
    %v1012 = vor.u32 %v1010, %v1011
    %v1013 = vshll.u32 2131351028, %v1004
    %v1014 = vshrl.u32 2102212464, %v1005
    %v1015 = vor.u32 %v1013, %v1014
    %v1016 = vshll.u32 2102212464, %v1004
    %v1017 = vshrl.u32 920167782, %v1005
    %v1018 = vor.u32 %v1016, %v1017
    %v1019 = vshll.u32 920167782, %v1004
    %v1020 = vshrl.u32 1326507024, %v1005
    %v1021 = vor.u32 %v1019, %v1020
    %vm1022 = vcmp.lt.s32.totalorder %v1003, 1
    %vm1023 = vcmp.lt.s32.totalorder %v1003, 2
    %vm1024 = vcmp.lt.s32.totalorder %v1003, 3
    %vm1025 = vcmp.lt.s32.totalorder %v1003, 4
    %v1026 = vsel %vm1022, %v1006, %v1009
    %v1027 = vsel %vm1025, %v1015, 2102212464
    %v1028 = vsel %vm1024, %v1012, %v1027
    %v1029 = vsel %vm1023, %v1026, %v1028
    %v1030 = vsel %vm1022, %v1009, %v1012
    %v1031 = vsel %vm1025, %v1018, 920167782
    %v1032 = vsel %vm1024, %v1015, %v1031
    %v1033 = vsel %vm1023, %v1030, %v1032
    %v1034 = vsel %vm1022, %v1012, %v1015
    %v1035 = vsel %vm1025, %v1021, 1326507024
    %v1036 = vsel %vm1024, %v1018, %v1035
    %v1037 = vsel %vm1023, %v1034, %v1036
    %v1038 = vshll.u32 %v998, 8
    %v1039 = vand.u32 %v1038, 65535
    %v1040 = vshrl.u32 %v1038, 16
    %v1041 = vand.u32 %v1037, 65535
    %v1042 = vshrl.u32 %v1037, 16
    %v1043 = vmul.u32 %v1039, %v1041
    %v1044 = vmul.u32 %v1039, %v1042
    %v1045 = vmul.u32 %v1040, %v1041
    %v1046 = vmul.u32 %v1040, %v1042
    %v1047 = vshll.u32 %v1044, 16
    %v1048 = vshrl.u32 %v1044, 16
    %v1049 = vshll.u32 %v1045, 16
    %v1050 = vshrl.u32 %v1045, 16
    %vm1051 = vc.u32 %v1043, %v1047
    %v1052 = vsel %vm1051, 1, 0
    %v1053 = vadd.s32 %v1043, %v1047
    %v1054 = vadd.s32 %v1046, %v1052
    %vm1055 = vc.u32 %v1053, %v1049
    %v1056 = vsel %vm1055, 1, 0
    %v1057 = vadd.s32 %v1053, %v1049
    %v1058 = vadd.s32 %v1054, %v1056
    %v1059 = vadd.s32 %v1058, %v1048
    %v1060 = vadd.s32 %v1059, %v1050
    %v1061 = vand.u32 %v1038, 65535
    %v1062 = vshrl.u32 %v1038, 16
    %v1063 = vand.u32 %v1033, 65535
    %v1064 = vshrl.u32 %v1033, 16
    %v1065 = vmul.u32 %v1061, %v1063
    %v1066 = vmul.u32 %v1061, %v1064
    %v1067 = vmul.u32 %v1062, %v1063
    %v1068 = vmul.u32 %v1062, %v1064
    %v1069 = vshll.u32 %v1066, 16
    %v1070 = vshrl.u32 %v1066, 16
    %v1071 = vshll.u32 %v1067, 16
    %v1072 = vshrl.u32 %v1067, 16
    %vm1073 = vc.u32 %v1065, %v1069
    %v1074 = vsel %vm1073, 1, 0
    %v1075 = vadd.s32 %v1065, %v1069
    %v1076 = vadd.s32 %v1068, %v1074
    %vm1077 = vc.u32 %v1075, %v1071
    %v1078 = vsel %vm1077, 1, 0
    %v1079 = vadd.s32 %v1075, %v1071
    %v1080 = vadd.s32 %v1076, %v1078
    %v1081 = vadd.s32 %v1080, %v1070
    %v1082 = vadd.s32 %v1081, %v1072
    %v1083 = vmul.u32 %v1038, %v1029
    %v1084 = vadd.s32 %v1060, %v1079
    %vm1085 = vc.u32 %v1060, %v1079
    %v1086 = vadd.s32 %v1082, 1
    %v1087 = vsel %vm1085, %v1086, %v1082
    %v1088 = vadd.s32 %v1083, %v1087
    %v1089 = vadd.s32 %v1088, 536870912
    %v1090 = vshrl.u32 %v1089, 30
    %v1091 = vshll.u32 %v1090, 30
    %v1092 = vsub.s32 %v1088, %v1091
    %vm1093 = vcmp.lt.s32.totalorder %v1092, 0
    %v1094 = vsub.s32 0, %v1092
    %v1095 = vsel %vm1093, %v1094, %v1092
    %v1096 = vclz %v1095
    %v1097 = vsub.s32 %v1096, 2
    %vm1098 = vcmp.gt.s32.totalorder 0, %v1097
    %v1099 = vsel %vm1098, 0, %v1097
    %v1100 = vsub.s32 32, %v1099
    %v1101 = vshll.u32 %v1092, %v1099
    %v1102 = vshrl.u32 %v1084, %v1100
    %v1103 = vor.u32 %v1101, %v1102
    %v1104 = vsub.s32 4294967266, %v1099
    %v1105 = vadd.s32 %v1104, 127
    %v1106 = vshll.u32 %v1105, 23
    %v1107 = vor.u32 4788187, %v1106
    %v1108 = vand.u32 2147483647, %v1107
    %v1110 = vcvt.s32.f32 %v1103
    %v1111 = vmul.f32 %v1110, %v1108
    %v1112 = vxor.u32 %v1111, 2147483648
    %v1113 = vsel %vm992, %v1112, %v1111
    %v1114 = vsub.s32 4, %v1090
    %v1115 = vsel %vm992, %v1114, %v1090
    %v1116 = vsel %vm991, %v515, %v1113
    %v1117 = vsel %vm991, 0, %v1115
    %v1118 = vmul.f32 %v1116, %v1116
    %v1119 = vmul.f32 %v1118, -0.001358992
    %v1120 = vadd.f32 %v1119, 0.041655596
    %v1121 = vmul.f32 %v1118, %v1120
    %v1122 = vadd.f32 %v1121, -0.4999988
    %v1123 = vmul.f32 %v1118, %v1122
    %v1124 = vadd.f32 1.0, %v1123
    %v1125 = vmul.f32 %v1116, %v1116
    %v1126 = vmul.f32 %v1125, -0.00019511016
    %v1127 = vadd.f32 %v1126, 0.008332121
    %v1128 = vmul.f32 %v1125, %v1127
    %v1129 = vadd.f32 %v1128, -0.16666654
    %v1130 = vmul.f32 %v1125, %v1129
    %v1131 = vadd.f32 %v1130, 1.0
    %v1132 = vmul.f32 %v1131, %v1116
    %vm1133 = vweird.f32 %v515
    %v1134 = vand.u32 %v1117, 3
    %vm1135 = vcmp.lt.s32.totalorder %v1134, 2
    %vm1136 = vcmp.eq.s32.totalorder %v1134, 0
    %v1137 = vxor.u32 %v1132, 2147483648
    %v1138 = vsel %vm1136, %v1124, %v1137
    %vm1139 = vcmp.eq.s32.totalorder %v1134, 2
    %v1140 = vxor.u32 %v1124, 2147483648
    %v1141 = vsel %vm1139, %v1140, %v1132
    %v1142 = vsel %vm1135, %v1138, %v1141
    %v1143 = vsel %vm1133, nan, %v1142
    %v1144 = vand.u32 2147483647, %v516
    %vm1145 = vcmp.le.f32.partialorder %v1144, 0.7853982
    %vm1146 = vcmp.lt.s32.totalorder %v516, 0
    %v1147 = vand.u32 %v516, 2139095040
    %v1148 = vshrl.u32 %v1147, 23
    %v1149 = vsub.s32 %v1148, 127
    %v1150 = vand.u32 2147483647, %v516
    %v1151 = vand.u32 %v1150, 8388607
    %v1152 = vor.u32 %v1151, 8388608
    %v1153 = vsub.s32 0, %v1152
    %v1154 = vadd.s32 %v1149, 1
    %vm1155 = vcmp.gt.s32.totalorder %v1154, 0
    %v1156 = vsel %vm1155, %v1154, 0
    %v1157 = vshrl.u32 %v1156, 5
    %v1158 = vand.u32 %v1156, 31
    %v1159 = vsub.s32 32, %v1158
    %v1160 = vshrl.u32 683565275, %v1159
    %v1161 = vshll.u32 683565275, %v1158
    %v1162 = vshrl.u32 2475754826, %v1159
    %v1163 = vor.u32 %v1161, %v1162
    %v1164 = vshll.u32 2475754826, %v1158
    %v1165 = vshrl.u32 2131351028, %v1159
    %v1166 = vor.u32 %v1164, %v1165
    %v1167 = vshll.u32 2131351028, %v1158
    %v1168 = vshrl.u32 2102212464, %v1159
    %v1169 = vor.u32 %v1167, %v1168
    %v1170 = vshll.u32 2102212464, %v1158
    %v1171 = vshrl.u32 920167782, %v1159
    %v1172 = vor.u32 %v1170, %v1171
    %v1173 = vshll.u32 920167782, %v1158
    %v1174 = vshrl.u32 1326507024, %v1159
    %v1175 = vor.u32 %v1173, %v1174
    %vm1176 = vcmp.lt.s32.totalorder %v1157, 1
    %vm1177 = vcmp.lt.s32.totalorder %v1157, 2
    %vm1178 = vcmp.lt.s32.totalorder %v1157, 3
    %vm1179 = vcmp.lt.s32.totalorder %v1157, 4
    %v1180 = vsel %vm1176, %v1160, %v1163
    %v1181 = vsel %vm1179, %v1169, 2102212464
    %v1182 = vsel %vm1178, %v1166, %v1181
    %v1183 = vsel %vm1177, %v1180, %v1182
    %v1184 = vsel %vm1176, %v1163, %v1166
    %v1185 = vsel %vm1179, %v1172, 920167782
    %v1186 = vsel %vm1178, %v1169, %v1185
    %v1187 = vsel %vm1177, %v1184, %v1186
    %v1188 = vsel %vm1176, %v1166, %v1169
    %v1189 = vsel %vm1179, %v1175, 1326507024
    %v1190 = vsel %vm1178, %v1172, %v1189
    %v1191 = vsel %vm1177, %v1188, %v1190
    %v1192 = vshll.u32 %v1152, 8
    %v1193 = vand.u32 %v1192, 65535
    %v1194 = vshrl.u32 %v1192, 16
    %v1195 = vand.u32 %v1191, 65535
    %v1196 = vshrl.u32 %v1191, 16
    %v1197 = vmul.u32 %v1193, %v1195
    %v1198 = vmul.u32 %v1193, %v1196
    %v1199 = vmul.u32 %v1194, %v1195
    %v1200 = vmul.u32 %v1194, %v1196
    %v1201 = vshll.u32 %v1198, 16
    %v1202 = vshrl.u32 %v1198, 16
    %v1203 = vshll.u32 %v1199, 16
    %v1204 = vshrl.u32 %v1199, 16
    %vm1205 = vc.u32 %v1197, %v1201
    %v1206 = vsel %vm1205, 1, 0
    %v1207 = vadd.s32 %v1197, %v1201
    %v1208 = vadd.s32 %v1200, %v1206
    %vm1209 = vc.u32 %v1207, %v1203
    %v1210 = vsel %vm1209, 1, 0
    %v1211 = vadd.s32 %v1207, %v1203
    %v1212 = vadd.s32 %v1208, %v1210
    %v1213 = vadd.s32 %v1212, %v1202
    %v1214 = vadd.s32 %v1213, %v1204
    %v1215 = vand.u32 %v1192, 65535
    %v1216 = vshrl.u32 %v1192, 16
    %v1217 = vand.u32 %v1187, 65535
    %v1218 = vshrl.u32 %v1187, 16
    %v1219 = vmul.u32 %v1215, %v1217
    %v1220 = vmul.u32 %v1215, %v1218
    %v1221 = vmul.u32 %v1216, %v1217
    %v1222 = vmul.u32 %v1216, %v1218
    %v1223 = vshll.u32 %v1220, 16
    %v1224 = vshrl.u32 %v1220, 16
    %v1225 = vshll.u32 %v1221, 16
    %v1226 = vshrl.u32 %v1221, 16
    %vm1227 = vc.u32 %v1219, %v1223
    %v1228 = vsel %vm1227, 1, 0
    %v1229 = vadd.s32 %v1219, %v1223
    %v1230 = vadd.s32 %v1222, %v1228
    %vm1231 = vc.u32 %v1229, %v1225
    %v1232 = vsel %vm1231, 1, 0
    %v1233 = vadd.s32 %v1229, %v1225
    %v1234 = vadd.s32 %v1230, %v1232
    %v1235 = vadd.s32 %v1234, %v1224
    %v1236 = vadd.s32 %v1235, %v1226
    %v1237 = vmul.u32 %v1192, %v1183
    %v1238 = vadd.s32 %v1214, %v1233
    %vm1239 = vc.u32 %v1214, %v1233
    %v1240 = vadd.s32 %v1236, 1
    %v1241 = vsel %vm1239, %v1240, %v1236
    %v1242 = vadd.s32 %v1237, %v1241
    %v1243 = vadd.s32 %v1242, 536870912
    %v1244 = vshrl.u32 %v1243, 30
    %v1245 = vshll.u32 %v1244, 30
    %v1246 = vsub.s32 %v1242, %v1245
    %vm1247 = vcmp.lt.s32.totalorder %v1246, 0
    %v1248 = vsub.s32 0, %v1246
    %v1249 = vsel %vm1247, %v1248, %v1246
    %v1250 = vclz %v1249
    %v1251 = vsub.s32 %v1250, 2
    %vm1252 = vcmp.gt.s32.totalorder 0, %v1251
    %v1253 = vsel %vm1252, 0, %v1251
    %v1254 = vsub.s32 32, %v1253
    %v1255 = vshll.u32 %v1246, %v1253
    %v1256 = vshrl.u32 %v1238, %v1254
    %v1257 = vor.u32 %v1255, %v1256
    %v1258 = vsub.s32 4294967266, %v1253
    %v1259 = vadd.s32 %v1258, 127
    %v1260 = vshll.u32 %v1259, 23
    %v1261 = vor.u32 4788187, %v1260
    %v1262 = vand.u32 2147483647, %v1261
    %v1264 = vcvt.s32.f32 %v1257
    %v1265 = vmul.f32 %v1264, %v1262
    %v1266 = vxor.u32 %v1265, 2147483648
    %v1267 = vsel %vm1146, %v1266, %v1265
    %v1268 = vsub.s32 4, %v1244
    %v1269 = vsel %vm1146, %v1268, %v1244
    %v1270 = vsel %vm1145, %v516, %v1267
    %v1271 = vsel %vm1145, 0, %v1269
    %v1272 = vmul.f32 %v1270, %v1270
    %v1273 = vmul.f32 %v1272, -0.001358992
    %v1274 = vadd.f32 %v1273, 0.041655596
    %v1275 = vmul.f32 %v1272, %v1274
    %v1276 = vadd.f32 %v1275, -0.4999988
    %v1277 = vmul.f32 %v1272, %v1276
    %v1278 = vadd.f32 1.0, %v1277
    %v1279 = vmul.f32 %v1270, %v1270
    %v1280 = vmul.f32 %v1279, -0.00019511016
    %v1281 = vadd.f32 %v1280, 0.008332121
    %v1282 = vmul.f32 %v1279, %v1281
    %v1283 = vadd.f32 %v1282, -0.16666654
    %v1284 = vmul.f32 %v1279, %v1283
    %v1285 = vadd.f32 %v1284, 1.0
    %v1286 = vmul.f32 %v1285, %v1270
    %vm1287 = vweird.f32 %v516
    %v1288 = vand.u32 %v1271, 3
    %vm1289 = vcmp.lt.s32.totalorder %v1288, 2
    %vm1290 = vcmp.eq.s32.totalorder %v1288, 0
    %v1291 = vxor.u32 %v1286, 2147483648
    %v1292 = vsel %vm1290, %v1278, %v1291
    %vm1293 = vcmp.eq.s32.totalorder %v1288, 2
    %v1294 = vxor.u32 %v1278, 2147483648
    %v1295 = vsel %vm1293, %v1294, %v1286
    %v1296 = vsel %vm1289, %v1292, %v1295
    %v1297 = vsel %vm1287, nan, %v1296
    %v1298 = vand.u32 2147483647, %v517
    %vm1299 = vcmp.le.f32.partialorder %v1298, 0.7853982
    %vm1300 = vcmp.lt.s32.totalorder %v517, 0
    %v1301 = vand.u32 %v517, 2139095040
    %v1302 = vshrl.u32 %v1301, 23
    %v1303 = vsub.s32 %v1302, 127
    %v1304 = vand.u32 2147483647, %v517
    %v1305 = vand.u32 %v1304, 8388607
    %v1306 = vor.u32 %v1305, 8388608
    %v1307 = vsub.s32 0, %v1306
    %v1308 = vadd.s32 %v1303, 1
    %vm1309 = vcmp.gt.s32.totalorder %v1308, 0
    %v1310 = vsel %vm1309, %v1308, 0
    %v1311 = vshrl.u32 %v1310, 5
    %v1312 = vand.u32 %v1310, 31
    %v1313 = vsub.s32 32, %v1312
    %v1314 = vshrl.u32 683565275, %v1313
    %v1315 = vshll.u32 683565275, %v1312
    %v1316 = vshrl.u32 2475754826, %v1313
    %v1317 = vor.u32 %v1315, %v1316
    %v1318 = vshll.u32 2475754826, %v1312
    %v1319 = vshrl.u32 2131351028, %v1313
    %v1320 = vor.u32 %v1318, %v1319
    %v1321 = vshll.u32 2131351028, %v1312
    %v1322 = vshrl.u32 2102212464, %v1313
    %v1323 = vor.u32 %v1321, %v1322
    %v1324 = vshll.u32 2102212464, %v1312
    %v1325 = vshrl.u32 920167782, %v1313
    %v1326 = vor.u32 %v1324, %v1325
    %v1327 = vshll.u32 920167782, %v1312
    %v1328 = vshrl.u32 1326507024, %v1313
    %v1329 = vor.u32 %v1327, %v1328
    %vm1330 = vcmp.lt.s32.totalorder %v1311, 1
    %vm1331 = vcmp.lt.s32.totalorder %v1311, 2
    %vm1332 = vcmp.lt.s32.totalorder %v1311, 3
    %vm1333 = vcmp.lt.s32.totalorder %v1311, 4
    %v1334 = vsel %vm1330, %v1314, %v1317
    %v1335 = vsel %vm1333, %v1323, 2102212464
    %v1336 = vsel %vm1332, %v1320, %v1335
    %v1337 = vsel %vm1331, %v1334, %v1336
    %v1338 = vsel %vm1330, %v1317, %v1320
    %v1339 = vsel %vm1333, %v1326, 920167782
    %v1340 = vsel %vm1332, %v1323, %v1339
    %v1341 = vsel %vm1331, %v1338, %v1340
    %v1342 = vsel %vm1330, %v1320, %v1323
    %v1343 = vsel %vm1333, %v1329, 1326507024
    %v1344 = vsel %vm1332, %v1326, %v1343
    %v1345 = vsel %vm1331, %v1342, %v1344
    %v1346 = vshll.u32 %v1306, 8
    %v1347 = vand.u32 %v1346, 65535
    %v1348 = vshrl.u32 %v1346, 16
    %v1349 = vand.u32 %v1345, 65535
    %v1350 = vshrl.u32 %v1345, 16
    %v1351 = vmul.u32 %v1347, %v1349
    %v1352 = vmul.u32 %v1347, %v1350
    %v1353 = vmul.u32 %v1348, %v1349
    %v1354 = vmul.u32 %v1348, %v1350
    %v1355 = vshll.u32 %v1352, 16
    %v1356 = vshrl.u32 %v1352, 16
    %v1357 = vshll.u32 %v1353, 16
    %v1358 = vshrl.u32 %v1353, 16
    %vm1359 = vc.u32 %v1351, %v1355
    %v1360 = vsel %vm1359, 1, 0
    %v1361 = vadd.s32 %v1351, %v1355
    %v1362 = vadd.s32 %v1354, %v1360
    %vm1363 = vc.u32 %v1361, %v1357
    %v1364 = vsel %vm1363, 1, 0
    %v1365 = vadd.s32 %v1361, %v1357
    %v1366 = vadd.s32 %v1362, %v1364
    %v1367 = vadd.s32 %v1366, %v1356
    %v1368 = vadd.s32 %v1367, %v1358
    %v1369 = vand.u32 %v1346, 65535
    %v1370 = vshrl.u32 %v1346, 16
    %v1371 = vand.u32 %v1341, 65535
    %v1372 = vshrl.u32 %v1341, 16
    %v1373 = vmul.u32 %v1369, %v1371
    %v1374 = vmul.u32 %v1369, %v1372
    %v1375 = vmul.u32 %v1370, %v1371
    %v1376 = vmul.u32 %v1370, %v1372
    %v1377 = vshll.u32 %v1374, 16
    %v1378 = vshrl.u32 %v1374, 16
    %v1379 = vshll.u32 %v1375, 16
    %v1380 = vshrl.u32 %v1375, 16
    %vm1381 = vc.u32 %v1373, %v1377
    %v1382 = vsel %vm1381, 1, 0
    %v1383 = vadd.s32 %v1373, %v1377
    %v1384 = vadd.s32 %v1376, %v1382
    %vm1385 = vc.u32 %v1383, %v1379
    %v1386 = vsel %vm1385, 1, 0
    %v1387 = vadd.s32 %v1383, %v1379
    %v1388 = vadd.s32 %v1384, %v1386
    %v1389 = vadd.s32 %v1388, %v1378
    %v1390 = vadd.s32 %v1389, %v1380
    %v1391 = vmul.u32 %v1346, %v1337
    %v1392 = vadd.s32 %v1368, %v1387
    %vm1393 = vc.u32 %v1368, %v1387
    %v1394 = vadd.s32 %v1390, 1
    %v1395 = vsel %vm1393, %v1394, %v1390
    %v1396 = vadd.s32 %v1391, %v1395
    %v1397 = vadd.s32 %v1396, 536870912
    %v1398 = vshrl.u32 %v1397, 30
    %v1399 = vshll.u32 %v1398, 30
    %v1400 = vsub.s32 %v1396, %v1399
    %vm1401 = vcmp.lt.s32.totalorder %v1400, 0
    %v1402 = vsub.s32 0, %v1400
    %v1403 = vsel %vm1401, %v1402, %v1400
    %v1404 = vclz %v1403
    %v1405 = vsub.s32 %v1404, 2
    %vm1406 = vcmp.gt.s32.totalorder 0, %v1405
    %v1407 = vsel %vm1406, 0, %v1405
    %v1408 = vsub.s32 32, %v1407
    %v1409 = vshll.u32 %v1400, %v1407
    %v1410 = vshrl.u32 %v1392, %v1408
    %v1411 = vor.u32 %v1409, %v1410
    %v1412 = vsub.s32 4294967266, %v1407
    %v1413 = vadd.s32 %v1412, 127
    %v1414 = vshll.u32 %v1413, 23
    %v1415 = vor.u32 4788187, %v1414
    %v1416 = vand.u32 2147483647, %v1415
    %v1418 = vcvt.s32.f32 %v1411
    %v1419 = vmul.f32 %v1418, %v1416
    %v1420 = vxor.u32 %v1419, 2147483648
    %v1421 = vsel %vm1300, %v1420, %v1419
    %v1422 = vsub.s32 4, %v1398
    %v1423 = vsel %vm1300, %v1422, %v1398
    %v1424 = vsel %vm1299, %v517, %v1421
    %v1425 = vsel %vm1299, 0, %v1423
    %v1426 = vmul.f32 %v1424, %v1424
    %v1427 = vmul.f32 %v1426, -0.001358992
    %v1428 = vadd.f32 %v1427, 0.041655596
    %v1429 = vmul.f32 %v1426, %v1428
    %v1430 = vadd.f32 %v1429, -0.4999988
    %v1431 = vmul.f32 %v1426, %v1430
    %v1432 = vadd.f32 1.0, %v1431
    %v1433 = vmul.f32 %v1424, %v1424
    %v1434 = vmul.f32 %v1433, -0.00019511016
    %v1435 = vadd.f32 %v1434, 0.008332121
    %v1436 = vmul.f32 %v1433, %v1435
    %v1437 = vadd.f32 %v1436, -0.16666654
    %v1438 = vmul.f32 %v1433, %v1437
    %v1439 = vadd.f32 %v1438, 1.0
    %v1440 = vmul.f32 %v1439, %v1424
    %vm1441 = vweird.f32 %v517
    %v1442 = vand.u32 %v1425, 3
    %vm1443 = vcmp.lt.s32.totalorder %v1442, 2
    %vm1444 = vcmp.eq.s32.totalorder %v1442, 0
    %v1445 = vxor.u32 %v1440, 2147483648
    %v1446 = vsel %vm1444, %v1432, %v1445
    %vm1447 = vcmp.eq.s32.totalorder %v1442, 2
    %v1448 = vxor.u32 %v1432, 2147483648
    %v1449 = vsel %vm1447, %v1448, %v1440
    %v1450 = vsel %vm1443, %v1446, %v1449
    %v1451 = vsel %vm1441, nan, %v1450
    %v1452 = vand.u32 2147483647, %v518
    %vm1453 = vcmp.le.f32.partialorder %v1452, 0.7853982
    %vm1454 = vcmp.lt.s32.totalorder %v518, 0
    %v1455 = vand.u32 %v518, 2139095040
    %v1456 = vshrl.u32 %v1455, 23
    %v1457 = vsub.s32 %v1456, 127
    %v1458 = vand.u32 2147483647, %v518
    %v1459 = vand.u32 %v1458, 8388607
    %v1460 = vor.u32 %v1459, 8388608
    %v1461 = vsub.s32 0, %v1460
    %v1462 = vadd.s32 %v1457, 1
    %vm1463 = vcmp.gt.s32.totalorder %v1462, 0
    %v1464 = vsel %vm1463, %v1462, 0
    %v1465 = vshrl.u32 %v1464, 5
    %v1466 = vand.u32 %v1464, 31
    %v1467 = vsub.s32 32, %v1466
    %v1468 = vshrl.u32 683565275, %v1467
    %v1469 = vshll.u32 683565275, %v1466
    %v1470 = vshrl.u32 2475754826, %v1467
    %v1471 = vor.u32 %v1469, %v1470
    %v1472 = vshll.u32 2475754826, %v1466
    %v1473 = vshrl.u32 2131351028, %v1467
    %v1474 = vor.u32 %v1472, %v1473
    %v1475 = vshll.u32 2131351028, %v1466
    %v1476 = vshrl.u32 2102212464, %v1467
    %v1477 = vor.u32 %v1475, %v1476
    %v1478 = vshll.u32 2102212464, %v1466
    %v1479 = vshrl.u32 920167782, %v1467
    %v1480 = vor.u32 %v1478, %v1479
    %v1481 = vshll.u32 920167782, %v1466
    %v1482 = vshrl.u32 1326507024, %v1467
    %v1483 = vor.u32 %v1481, %v1482
    %vm1484 = vcmp.lt.s32.totalorder %v1465, 1
    %vm1485 = vcmp.lt.s32.totalorder %v1465, 2
    %vm1486 = vcmp.lt.s32.totalorder %v1465, 3
    %vm1487 = vcmp.lt.s32.totalorder %v1465, 4
    %v1488 = vsel %vm1484, %v1468, %v1471
    %v1489 = vsel %vm1487, %v1477, 2102212464
    %v1490 = vsel %vm1486, %v1474, %v1489
    %v1491 = vsel %vm1485, %v1488, %v1490
    %v1492 = vsel %vm1484, %v1471, %v1474
    %v1493 = vsel %vm1487, %v1480, 920167782
    %v1494 = vsel %vm1486, %v1477, %v1493
    %v1495 = vsel %vm1485, %v1492, %v1494
    %v1496 = vsel %vm1484, %v1474, %v1477
    %v1497 = vsel %vm1487, %v1483, 1326507024
    %v1498 = vsel %vm1486, %v1480, %v1497
    %v1499 = vsel %vm1485, %v1496, %v1498
    %v1500 = vshll.u32 %v1460, 8
    %v1501 = vand.u32 %v1500, 65535
    %v1502 = vshrl.u32 %v1500, 16
    %v1503 = vand.u32 %v1499, 65535
    %v1504 = vshrl.u32 %v1499, 16
    %v1505 = vmul.u32 %v1501, %v1503
    %v1506 = vmul.u32 %v1501, %v1504
    %v1507 = vmul.u32 %v1502, %v1503
    %v1508 = vmul.u32 %v1502, %v1504
    %v1509 = vshll.u32 %v1506, 16
    %v1510 = vshrl.u32 %v1506, 16
    %v1511 = vshll.u32 %v1507, 16
    %v1512 = vshrl.u32 %v1507, 16
    %vm1513 = vc.u32 %v1505, %v1509
    %v1514 = vsel %vm1513, 1, 0
    %v1515 = vadd.s32 %v1505, %v1509
    %v1516 = vadd.s32 %v1508, %v1514
    %vm1517 = vc.u32 %v1515, %v1511
    %v1518 = vsel %vm1517, 1, 0
    %v1519 = vadd.s32 %v1515, %v1511
    %v1520 = vadd.s32 %v1516, %v1518
    %v1521 = vadd.s32 %v1520, %v1510
    %v1522 = vadd.s32 %v1521, %v1512
    %v1523 = vand.u32 %v1500, 65535
    %v1524 = vshrl.u32 %v1500, 16
    %v1525 = vand.u32 %v1495, 65535
    %v1526 = vshrl.u32 %v1495, 16
    %v1527 = vmul.u32 %v1523, %v1525
    %v1528 = vmul.u32 %v1523, %v1526
    %v1529 = vmul.u32 %v1524, %v1525
    %v1530 = vmul.u32 %v1524, %v1526
    %v1531 = vshll.u32 %v1528, 16
    %v1532 = vshrl.u32 %v1528, 16
    %v1533 = vshll.u32 %v1529, 16
    %v1534 = vshrl.u32 %v1529, 16
    %vm1535 = vc.u32 %v1527, %v1531
    %v1536 = vsel %vm1535, 1, 0
    %v1537 = vadd.s32 %v1527, %v1531
    %v1538 = vadd.s32 %v1530, %v1536
    %vm1539 = vc.u32 %v1537, %v1533
    %v1540 = vsel %vm1539, 1, 0
    %v1541 = vadd.s32 %v1537, %v1533
    %v1542 = vadd.s32 %v1538, %v1540
    %v1543 = vadd.s32 %v1542, %v1532
    %v1544 = vadd.s32 %v1543, %v1534
    %v1545 = vmul.u32 %v1500, %v1491
    %v1546 = vadd.s32 %v1522, %v1541
    %vm1547 = vc.u32 %v1522, %v1541
    %v1548 = vadd.s32 %v1544, 1
    %v1549 = vsel %vm1547, %v1548, %v1544
    %v1550 = vadd.s32 %v1545, %v1549
    %v1551 = vadd.s32 %v1550, 536870912
    %v1552 = vshrl.u32 %v1551, 30
    %v1553 = vshll.u32 %v1552, 30
    %v1554 = vsub.s32 %v1550, %v1553
    %vm1555 = vcmp.lt.s32.totalorder %v1554, 0
    %v1556 = vsub.s32 0, %v1554
    %v1557 = vsel %vm1555, %v1556, %v1554
    %v1558 = vclz %v1557
    %v1559 = vsub.s32 %v1558, 2
    %vm1560 = vcmp.gt.s32.totalorder 0, %v1559
    %v1561 = vsel %vm1560, 0, %v1559
    %v1562 = vsub.s32 32, %v1561
    %v1563 = vshll.u32 %v1554, %v1561
    %v1564 = vshrl.u32 %v1546, %v1562
    %v1565 = vor.u32 %v1563, %v1564
    %v1566 = vsub.s32 4294967266, %v1561
    %v1567 = vadd.s32 %v1566, 127
    %v1568 = vshll.u32 %v1567, 23
    %v1569 = vor.u32 4788187, %v1568
    %v1570 = vand.u32 2147483647, %v1569
    %v1572 = vcvt.s32.f32 %v1565
    %v1573 = vmul.f32 %v1572, %v1570
    %v1574 = vxor.u32 %v1573, 2147483648
    %v1575 = vsel %vm1454, %v1574, %v1573
    %v1576 = vsub.s32 4, %v1552
    %v1577 = vsel %vm1454, %v1576, %v1552
    %v1578 = vsel %vm1453, %v518, %v1575
    %v1579 = vsel %vm1453, 0, %v1577
    %v1580 = vmul.f32 %v1578, %v1578
    %v1581 = vmul.f32 %v1580, -0.001358992
    %v1582 = vadd.f32 %v1581, 0.041655596
    %v1583 = vmul.f32 %v1580, %v1582
    %v1584 = vadd.f32 %v1583, -0.4999988
    %v1585 = vmul.f32 %v1580, %v1584
    %v1586 = vadd.f32 1.0, %v1585
    %v1587 = vmul.f32 %v1578, %v1578
    %v1588 = vmul.f32 %v1587, -0.00019511016
    %v1589 = vadd.f32 %v1588, 0.008332121
    %v1590 = vmul.f32 %v1587, %v1589
    %v1591 = vadd.f32 %v1590, -0.16666654
    %v1592 = vmul.f32 %v1587, %v1591
    %v1593 = vadd.f32 %v1592, 1.0
    %v1594 = vmul.f32 %v1593, %v1578
    %vm1595 = vweird.f32 %v518
    %v1596 = vand.u32 %v1579, 3
    %vm1597 = vcmp.lt.s32.totalorder %v1596, 2
    %vm1598 = vcmp.eq.s32.totalorder %v1596, 0
    %v1599 = vxor.u32 %v1594, 2147483648
    %v1600 = vsel %vm1598, %v1586, %v1599
    %vm1601 = vcmp.eq.s32.totalorder %v1596, 2
    %v1602 = vxor.u32 %v1586, 2147483648
    %v1603 = vsel %vm1601, %v1602, %v1594
    %v1604 = vsel %vm1597, %v1600, %v1603
    %v1605 = vsel %vm1595, nan, %v1604
    %v1606 = vand.u32 2147483647, %v519
    %vm1607 = vcmp.le.f32.partialorder %v1606, 0.7853982
    %vm1608 = vcmp.lt.s32.totalorder %v519, 0
    %v1609 = vand.u32 %v519, 2139095040
    %v1610 = vshrl.u32 %v1609, 23
    %v1611 = vsub.s32 %v1610, 127
    %v1612 = vand.u32 2147483647, %v519
    %v1613 = vand.u32 %v1612, 8388607
    %v1614 = vor.u32 %v1613, 8388608
    %v1615 = vsub.s32 0, %v1614
    %v1616 = vadd.s32 %v1611, 1
    %vm1617 = vcmp.gt.s32.totalorder %v1616, 0
    %v1618 = vsel %vm1617, %v1616, 0
    %v1619 = vshrl.u32 %v1618, 5
    %v1620 = vand.u32 %v1618, 31
    %v1621 = vsub.s32 32, %v1620
    %v1622 = vshrl.u32 683565275, %v1621
    %v1623 = vshll.u32 683565275, %v1620
    %v1624 = vshrl.u32 2475754826, %v1621
    %v1625 = vor.u32 %v1623, %v1624
    %v1626 = vshll.u32 2475754826, %v1620
    %v1627 = vshrl.u32 2131351028, %v1621
    %v1628 = vor.u32 %v1626, %v1627
    %v1629 = vshll.u32 2131351028, %v1620
    %v1630 = vshrl.u32 2102212464, %v1621
    %v1631 = vor.u32 %v1629, %v1630
    %v1632 = vshll.u32 2102212464, %v1620
    %v1633 = vshrl.u32 920167782, %v1621
    %v1634 = vor.u32 %v1632, %v1633
    %v1635 = vshll.u32 920167782, %v1620
    %v1636 = vshrl.u32 1326507024, %v1621
    %v1637 = vor.u32 %v1635, %v1636
    %vm1638 = vcmp.lt.s32.totalorder %v1619, 1
    %vm1639 = vcmp.lt.s32.totalorder %v1619, 2
    %vm1640 = vcmp.lt.s32.totalorder %v1619, 3
    %vm1641 = vcmp.lt.s32.totalorder %v1619, 4
    %v1642 = vsel %vm1638, %v1622, %v1625
    %v1643 = vsel %vm1641, %v1631, 2102212464
    %v1644 = vsel %vm1640, %v1628, %v1643
    %v1645 = vsel %vm1639, %v1642, %v1644
    %v1646 = vsel %vm1638, %v1625, %v1628
    %v1647 = vsel %vm1641, %v1634, 920167782
    %v1648 = vsel %vm1640, %v1631, %v1647
    %v1649 = vsel %vm1639, %v1646, %v1648
    %v1650 = vsel %vm1638, %v1628, %v1631
    %v1651 = vsel %vm1641, %v1637, 1326507024
    %v1652 = vsel %vm1640, %v1634, %v1651
    %v1653 = vsel %vm1639, %v1650, %v1652
    %v1654 = vshll.u32 %v1614, 8
    %v1655 = vand.u32 %v1654, 65535
    %v1656 = vshrl.u32 %v1654, 16
    %v1657 = vand.u32 %v1653, 65535
    %v1658 = vshrl.u32 %v1653, 16
    %v1659 = vmul.u32 %v1655, %v1657
    %v1660 = vmul.u32 %v1655, %v1658
    %v1661 = vmul.u32 %v1656, %v1657
    %v1662 = vmul.u32 %v1656, %v1658
    %v1663 = vshll.u32 %v1660, 16
    %v1664 = vshrl.u32 %v1660, 16
    %v1665 = vshll.u32 %v1661, 16
    %v1666 = vshrl.u32 %v1661, 16
    %vm1667 = vc.u32 %v1659, %v1663
    %v1668 = vsel %vm1667, 1, 0
    %v1669 = vadd.s32 %v1659, %v1663
    %v1670 = vadd.s32 %v1662, %v1668
    %vm1671 = vc.u32 %v1669, %v1665
    %v1672 = vsel %vm1671, 1, 0
    %v1673 = vadd.s32 %v1669, %v1665
    %v1674 = vadd.s32 %v1670, %v1672
    %v1675 = vadd.s32 %v1674, %v1664
    %v1676 = vadd.s32 %v1675, %v1666
    %v1677 = vand.u32 %v1654, 65535
    %v1678 = vshrl.u32 %v1654, 16
    %v1679 = vand.u32 %v1649, 65535
    %v1680 = vshrl.u32 %v1649, 16
    %v1681 = vmul.u32 %v1677, %v1679
    %v1682 = vmul.u32 %v1677, %v1680
    %v1683 = vmul.u32 %v1678, %v1679
    %v1684 = vmul.u32 %v1678, %v1680
    %v1685 = vshll.u32 %v1682, 16
    %v1686 = vshrl.u32 %v1682, 16
    %v1687 = vshll.u32 %v1683, 16
    %v1688 = vshrl.u32 %v1683, 16
    %vm1689 = vc.u32 %v1681, %v1685
    %v1690 = vsel %vm1689, 1, 0
    %v1691 = vadd.s32 %v1681, %v1685
    %v1692 = vadd.s32 %v1684, %v1690
    %vm1693 = vc.u32 %v1691, %v1687
    %v1694 = vsel %vm1693, 1, 0
    %v1695 = vadd.s32 %v1691, %v1687
    %v1696 = vadd.s32 %v1692, %v1694
    %v1697 = vadd.s32 %v1696, %v1686
    %v1698 = vadd.s32 %v1697, %v1688
    %v1699 = vmul.u32 %v1654, %v1645
    %v1700 = vadd.s32 %v1676, %v1695
    %vm1701 = vc.u32 %v1676, %v1695
    %v1702 = vadd.s32 %v1698, 1
    %v1703 = vsel %vm1701, %v1702, %v1698
    %v1704 = vadd.s32 %v1699, %v1703
    %v1705 = vadd.s32 %v1704, 536870912
    %v1706 = vshrl.u32 %v1705, 30
    %v1707 = vshll.u32 %v1706, 30
    %v1708 = vsub.s32 %v1704, %v1707
    %vm1709 = vcmp.lt.s32.totalorder %v1708, 0
    %v1710 = vsub.s32 0, %v1708
    %v1711 = vsel %vm1709, %v1710, %v1708
    %v1712 = vclz %v1711
    %v1713 = vsub.s32 %v1712, 2
    %vm1714 = vcmp.gt.s32.totalorder 0, %v1713
    %v1715 = vsel %vm1714, 0, %v1713
    %v1716 = vsub.s32 32, %v1715
    %v1717 = vshll.u32 %v1708, %v1715
    %v1718 = vshrl.u32 %v1700, %v1716
    %v1719 = vor.u32 %v1717, %v1718
    %v1720 = vsub.s32 4294967266, %v1715
    %v1721 = vadd.s32 %v1720, 127
    %v1722 = vshll.u32 %v1721, 23
    %v1723 = vor.u32 4788187, %v1722
    %v1724 = vand.u32 2147483647, %v1723
    %v1726 = vcvt.s32.f32 %v1719
    %v1727 = vmul.f32 %v1726, %v1724
    %v1728 = vxor.u32 %v1727, 2147483648
    %v1729 = vsel %vm1608, %v1728, %v1727
    %v1730 = vsub.s32 4, %v1706
    %v1731 = vsel %vm1608, %v1730, %v1706
    %v1732 = vsel %vm1607, %v519, %v1729
    %v1733 = vsel %vm1607, 0, %v1731
    %v1734 = vmul.f32 %v1732, %v1732
    %v1735 = vmul.f32 %v1734, -0.001358992
    %v1736 = vadd.f32 %v1735, 0.041655596
    %v1737 = vmul.f32 %v1734, %v1736
    %v1738 = vadd.f32 %v1737, -0.4999988
    %v1739 = vmul.f32 %v1734, %v1738
    %v1740 = vadd.f32 1.0, %v1739
    %v1741 = vmul.f32 %v1732, %v1732
    %v1742 = vmul.f32 %v1741, -0.00019511016
    %v1743 = vadd.f32 %v1742, 0.008332121
    %v1744 = vmul.f32 %v1741, %v1743
    %v1745 = vadd.f32 %v1744, -0.16666654
    %v1746 = vmul.f32 %v1741, %v1745
    %v1747 = vadd.f32 %v1746, 1.0
    %v1748 = vmul.f32 %v1747, %v1732
    %vm1749 = vweird.f32 %v519
    %v1750 = vand.u32 %v1733, 3
    %vm1751 = vcmp.lt.s32.totalorder %v1750, 2
    %vm1752 = vcmp.eq.s32.totalorder %v1750, 0
    %v1753 = vxor.u32 %v1748, 2147483648
    %v1754 = vsel %vm1752, %v1740, %v1753
    %vm1755 = vcmp.eq.s32.totalorder %v1750, 2
    %v1756 = vxor.u32 %v1740, 2147483648
    %v1757 = vsel %vm1755, %v1756, %v1748
    %v1758 = vsel %vm1751, %v1754, %v1757
    %v1759 = vsel %vm1749, nan, %v1758
    %v1760 = vand.u32 2147483647, %v520
    %vm1761 = vcmp.le.f32.partialorder %v1760, 0.7853982
    %vm1762 = vcmp.lt.s32.totalorder %v520, 0
    %v1763 = vand.u32 %v520, 2139095040
    %v1764 = vshrl.u32 %v1763, 23
    %v1765 = vsub.s32 %v1764, 127
    %v1766 = vand.u32 2147483647, %v520
    %v1767 = vand.u32 %v1766, 8388607
    %v1768 = vor.u32 %v1767, 8388608
    %v1769 = vsub.s32 0, %v1768
    %v1770 = vadd.s32 %v1765, 1
    %vm1771 = vcmp.gt.s32.totalorder %v1770, 0
    %v1772 = vsel %vm1771, %v1770, 0
    %v1773 = vshrl.u32 %v1772, 5
    %v1774 = vand.u32 %v1772, 31
    %v1775 = vsub.s32 32, %v1774
    %v1776 = vshrl.u32 683565275, %v1775
    %v1777 = vshll.u32 683565275, %v1774
    %v1778 = vshrl.u32 2475754826, %v1775
    %v1779 = vor.u32 %v1777, %v1778
    %v1780 = vshll.u32 2475754826, %v1774
    %v1781 = vshrl.u32 2131351028, %v1775
    %v1782 = vor.u32 %v1780, %v1781
    %v1783 = vshll.u32 2131351028, %v1774
    %v1784 = vshrl.u32 2102212464, %v1775
    %v1785 = vor.u32 %v1783, %v1784
    %v1786 = vshll.u32 2102212464, %v1774
    %v1787 = vshrl.u32 920167782, %v1775
    %v1788 = vor.u32 %v1786, %v1787
    %v1789 = vshll.u32 920167782, %v1774
    %v1790 = vshrl.u32 1326507024, %v1775
    %v1791 = vor.u32 %v1789, %v1790
    %vm1792 = vcmp.lt.s32.totalorder %v1773, 1
    %vm1793 = vcmp.lt.s32.totalorder %v1773, 2
    %vm1794 = vcmp.lt.s32.totalorder %v1773, 3
    %vm1795 = vcmp.lt.s32.totalorder %v1773, 4
    %v1796 = vsel %vm1792, %v1776, %v1779
    %v1797 = vsel %vm1795, %v1785, 2102212464
    %v1798 = vsel %vm1794, %v1782, %v1797
    %v1799 = vsel %vm1793, %v1796, %v1798
    %v1800 = vsel %vm1792, %v1779, %v1782
    %v1801 = vsel %vm1795, %v1788, 920167782
    %v1802 = vsel %vm1794, %v1785, %v1801
    %v1803 = vsel %vm1793, %v1800, %v1802
    %v1804 = vsel %vm1792, %v1782, %v1785
    %v1805 = vsel %vm1795, %v1791, 1326507024
    %v1806 = vsel %vm1794, %v1788, %v1805
    %v1807 = vsel %vm1793, %v1804, %v1806
    %v1808 = vshll.u32 %v1768, 8
    %v1809 = vand.u32 %v1808, 65535
    %v1810 = vshrl.u32 %v1808, 16
    %v1811 = vand.u32 %v1807, 65535
    %v1812 = vshrl.u32 %v1807, 16
    %v1813 = vmul.u32 %v1809, %v1811
    %v1814 = vmul.u32 %v1809, %v1812
    %v1815 = vmul.u32 %v1810, %v1811
    %v1816 = vmul.u32 %v1810, %v1812
    %v1817 = vshll.u32 %v1814, 16
    %v1818 = vshrl.u32 %v1814, 16
    %v1819 = vshll.u32 %v1815, 16
    %v1820 = vshrl.u32 %v1815, 16
    %vm1821 = vc.u32 %v1813, %v1817
    %v1822 = vsel %vm1821, 1, 0
    %v1823 = vadd.s32 %v1813, %v1817
    %v1824 = vadd.s32 %v1816, %v1822
    %vm1825 = vc.u32 %v1823, %v1819
    %v1826 = vsel %vm1825, 1, 0
    %v1827 = vadd.s32 %v1823, %v1819
    %v1828 = vadd.s32 %v1824, %v1826
    %v1829 = vadd.s32 %v1828, %v1818
    %v1830 = vadd.s32 %v1829, %v1820
    %v1831 = vand.u32 %v1808, 65535
    %v1832 = vshrl.u32 %v1808, 16
    %v1833 = vand.u32 %v1803, 65535
    %v1834 = vshrl.u32 %v1803, 16
    %v1835 = vmul.u32 %v1831, %v1833
    %v1836 = vmul.u32 %v1831, %v1834
    %v1837 = vmul.u32 %v1832, %v1833
    %v1838 = vmul.u32 %v1832, %v1834
    %v1839 = vshll.u32 %v1836, 16
    %v1840 = vshrl.u32 %v1836, 16
    %v1841 = vshll.u32 %v1837, 16
    %v1842 = vshrl.u32 %v1837, 16
    %vm1843 = vc.u32 %v1835, %v1839
    %v1844 = vsel %vm1843, 1, 0
    %v1845 = vadd.s32 %v1835, %v1839
    %v1846 = vadd.s32 %v1838, %v1844
    %vm1847 = vc.u32 %v1845, %v1841
    %v1848 = vsel %vm1847, 1, 0
    %v1849 = vadd.s32 %v1845, %v1841
    %v1850 = vadd.s32 %v1846, %v1848
    %v1851 = vadd.s32 %v1850, %v1840
    %v1852 = vadd.s32 %v1851, %v1842
    %v1853 = vmul.u32 %v1808, %v1799
    %v1854 = vadd.s32 %v1830, %v1849
    %vm1855 = vc.u32 %v1830, %v1849
    %v1856 = vadd.s32 %v1852, 1
    %v1857 = vsel %vm1855, %v1856, %v1852
    %v1858 = vadd.s32 %v1853, %v1857
    %v1859 = vadd.s32 %v1858, 536870912
    %v1860 = vshrl.u32 %v1859, 30
    %v1861 = vshll.u32 %v1860, 30
    %v1862 = vsub.s32 %v1858, %v1861
    %vm1863 = vcmp.lt.s32.totalorder %v1862, 0
    %v1864 = vsub.s32 0, %v1862
    %v1865 = vsel %vm1863, %v1864, %v1862
    %v1866 = vclz %v1865
    %v1867 = vsub.s32 %v1866, 2
    %vm1868 = vcmp.gt.s32.totalorder 0, %v1867
    %v1869 = vsel %vm1868, 0, %v1867
    %v1870 = vsub.s32 32, %v1869
    %v1871 = vshll.u32 %v1862, %v1869
    %v1872 = vshrl.u32 %v1854, %v1870
    %v1873 = vor.u32 %v1871, %v1872
    %v1874 = vsub.s32 4294967266, %v1869
    %v1875 = vadd.s32 %v1874, 127
    %v1876 = vshll.u32 %v1875, 23
    %v1877 = vor.u32 4788187, %v1876
    %v1878 = vand.u32 2147483647, %v1877
    %v1880 = vcvt.s32.f32 %v1873
    %v1881 = vmul.f32 %v1880, %v1878
    %v1882 = vxor.u32 %v1881, 2147483648
    %v1883 = vsel %vm1762, %v1882, %v1881
    %v1884 = vsub.s32 4, %v1860
    %v1885 = vsel %vm1762, %v1884, %v1860
    %v1886 = vsel %vm1761, %v520, %v1883
    %v1887 = vsel %vm1761, 0, %v1885
    %v1888 = vmul.f32 %v1886, %v1886
    %v1889 = vmul.f32 %v1888, -0.001358992
    %v1890 = vadd.f32 %v1889, 0.041655596
    %v1891 = vmul.f32 %v1888, %v1890
    %v1892 = vadd.f32 %v1891, -0.4999988
    %v1893 = vmul.f32 %v1888, %v1892
    %v1894 = vadd.f32 1.0, %v1893
    %v1895 = vmul.f32 %v1886, %v1886
    %v1896 = vmul.f32 %v1895, -0.00019511016
    %v1897 = vadd.f32 %v1896, 0.008332121
    %v1898 = vmul.f32 %v1895, %v1897
    %v1899 = vadd.f32 %v1898, -0.16666654
    %v1900 = vmul.f32 %v1895, %v1899
    %v1901 = vadd.f32 %v1900, 1.0
    %v1902 = vmul.f32 %v1901, %v1886
    %vm1903 = vweird.f32 %v520
    %v1904 = vand.u32 %v1887, 3
    %vm1905 = vcmp.lt.s32.totalorder %v1904, 2
    %vm1906 = vcmp.eq.s32.totalorder %v1904, 0
    %v1907 = vxor.u32 %v1902, 2147483648
    %v1908 = vsel %vm1906, %v1894, %v1907
    %vm1909 = vcmp.eq.s32.totalorder %v1904, 2
    %v1910 = vxor.u32 %v1894, 2147483648
    %v1911 = vsel %vm1909, %v1910, %v1902
    %v1912 = vsel %vm1905, %v1908, %v1911
    %v1913 = vsel %vm1903, nan, %v1912
    %v1914 = vand.u32 2147483647, %v521
    %vm1915 = vcmp.le.f32.partialorder %v1914, 0.7853982
    %vm1916 = vcmp.lt.s32.totalorder %v521, 0
    %v1917 = vand.u32 %v521, 2139095040
    %v1918 = vshrl.u32 %v1917, 23
    %v1919 = vsub.s32 %v1918, 127
    %v1920 = vand.u32 2147483647, %v521
    %v1921 = vand.u32 %v1920, 8388607
    %v1922 = vor.u32 %v1921, 8388608
    %v1923 = vsub.s32 0, %v1922
    %v1924 = vadd.s32 %v1919, 1
    %vm1925 = vcmp.gt.s32.totalorder %v1924, 0
    %v1926 = vsel %vm1925, %v1924, 0
    %v1927 = vshrl.u32 %v1926, 5
    %v1928 = vand.u32 %v1926, 31
    %v1929 = vsub.s32 32, %v1928
    %v1930 = vshrl.u32 683565275, %v1929
    %v1931 = vshll.u32 683565275, %v1928
    %v1932 = vshrl.u32 2475754826, %v1929
    %v1933 = vor.u32 %v1931, %v1932
    %v1934 = vshll.u32 2475754826, %v1928
    %v1935 = vshrl.u32 2131351028, %v1929
    %v1936 = vor.u32 %v1934, %v1935
    %v1937 = vshll.u32 2131351028, %v1928
    %v1938 = vshrl.u32 2102212464, %v1929
    %v1939 = vor.u32 %v1937, %v1938
    %v1940 = vshll.u32 2102212464, %v1928
    %v1941 = vshrl.u32 920167782, %v1929
    %v1942 = vor.u32 %v1940, %v1941
    %v1943 = vshll.u32 920167782, %v1928
    %v1944 = vshrl.u32 1326507024, %v1929
    %v1945 = vor.u32 %v1943, %v1944
    %vm1946 = vcmp.lt.s32.totalorder %v1927, 1
    %vm1947 = vcmp.lt.s32.totalorder %v1927, 2
    %vm1948 = vcmp.lt.s32.totalorder %v1927, 3
    %vm1949 = vcmp.lt.s32.totalorder %v1927, 4
    %v1950 = vsel %vm1946, %v1930, %v1933
    %v1951 = vsel %vm1949, %v1939, 2102212464
    %v1952 = vsel %vm1948, %v1936, %v1951
    %v1953 = vsel %vm1947, %v1950, %v1952
    %v1954 = vsel %vm1946, %v1933, %v1936
    %v1955 = vsel %vm1949, %v1942, 920167782
    %v1956 = vsel %vm1948, %v1939, %v1955
    %v1957 = vsel %vm1947, %v1954, %v1956
    %v1958 = vsel %vm1946, %v1936, %v1939
    %v1959 = vsel %vm1949, %v1945, 1326507024
    %v1960 = vsel %vm1948, %v1942, %v1959
    %v1961 = vsel %vm1947, %v1958, %v1960
    %v1962 = vshll.u32 %v1922, 8
    %v1963 = vand.u32 %v1962, 65535
    %v1964 = vshrl.u32 %v1962, 16
    %v1965 = vand.u32 %v1961, 65535
    %v1966 = vshrl.u32 %v1961, 16
    %v1967 = vmul.u32 %v1963, %v1965
    %v1968 = vmul.u32 %v1963, %v1966
    %v1969 = vmul.u32 %v1964, %v1965
    %v1970 = vmul.u32 %v1964, %v1966
    %v1971 = vshll.u32 %v1968, 16
    %v1972 = vshrl.u32 %v1968, 16
    %v1973 = vshll.u32 %v1969, 16
    %v1974 = vshrl.u32 %v1969, 16
    %vm1975 = vc.u32 %v1967, %v1971
    %v1976 = vsel %vm1975, 1, 0
    %v1977 = vadd.s32 %v1967, %v1971
    %v1978 = vadd.s32 %v1970, %v1976
    %vm1979 = vc.u32 %v1977, %v1973
    %v1980 = vsel %vm1979, 1, 0
    %v1981 = vadd.s32 %v1977, %v1973
    %v1982 = vadd.s32 %v1978, %v1980
    %v1983 = vadd.s32 %v1982, %v1972
    %v1984 = vadd.s32 %v1983, %v1974
    %v1985 = vand.u32 %v1962, 65535
    %v1986 = vshrl.u32 %v1962, 16
    %v1987 = vand.u32 %v1957, 65535
    %v1988 = vshrl.u32 %v1957, 16
    %v1989 = vmul.u32 %v1985, %v1987
    %v1990 = vmul.u32 %v1985, %v1988
    %v1991 = vmul.u32 %v1986, %v1987
    %v1992 = vmul.u32 %v1986, %v1988
    %v1993 = vshll.u32 %v1990, 16
    %v1994 = vshrl.u32 %v1990, 16
    %v1995 = vshll.u32 %v1991, 16
    %v1996 = vshrl.u32 %v1991, 16
    %vm1997 = vc.u32 %v1989, %v1993
    %v1998 = vsel %vm1997, 1, 0
    %v1999 = vadd.s32 %v1989, %v1993
    %v2000 = vadd.s32 %v1992, %v1998
    %vm2001 = vc.u32 %v1999, %v1995
    %v2002 = vsel %vm2001, 1, 0
    %v2003 = vadd.s32 %v1999, %v1995
    %v2004 = vadd.s32 %v2000, %v2002
    %v2005 = vadd.s32 %v2004, %v1994
    %v2006 = vadd.s32 %v2005, %v1996
    %v2007 = vmul.u32 %v1962, %v1953
    %v2008 = vadd.s32 %v1984, %v2003
    %vm2009 = vc.u32 %v1984, %v2003
    %v2010 = vadd.s32 %v2006, 1
    %v2011 = vsel %vm2009, %v2010, %v2006
    %v2012 = vadd.s32 %v2007, %v2011
    %v2013 = vadd.s32 %v2012, 536870912
    %v2014 = vshrl.u32 %v2013, 30
    %v2015 = vshll.u32 %v2014, 30
    %v2016 = vsub.s32 %v2012, %v2015
    %vm2017 = vcmp.lt.s32.totalorder %v2016, 0
    %v2018 = vsub.s32 0, %v2016
    %v2019 = vsel %vm2017, %v2018, %v2016
    %v2020 = vclz %v2019
    %v2021 = vsub.s32 %v2020, 2
    %vm2022 = vcmp.gt.s32.totalorder 0, %v2021
    %v2023 = vsel %vm2022, 0, %v2021
    %v2024 = vsub.s32 32, %v2023
    %v2025 = vshll.u32 %v2016, %v2023
    %v2026 = vshrl.u32 %v2008, %v2024
    %v2027 = vor.u32 %v2025, %v2026
    %v2028 = vsub.s32 4294967266, %v2023
    %v2029 = vadd.s32 %v2028, 127
    %v2030 = vshll.u32 %v2029, 23
    %v2031 = vor.u32 4788187, %v2030
    %v2032 = vand.u32 2147483647, %v2031
    %v2034 = vcvt.s32.f32 %v2027
    %v2035 = vmul.f32 %v2034, %v2032
    %v2036 = vxor.u32 %v2035, 2147483648
    %v2037 = vsel %vm1916, %v2036, %v2035
    %v2038 = vsub.s32 4, %v2014
    %v2039 = vsel %vm1916, %v2038, %v2014
    %v2040 = vsel %vm1915, %v521, %v2037
    %v2041 = vsel %vm1915, 0, %v2039
    %v2042 = vmul.f32 %v2040, %v2040
    %v2043 = vmul.f32 %v2042, -0.001358992
    %v2044 = vadd.f32 %v2043, 0.041655596
    %v2045 = vmul.f32 %v2042, %v2044
    %v2046 = vadd.f32 %v2045, -0.4999988
    %v2047 = vmul.f32 %v2042, %v2046
    %v2048 = vadd.f32 1.0, %v2047
    %v2049 = vmul.f32 %v2040, %v2040
    %v2050 = vmul.f32 %v2049, -0.00019511016
    %v2051 = vadd.f32 %v2050, 0.008332121
    %v2052 = vmul.f32 %v2049, %v2051
    %v2053 = vadd.f32 %v2052, -0.16666654
    %v2054 = vmul.f32 %v2049, %v2053
    %v2055 = vadd.f32 %v2054, 1.0
    %v2056 = vmul.f32 %v2055, %v2040
    %vm2057 = vweird.f32 %v521
    %v2058 = vand.u32 %v2041, 3
    %vm2059 = vcmp.lt.s32.totalorder %v2058, 2
    %vm2060 = vcmp.eq.s32.totalorder %v2058, 0
    %v2061 = vxor.u32 %v2056, 2147483648
    %v2062 = vsel %vm2060, %v2048, %v2061
    %vm2063 = vcmp.eq.s32.totalorder %v2058, 2
    %v2064 = vxor.u32 %v2048, 2147483648
    %v2065 = vsel %vm2063, %v2064, %v2056
    %v2066 = vsel %vm2059, %v2062, %v2065
    %v2067 = vsel %vm2057, nan, %v2066
    %v2068 = vand.u32 2147483647, %v522
    %vm2069 = vcmp.le.f32.partialorder %v2068, 0.7853982
    %vm2070 = vcmp.lt.s32.totalorder %v522, 0
    %v2071 = vand.u32 %v522, 2139095040
    %v2072 = vshrl.u32 %v2071, 23
    %v2073 = vsub.s32 %v2072, 127
    %v2074 = vand.u32 2147483647, %v522
    %v2075 = vand.u32 %v2074, 8388607
    %v2076 = vor.u32 %v2075, 8388608
    %v2077 = vsub.s32 0, %v2076
    %v2078 = vadd.s32 %v2073, 1
    %vm2079 = vcmp.gt.s32.totalorder %v2078, 0
    %v2080 = vsel %vm2079, %v2078, 0
    %v2081 = vshrl.u32 %v2080, 5
    %v2082 = vand.u32 %v2080, 31
    %v2083 = vsub.s32 32, %v2082
    %v2084 = vshrl.u32 683565275, %v2083
    %v2085 = vshll.u32 683565275, %v2082
    %v2086 = vshrl.u32 2475754826, %v2083
    %v2087 = vor.u32 %v2085, %v2086
    %v2088 = vshll.u32 2475754826, %v2082
    %v2089 = vshrl.u32 2131351028, %v2083
    %v2090 = vor.u32 %v2088, %v2089
    %v2091 = vshll.u32 2131351028, %v2082
    %v2092 = vshrl.u32 2102212464, %v2083
    %v2093 = vor.u32 %v2091, %v2092
    %v2094 = vshll.u32 2102212464, %v2082
    %v2095 = vshrl.u32 920167782, %v2083
    %v2096 = vor.u32 %v2094, %v2095
    %v2097 = vshll.u32 920167782, %v2082
    %v2098 = vshrl.u32 1326507024, %v2083
    %v2099 = vor.u32 %v2097, %v2098
    %vm2100 = vcmp.lt.s32.totalorder %v2081, 1
    %vm2101 = vcmp.lt.s32.totalorder %v2081, 2
    %vm2102 = vcmp.lt.s32.totalorder %v2081, 3
    %vm2103 = vcmp.lt.s32.totalorder %v2081, 4
    %v2104 = vsel %vm2100, %v2084, %v2087
    %v2105 = vsel %vm2103, %v2093, 2102212464
    %v2106 = vsel %vm2102, %v2090, %v2105
    %v2107 = vsel %vm2101, %v2104, %v2106
    %v2108 = vsel %vm2100, %v2087, %v2090
    %v2109 = vsel %vm2103, %v2096, 920167782
    %v2110 = vsel %vm2102, %v2093, %v2109
    %v2111 = vsel %vm2101, %v2108, %v2110
    %v2112 = vsel %vm2100, %v2090, %v2093
    %v2113 = vsel %vm2103, %v2099, 1326507024
    %v2114 = vsel %vm2102, %v2096, %v2113
    %v2115 = vsel %vm2101, %v2112, %v2114
    %v2116 = vshll.u32 %v2076, 8
    %v2117 = vand.u32 %v2116, 65535
    %v2118 = vshrl.u32 %v2116, 16
    %v2119 = vand.u32 %v2115, 65535
    %v2120 = vshrl.u32 %v2115, 16
    %v2121 = vmul.u32 %v2117, %v2119
    %v2122 = vmul.u32 %v2117, %v2120
    %v2123 = vmul.u32 %v2118, %v2119
    %v2124 = vmul.u32 %v2118, %v2120
    %v2125 = vshll.u32 %v2122, 16
    %v2126 = vshrl.u32 %v2122, 16
    %v2127 = vshll.u32 %v2123, 16
    %v2128 = vshrl.u32 %v2123, 16
    %vm2129 = vc.u32 %v2121, %v2125
    %v2130 = vsel %vm2129, 1, 0
    %v2131 = vadd.s32 %v2121, %v2125
    %v2132 = vadd.s32 %v2124, %v2130
    %vm2133 = vc.u32 %v2131, %v2127
    %v2134 = vsel %vm2133, 1, 0
    %v2135 = vadd.s32 %v2131, %v2127
    %v2136 = vadd.s32 %v2132, %v2134
    %v2137 = vadd.s32 %v2136, %v2126
    %v2138 = vadd.s32 %v2137, %v2128
    %v2139 = vand.u32 %v2116, 65535
    %v2140 = vshrl.u32 %v2116, 16
    %v2141 = vand.u32 %v2111, 65535
    %v2142 = vshrl.u32 %v2111, 16
    %v2143 = vmul.u32 %v2139, %v2141
    %v2144 = vmul.u32 %v2139, %v2142
    %v2145 = vmul.u32 %v2140, %v2141
    %v2146 = vmul.u32 %v2140, %v2142
    %v2147 = vshll.u32 %v2144, 16
    %v2148 = vshrl.u32 %v2144, 16
    %v2149 = vshll.u32 %v2145, 16
    %v2150 = vshrl.u32 %v2145, 16
    %vm2151 = vc.u32 %v2143, %v2147
    %v2152 = vsel %vm2151, 1, 0
    %v2153 = vadd.s32 %v2143, %v2147
    %v2154 = vadd.s32 %v2146, %v2152
    %vm2155 = vc.u32 %v2153, %v2149
    %v2156 = vsel %vm2155, 1, 0
    %v2157 = vadd.s32 %v2153, %v2149
    %v2158 = vadd.s32 %v2154, %v2156
    %v2159 = vadd.s32 %v2158, %v2148
    %v2160 = vadd.s32 %v2159, %v2150
    %v2161 = vmul.u32 %v2116, %v2107
    %v2162 = vadd.s32 %v2138, %v2157
    %vm2163 = vc.u32 %v2138, %v2157
    %v2164 = vadd.s32 %v2160, 1
    %v2165 = vsel %vm2163, %v2164, %v2160
    %v2166 = vadd.s32 %v2161, %v2165
    %v2167 = vadd.s32 %v2166, 536870912
    %v2168 = vshrl.u32 %v2167, 30
    %v2169 = vshll.u32 %v2168, 30
    %v2170 = vsub.s32 %v2166, %v2169
    %vm2171 = vcmp.lt.s32.totalorder %v2170, 0
    %v2172 = vsub.s32 0, %v2170
    %v2173 = vsel %vm2171, %v2172, %v2170
    %v2174 = vclz %v2173
    %v2175 = vsub.s32 %v2174, 2
    %vm2176 = vcmp.gt.s32.totalorder 0, %v2175
    %v2177 = vsel %vm2176, 0, %v2175
    %v2178 = vsub.s32 32, %v2177
    %v2179 = vshll.u32 %v2170, %v2177
    %v2180 = vshrl.u32 %v2162, %v2178
    %v2181 = vor.u32 %v2179, %v2180
    %v2182 = vsub.s32 4294967266, %v2177
    %v2183 = vadd.s32 %v2182, 127
    %v2184 = vshll.u32 %v2183, 23
    %v2185 = vor.u32 4788187, %v2184
    %v2186 = vand.u32 2147483647, %v2185
    %v2188 = vcvt.s32.f32 %v2181
    %v2189 = vmul.f32 %v2188, %v2186
    %v2190 = vxor.u32 %v2189, 2147483648
    %v2191 = vsel %vm2070, %v2190, %v2189
    %v2192 = vsub.s32 4, %v2168
    %v2193 = vsel %vm2070, %v2192, %v2168
    %v2194 = vsel %vm2069, %v522, %v2191
    %v2195 = vsel %vm2069, 0, %v2193
    %v2196 = vmul.f32 %v2194, %v2194
    %v2197 = vmul.f32 %v2196, -0.001358992
    %v2198 = vadd.f32 %v2197, 0.041655596
    %v2199 = vmul.f32 %v2196, %v2198
    %v2200 = vadd.f32 %v2199, -0.4999988
    %v2201 = vmul.f32 %v2196, %v2200
    %v2202 = vadd.f32 1.0, %v2201
    %v2203 = vmul.f32 %v2194, %v2194
    %v2204 = vmul.f32 %v2203, -0.00019511016
    %v2205 = vadd.f32 %v2204, 0.008332121
    %v2206 = vmul.f32 %v2203, %v2205
    %v2207 = vadd.f32 %v2206, -0.16666654
    %v2208 = vmul.f32 %v2203, %v2207
    %v2209 = vadd.f32 %v2208, 1.0
    %v2210 = vmul.f32 %v2209, %v2194
    %vm2211 = vweird.f32 %v522
    %v2212 = vand.u32 %v2195, 3
    %vm2213 = vcmp.lt.s32.totalorder %v2212, 2
    %vm2214 = vcmp.eq.s32.totalorder %v2212, 0
    %v2215 = vxor.u32 %v2210, 2147483648
    %v2216 = vsel %vm2214, %v2202, %v2215
    %vm2217 = vcmp.eq.s32.totalorder %v2212, 2
    %v2218 = vxor.u32 %v2202, 2147483648
    %v2219 = vsel %vm2217, %v2218, %v2210
    %v2220 = vsel %vm2213, %v2216, %v2219
    %v2221 = vsel %vm2211, nan, %v2220
    %v2222 = vand.u32 2147483647, %v523
    %vm2223 = vcmp.le.f32.partialorder %v2222, 0.7853982
    %vm2224 = vcmp.lt.s32.totalorder %v523, 0
    %v2225 = vand.u32 %v523, 2139095040
    %v2226 = vshrl.u32 %v2225, 23
    %v2227 = vsub.s32 %v2226, 127
    %v2228 = vand.u32 2147483647, %v523
    %v2229 = vand.u32 %v2228, 8388607
    %v2230 = vor.u32 %v2229, 8388608
    %v2231 = vsub.s32 0, %v2230
    %v2232 = vadd.s32 %v2227, 1
    %vm2233 = vcmp.gt.s32.totalorder %v2232, 0
    %v2234 = vsel %vm2233, %v2232, 0
    %v2235 = vshrl.u32 %v2234, 5
    %v2236 = vand.u32 %v2234, 31
    %v2237 = vsub.s32 32, %v2236
    %v2238 = vshrl.u32 683565275, %v2237
    %v2239 = vshll.u32 683565275, %v2236
    %v2240 = vshrl.u32 2475754826, %v2237
    %v2241 = vor.u32 %v2239, %v2240
    %v2242 = vshll.u32 2475754826, %v2236
    %v2243 = vshrl.u32 2131351028, %v2237
    %v2244 = vor.u32 %v2242, %v2243
    %v2245 = vshll.u32 2131351028, %v2236
    %v2246 = vshrl.u32 2102212464, %v2237
    %v2247 = vor.u32 %v2245, %v2246
    %v2248 = vshll.u32 2102212464, %v2236
    %v2249 = vshrl.u32 920167782, %v2237
    %v2250 = vor.u32 %v2248, %v2249
    %v2251 = vshll.u32 920167782, %v2236
    %v2252 = vshrl.u32 1326507024, %v2237
    %v2253 = vor.u32 %v2251, %v2252
    %vm2254 = vcmp.lt.s32.totalorder %v2235, 1
    %vm2255 = vcmp.lt.s32.totalorder %v2235, 2
    %vm2256 = vcmp.lt.s32.totalorder %v2235, 3
    %vm2257 = vcmp.lt.s32.totalorder %v2235, 4
    %v2258 = vsel %vm2254, %v2238, %v2241
    %v2259 = vsel %vm2257, %v2247, 2102212464
    %v2260 = vsel %vm2256, %v2244, %v2259
    %v2261 = vsel %vm2255, %v2258, %v2260
    %v2262 = vsel %vm2254, %v2241, %v2244
    %v2263 = vsel %vm2257, %v2250, 920167782
    %v2264 = vsel %vm2256, %v2247, %v2263
    %v2265 = vsel %vm2255, %v2262, %v2264
    %v2266 = vsel %vm2254, %v2244, %v2247
    %v2267 = vsel %vm2257, %v2253, 1326507024
    %v2268 = vsel %vm2256, %v2250, %v2267
    %v2269 = vsel %vm2255, %v2266, %v2268
    %v2270 = vshll.u32 %v2230, 8
    %v2271 = vand.u32 %v2270, 65535
    %v2272 = vshrl.u32 %v2270, 16
    %v2273 = vand.u32 %v2269, 65535
    %v2274 = vshrl.u32 %v2269, 16
    %v2275 = vmul.u32 %v2271, %v2273
    %v2276 = vmul.u32 %v2271, %v2274
    %v2277 = vmul.u32 %v2272, %v2273
    %v2278 = vmul.u32 %v2272, %v2274
    %v2279 = vshll.u32 %v2276, 16
    %v2280 = vshrl.u32 %v2276, 16
    %v2281 = vshll.u32 %v2277, 16
    %v2282 = vshrl.u32 %v2277, 16
    %vm2283 = vc.u32 %v2275, %v2279
    %v2284 = vsel %vm2283, 1, 0
    %v2285 = vadd.s32 %v2275, %v2279
    %v2286 = vadd.s32 %v2278, %v2284
    %vm2287 = vc.u32 %v2285, %v2281
    %v2288 = vsel %vm2287, 1, 0
    %v2289 = vadd.s32 %v2285, %v2281
    %v2290 = vadd.s32 %v2286, %v2288
    %v2291 = vadd.s32 %v2290, %v2280
    %v2292 = vadd.s32 %v2291, %v2282
    %v2293 = vand.u32 %v2270, 65535
    %v2294 = vshrl.u32 %v2270, 16
    %v2295 = vand.u32 %v2265, 65535
    %v2296 = vshrl.u32 %v2265, 16
    %v2297 = vmul.u32 %v2293, %v2295
    %v2298 = vmul.u32 %v2293, %v2296
    %v2299 = vmul.u32 %v2294, %v2295
    %v2300 = vmul.u32 %v2294, %v2296
    %v2301 = vshll.u32 %v2298, 16
    %v2302 = vshrl.u32 %v2298, 16
    %v2303 = vshll.u32 %v2299, 16
    %v2304 = vshrl.u32 %v2299, 16
    %vm2305 = vc.u32 %v2297, %v2301
    %v2306 = vsel %vm2305, 1, 0
    %v2307 = vadd.s32 %v2297, %v2301
    %v2308 = vadd.s32 %v2300, %v2306
    %vm2309 = vc.u32 %v2307, %v2303
    %v2310 = vsel %vm2309, 1, 0
    %v2311 = vadd.s32 %v2307, %v2303
    %v2312 = vadd.s32 %v2308, %v2310
    %v2313 = vadd.s32 %v2312, %v2302
    %v2314 = vadd.s32 %v2313, %v2304
    %v2315 = vmul.u32 %v2270, %v2261
    %v2316 = vadd.s32 %v2292, %v2311
    %vm2317 = vc.u32 %v2292, %v2311
    %v2318 = vadd.s32 %v2314, 1
    %v2319 = vsel %vm2317, %v2318, %v2314
    %v2320 = vadd.s32 %v2315, %v2319
    %v2321 = vadd.s32 %v2320, 536870912
    %v2322 = vshrl.u32 %v2321, 30
    %v2323 = vshll.u32 %v2322, 30
    %v2324 = vsub.s32 %v2320, %v2323
    %vm2325 = vcmp.lt.s32.totalorder %v2324, 0
    %v2326 = vsub.s32 0, %v2324
    %v2327 = vsel %vm2325, %v2326, %v2324
    %v2328 = vclz %v2327
    %v2329 = vsub.s32 %v2328, 2
    %vm2330 = vcmp.gt.s32.totalorder 0, %v2329
    %v2331 = vsel %vm2330, 0, %v2329
    %v2332 = vsub.s32 32, %v2331
    %v2333 = vshll.u32 %v2324, %v2331
    %v2334 = vshrl.u32 %v2316, %v2332
    %v2335 = vor.u32 %v2333, %v2334
    %v2336 = vsub.s32 4294967266, %v2331
    %v2337 = vadd.s32 %v2336, 127
    %v2338 = vshll.u32 %v2337, 23
    %v2339 = vor.u32 4788187, %v2338
    %v2340 = vand.u32 2147483647, %v2339
    %v2342 = vcvt.s32.f32 %v2335
    %v2343 = vmul.f32 %v2342, %v2340
    %v2344 = vxor.u32 %v2343, 2147483648
    %v2345 = vsel %vm2224, %v2344, %v2343
    %v2346 = vsub.s32 4, %v2322
    %v2347 = vsel %vm2224, %v2346, %v2322
    %v2348 = vsel %vm2223, %v523, %v2345
    %v2349 = vsel %vm2223, 0, %v2347
    %v2350 = vmul.f32 %v2348, %v2348
    %v2351 = vmul.f32 %v2350, -0.001358992
    %v2352 = vadd.f32 %v2351, 0.041655596
    %v2353 = vmul.f32 %v2350, %v2352
    %v2354 = vadd.f32 %v2353, -0.4999988
    %v2355 = vmul.f32 %v2350, %v2354
    %v2356 = vadd.f32 1.0, %v2355
    %v2357 = vmul.f32 %v2348, %v2348
    %v2358 = vmul.f32 %v2357, -0.00019511016
    %v2359 = vadd.f32 %v2358, 0.008332121
    %v2360 = vmul.f32 %v2357, %v2359
    %v2361 = vadd.f32 %v2360, -0.16666654
    %v2362 = vmul.f32 %v2357, %v2361
    %v2363 = vadd.f32 %v2362, 1.0
    %v2364 = vmul.f32 %v2363, %v2348
    %vm2365 = vweird.f32 %v523
    %v2366 = vand.u32 %v2349, 3
    %vm2367 = vcmp.lt.s32.totalorder %v2366, 2
    %vm2368 = vcmp.eq.s32.totalorder %v2366, 0
    %v2369 = vxor.u32 %v2364, 2147483648
    %v2370 = vsel %vm2368, %v2356, %v2369
    %vm2371 = vcmp.eq.s32.totalorder %v2366, 2
    %v2372 = vxor.u32 %v2356, 2147483648
    %v2373 = vsel %vm2371, %v2372, %v2364
    %v2374 = vsel %vm2367, %v2370, %v2373
    %v2375 = vsel %vm2365, nan, %v2374
    %v2376 = vand.u32 2147483647, %v524
    %vm2377 = vcmp.le.f32.partialorder %v2376, 0.7853982
    %vm2378 = vcmp.lt.s32.totalorder %v524, 0
    %v2379 = vand.u32 %v524, 2139095040
    %v2380 = vshrl.u32 %v2379, 23
    %v2381 = vsub.s32 %v2380, 127
    %v2382 = vand.u32 2147483647, %v524
    %v2383 = vand.u32 %v2382, 8388607
    %v2384 = vor.u32 %v2383, 8388608
    %v2385 = vsub.s32 0, %v2384
    %v2386 = vadd.s32 %v2381, 1
    %vm2387 = vcmp.gt.s32.totalorder %v2386, 0
    %v2388 = vsel %vm2387, %v2386, 0
    %v2389 = vshrl.u32 %v2388, 5
    %v2390 = vand.u32 %v2388, 31
    %v2391 = vsub.s32 32, %v2390
    %v2392 = vshrl.u32 683565275, %v2391
    %v2393 = vshll.u32 683565275, %v2390
    %v2394 = vshrl.u32 2475754826, %v2391
    %v2395 = vor.u32 %v2393, %v2394
    %v2396 = vshll.u32 2475754826, %v2390
    %v2397 = vshrl.u32 2131351028, %v2391
    %v2398 = vor.u32 %v2396, %v2397
    %v2399 = vshll.u32 2131351028, %v2390
    %v2400 = vshrl.u32 2102212464, %v2391
    %v2401 = vor.u32 %v2399, %v2400
    %v2402 = vshll.u32 2102212464, %v2390
    %v2403 = vshrl.u32 920167782, %v2391
    %v2404 = vor.u32 %v2402, %v2403
    %v2405 = vshll.u32 920167782, %v2390
    %v2406 = vshrl.u32 1326507024, %v2391
    %v2407 = vor.u32 %v2405, %v2406
    %vm2408 = vcmp.lt.s32.totalorder %v2389, 1
    %vm2409 = vcmp.lt.s32.totalorder %v2389, 2
    %vm2410 = vcmp.lt.s32.totalorder %v2389, 3
    %vm2411 = vcmp.lt.s32.totalorder %v2389, 4
    %v2412 = vsel %vm2408, %v2392, %v2395
    %v2413 = vsel %vm2411, %v2401, 2102212464
    %v2414 = vsel %vm2410, %v2398, %v2413
    %v2415 = vsel %vm2409, %v2412, %v2414
    %v2416 = vsel %vm2408, %v2395, %v2398
    %v2417 = vsel %vm2411, %v2404, 920167782
    %v2418 = vsel %vm2410, %v2401, %v2417
    %v2419 = vsel %vm2409, %v2416, %v2418
    %v2420 = vsel %vm2408, %v2398, %v2401
    %v2421 = vsel %vm2411, %v2407, 1326507024
    %v2422 = vsel %vm2410, %v2404, %v2421
    %v2423 = vsel %vm2409, %v2420, %v2422
    %v2424 = vshll.u32 %v2384, 8
    %v2425 = vand.u32 %v2424, 65535
    %v2426 = vshrl.u32 %v2424, 16
    %v2427 = vand.u32 %v2423, 65535
    %v2428 = vshrl.u32 %v2423, 16
    %v2429 = vmul.u32 %v2425, %v2427
    %v2430 = vmul.u32 %v2425, %v2428
    %v2431 = vmul.u32 %v2426, %v2427
    %v2432 = vmul.u32 %v2426, %v2428
    %v2433 = vshll.u32 %v2430, 16
    %v2434 = vshrl.u32 %v2430, 16
    %v2435 = vshll.u32 %v2431, 16
    %v2436 = vshrl.u32 %v2431, 16
    %vm2437 = vc.u32 %v2429, %v2433
    %v2438 = vsel %vm2437, 1, 0
    %v2439 = vadd.s32 %v2429, %v2433
    %v2440 = vadd.s32 %v2432, %v2438
    %vm2441 = vc.u32 %v2439, %v2435
    %v2442 = vsel %vm2441, 1, 0
    %v2443 = vadd.s32 %v2439, %v2435
    %v2444 = vadd.s32 %v2440, %v2442
    %v2445 = vadd.s32 %v2444, %v2434
    %v2446 = vadd.s32 %v2445, %v2436
    %v2447 = vand.u32 %v2424, 65535
    %v2448 = vshrl.u32 %v2424, 16
    %v2449 = vand.u32 %v2419, 65535
    %v2450 = vshrl.u32 %v2419, 16
    %v2451 = vmul.u32 %v2447, %v2449
    %v2452 = vmul.u32 %v2447, %v2450
    %v2453 = vmul.u32 %v2448, %v2449
    %v2454 = vmul.u32 %v2448, %v2450
    %v2455 = vshll.u32 %v2452, 16
    %v2456 = vshrl.u32 %v2452, 16
    %v2457 = vshll.u32 %v2453, 16
    %v2458 = vshrl.u32 %v2453, 16
    %vm2459 = vc.u32 %v2451, %v2455
    %v2460 = vsel %vm2459, 1, 0
    %v2461 = vadd.s32 %v2451, %v2455
    %v2462 = vadd.s32 %v2454, %v2460
    %vm2463 = vc.u32 %v2461, %v2457
    %v2464 = vsel %vm2463, 1, 0
    %v2465 = vadd.s32 %v2461, %v2457
    %v2466 = vadd.s32 %v2462, %v2464
    %v2467 = vadd.s32 %v2466, %v2456
    %v2468 = vadd.s32 %v2467, %v2458
    %v2469 = vmul.u32 %v2424, %v2415
    %v2470 = vadd.s32 %v2446, %v2465
    %vm2471 = vc.u32 %v2446, %v2465
    %v2472 = vadd.s32 %v2468, 1
    %v2473 = vsel %vm2471, %v2472, %v2468
    %v2474 = vadd.s32 %v2469, %v2473
    %v2475 = vadd.s32 %v2474, 536870912
    %v2476 = vshrl.u32 %v2475, 30
    %v2477 = vshll.u32 %v2476, 30
    %v2478 = vsub.s32 %v2474, %v2477
    %vm2479 = vcmp.lt.s32.totalorder %v2478, 0
    %v2480 = vsub.s32 0, %v2478
    %v2481 = vsel %vm2479, %v2480, %v2478
    %v2482 = vclz %v2481
    %v2483 = vsub.s32 %v2482, 2
    %vm2484 = vcmp.gt.s32.totalorder 0, %v2483
    %v2485 = vsel %vm2484, 0, %v2483
    %v2486 = vsub.s32 32, %v2485
    %v2487 = vshll.u32 %v2478, %v2485
    %v2488 = vshrl.u32 %v2470, %v2486
    %v2489 = vor.u32 %v2487, %v2488
    %v2490 = vsub.s32 4294967266, %v2485
    %v2491 = vadd.s32 %v2490, 127
    %v2492 = vshll.u32 %v2491, 23
    %v2493 = vor.u32 4788187, %v2492
    %v2494 = vand.u32 2147483647, %v2493
    %v2496 = vcvt.s32.f32 %v2489
    %v2497 = vmul.f32 %v2496, %v2494
    %v2498 = vxor.u32 %v2497, 2147483648
    %v2499 = vsel %vm2378, %v2498, %v2497
    %v2500 = vsub.s32 4, %v2476
    %v2501 = vsel %vm2378, %v2500, %v2476
    %v2502 = vsel %vm2377, %v524, %v2499
    %v2503 = vsel %vm2377, 0, %v2501
    %v2504 = vmul.f32 %v2502, %v2502
    %v2505 = vmul.f32 %v2504, -0.001358992
    %v2506 = vadd.f32 %v2505, 0.041655596
    %v2507 = vmul.f32 %v2504, %v2506
    %v2508 = vadd.f32 %v2507, -0.4999988
    %v2509 = vmul.f32 %v2504, %v2508
    %v2510 = vadd.f32 1.0, %v2509
    %v2511 = vmul.f32 %v2502, %v2502
    %v2512 = vmul.f32 %v2511, -0.00019511016
    %v2513 = vadd.f32 %v2512, 0.008332121
    %v2514 = vmul.f32 %v2511, %v2513
    %v2515 = vadd.f32 %v2514, -0.16666654
    %v2516 = vmul.f32 %v2511, %v2515
    %v2517 = vadd.f32 %v2516, 1.0
    %v2518 = vmul.f32 %v2517, %v2502
    %vm2519 = vweird.f32 %v524
    %v2520 = vand.u32 %v2503, 3
    %vm2521 = vcmp.lt.s32.totalorder %v2520, 2
    %vm2522 = vcmp.eq.s32.totalorder %v2520, 0
    %v2523 = vxor.u32 %v2518, 2147483648
    %v2524 = vsel %vm2522, %v2510, %v2523
    %vm2525 = vcmp.eq.s32.totalorder %v2520, 2
    %v2526 = vxor.u32 %v2510, 2147483648
    %v2527 = vsel %vm2525, %v2526, %v2518
    %v2528 = vsel %vm2521, %v2524, %v2527
    %v2529 = vsel %vm2519, nan, %v2528
    %v2530 = vand.u32 2147483647, %v525
    %vm2531 = vcmp.le.f32.partialorder %v2530, 0.7853982
    %vm2532 = vcmp.lt.s32.totalorder %v525, 0
    %v2533 = vand.u32 %v525, 2139095040
    %v2534 = vshrl.u32 %v2533, 23
    %v2535 = vsub.s32 %v2534, 127
    %v2536 = vand.u32 2147483647, %v525
    %v2537 = vand.u32 %v2536, 8388607
    %v2538 = vor.u32 %v2537, 8388608
    %v2539 = vsub.s32 0, %v2538
    %v2540 = vadd.s32 %v2535, 1
    %vm2541 = vcmp.gt.s32.totalorder %v2540, 0
    %v2542 = vsel %vm2541, %v2540, 0
    %v2543 = vshrl.u32 %v2542, 5
    %v2544 = vand.u32 %v2542, 31
    %v2545 = vsub.s32 32, %v2544
    %v2546 = vshrl.u32 683565275, %v2545
    %v2547 = vshll.u32 683565275, %v2544
    %v2548 = vshrl.u32 2475754826, %v2545
    %v2549 = vor.u32 %v2547, %v2548
    %v2550 = vshll.u32 2475754826, %v2544
    %v2551 = vshrl.u32 2131351028, %v2545
    %v2552 = vor.u32 %v2550, %v2551
    %v2553 = vshll.u32 2131351028, %v2544
    %v2554 = vshrl.u32 2102212464, %v2545
    %v2555 = vor.u32 %v2553, %v2554
    %v2556 = vshll.u32 2102212464, %v2544
    %v2557 = vshrl.u32 920167782, %v2545
    %v2558 = vor.u32 %v2556, %v2557
    %v2559 = vshll.u32 920167782, %v2544
    %v2560 = vshrl.u32 1326507024, %v2545
    %v2561 = vor.u32 %v2559, %v2560
    %vm2562 = vcmp.lt.s32.totalorder %v2543, 1
    %vm2563 = vcmp.lt.s32.totalorder %v2543, 2
    %vm2564 = vcmp.lt.s32.totalorder %v2543, 3
    %vm2565 = vcmp.lt.s32.totalorder %v2543, 4
    %v2566 = vsel %vm2562, %v2546, %v2549
    %v2567 = vsel %vm2565, %v2555, 2102212464
    %v2568 = vsel %vm2564, %v2552, %v2567
    %v2569 = vsel %vm2563, %v2566, %v2568
    %v2570 = vsel %vm2562, %v2549, %v2552
    %v2571 = vsel %vm2565, %v2558, 920167782
    %v2572 = vsel %vm2564, %v2555, %v2571
    %v2573 = vsel %vm2563, %v2570, %v2572
    %v2574 = vsel %vm2562, %v2552, %v2555
    %v2575 = vsel %vm2565, %v2561, 1326507024
    %v2576 = vsel %vm2564, %v2558, %v2575
    %v2577 = vsel %vm2563, %v2574, %v2576
    %v2578 = vshll.u32 %v2538, 8
    %v2579 = vand.u32 %v2578, 65535
    %v2580 = vshrl.u32 %v2578, 16
    %v2581 = vand.u32 %v2577, 65535
    %v2582 = vshrl.u32 %v2577, 16
    %v2583 = vmul.u32 %v2579, %v2581
    %v2584 = vmul.u32 %v2579, %v2582
    %v2585 = vmul.u32 %v2580, %v2581
    %v2586 = vmul.u32 %v2580, %v2582
    %v2587 = vshll.u32 %v2584, 16
    %v2588 = vshrl.u32 %v2584, 16
    %v2589 = vshll.u32 %v2585, 16
    %v2590 = vshrl.u32 %v2585, 16
    %vm2591 = vc.u32 %v2583, %v2587
    %v2592 = vsel %vm2591, 1, 0
    %v2593 = vadd.s32 %v2583, %v2587
    %v2594 = vadd.s32 %v2586, %v2592
    %vm2595 = vc.u32 %v2593, %v2589
    %v2596 = vsel %vm2595, 1, 0
    %v2597 = vadd.s32 %v2593, %v2589
    %v2598 = vadd.s32 %v2594, %v2596
    %v2599 = vadd.s32 %v2598, %v2588
    %v2600 = vadd.s32 %v2599, %v2590
    %v2601 = vand.u32 %v2578, 65535
    %v2602 = vshrl.u32 %v2578, 16
    %v2603 = vand.u32 %v2573, 65535
    %v2604 = vshrl.u32 %v2573, 16
    %v2605 = vmul.u32 %v2601, %v2603
    %v2606 = vmul.u32 %v2601, %v2604
    %v2607 = vmul.u32 %v2602, %v2603
    %v2608 = vmul.u32 %v2602, %v2604
    %v2609 = vshll.u32 %v2606, 16
    %v2610 = vshrl.u32 %v2606, 16
    %v2611 = vshll.u32 %v2607, 16
    %v2612 = vshrl.u32 %v2607, 16
    %vm2613 = vc.u32 %v2605, %v2609
    %v2614 = vsel %vm2613, 1, 0
    %v2615 = vadd.s32 %v2605, %v2609
    %v2616 = vadd.s32 %v2608, %v2614
    %vm2617 = vc.u32 %v2615, %v2611
    %v2618 = vsel %vm2617, 1, 0
    %v2619 = vadd.s32 %v2615, %v2611
    %v2620 = vadd.s32 %v2616, %v2618
    %v2621 = vadd.s32 %v2620, %v2610
    %v2622 = vadd.s32 %v2621, %v2612
    %v2623 = vmul.u32 %v2578, %v2569
    %v2624 = vadd.s32 %v2600, %v2619
    %vm2625 = vc.u32 %v2600, %v2619
    %v2626 = vadd.s32 %v2622, 1
    %v2627 = vsel %vm2625, %v2626, %v2622
    %v2628 = vadd.s32 %v2623, %v2627
    %v2629 = vadd.s32 %v2628, 536870912
    %v2630 = vshrl.u32 %v2629, 30
    %v2631 = vshll.u32 %v2630, 30
    %v2632 = vsub.s32 %v2628, %v2631
    %vm2633 = vcmp.lt.s32.totalorder %v2632, 0
    %v2634 = vsub.s32 0, %v2632
    %v2635 = vsel %vm2633, %v2634, %v2632
    %v2636 = vclz %v2635
    %v2637 = vsub.s32 %v2636, 2
    %vm2638 = vcmp.gt.s32.totalorder 0, %v2637
    %v2639 = vsel %vm2638, 0, %v2637
    %v2640 = vsub.s32 32, %v2639
    %v2641 = vshll.u32 %v2632, %v2639
    %v2642 = vshrl.u32 %v2624, %v2640
    %v2643 = vor.u32 %v2641, %v2642
    %v2644 = vsub.s32 4294967266, %v2639
    %v2645 = vadd.s32 %v2644, 127
    %v2646 = vshll.u32 %v2645, 23
    %v2647 = vor.u32 4788187, %v2646
    %v2648 = vand.u32 2147483647, %v2647
    %v2650 = vcvt.s32.f32 %v2643
    %v2651 = vmul.f32 %v2650, %v2648
    %v2652 = vxor.u32 %v2651, 2147483648
    %v2653 = vsel %vm2532, %v2652, %v2651
    %v2654 = vsub.s32 4, %v2630
    %v2655 = vsel %vm2532, %v2654, %v2630
    %v2656 = vsel %vm2531, %v525, %v2653
    %v2657 = vsel %vm2531, 0, %v2655
    %v2658 = vmul.f32 %v2656, %v2656
    %v2659 = vmul.f32 %v2658, -0.001358992
    %v2660 = vadd.f32 %v2659, 0.041655596
    %v2661 = vmul.f32 %v2658, %v2660
    %v2662 = vadd.f32 %v2661, -0.4999988
    %v2663 = vmul.f32 %v2658, %v2662
    %v2664 = vadd.f32 1.0, %v2663
    %v2665 = vmul.f32 %v2656, %v2656
    %v2666 = vmul.f32 %v2665, -0.00019511016
    %v2667 = vadd.f32 %v2666, 0.008332121
    %v2668 = vmul.f32 %v2665, %v2667
    %v2669 = vadd.f32 %v2668, -0.16666654
    %v2670 = vmul.f32 %v2665, %v2669
    %v2671 = vadd.f32 %v2670, 1.0
    %v2672 = vmul.f32 %v2671, %v2656
    %vm2673 = vweird.f32 %v525
    %v2674 = vand.u32 %v2657, 3
    %vm2675 = vcmp.lt.s32.totalorder %v2674, 2
    %vm2676 = vcmp.eq.s32.totalorder %v2674, 0
    %v2677 = vxor.u32 %v2672, 2147483648
    %v2678 = vsel %vm2676, %v2664, %v2677
    %vm2679 = vcmp.eq.s32.totalorder %v2674, 2
    %v2680 = vxor.u32 %v2664, 2147483648
    %v2681 = vsel %vm2679, %v2680, %v2672
    %v2682 = vsel %vm2675, %v2678, %v2681
    %v2683 = vsel %vm2673, nan, %v2682
    %v2684 = vand.u32 2147483647, %v526
    %vm2685 = vcmp.le.f32.partialorder %v2684, 0.7853982
    %vm2686 = vcmp.lt.s32.totalorder %v526, 0
    %v2687 = vand.u32 %v526, 2139095040
    %v2688 = vshrl.u32 %v2687, 23
    %v2689 = vsub.s32 %v2688, 127
    %v2690 = vand.u32 2147483647, %v526
    %v2691 = vand.u32 %v2690, 8388607
    %v2692 = vor.u32 %v2691, 8388608
    %v2693 = vsub.s32 0, %v2692
    %v2694 = vadd.s32 %v2689, 1
    %vm2695 = vcmp.gt.s32.totalorder %v2694, 0
    %v2696 = vsel %vm2695, %v2694, 0
    %v2697 = vshrl.u32 %v2696, 5
    %v2698 = vand.u32 %v2696, 31
    %v2699 = vsub.s32 32, %v2698
    %v2700 = vshrl.u32 683565275, %v2699
    %v2701 = vshll.u32 683565275, %v2698
    %v2702 = vshrl.u32 2475754826, %v2699
    %v2703 = vor.u32 %v2701, %v2702
    %v2704 = vshll.u32 2475754826, %v2698
    %v2705 = vshrl.u32 2131351028, %v2699
    %v2706 = vor.u32 %v2704, %v2705
    %v2707 = vshll.u32 2131351028, %v2698
    %v2708 = vshrl.u32 2102212464, %v2699
    %v2709 = vor.u32 %v2707, %v2708
    %v2710 = vshll.u32 2102212464, %v2698
    %v2711 = vshrl.u32 920167782, %v2699
    %v2712 = vor.u32 %v2710, %v2711
    %v2713 = vshll.u32 920167782, %v2698
    %v2714 = vshrl.u32 1326507024, %v2699
    %v2715 = vor.u32 %v2713, %v2714
    %vm2716 = vcmp.lt.s32.totalorder %v2697, 1
    %vm2717 = vcmp.lt.s32.totalorder %v2697, 2
    %vm2718 = vcmp.lt.s32.totalorder %v2697, 3
    %vm2719 = vcmp.lt.s32.totalorder %v2697, 4
    %v2720 = vsel %vm2716, %v2700, %v2703
    %v2721 = vsel %vm2719, %v2709, 2102212464
    %v2722 = vsel %vm2718, %v2706, %v2721
    %v2723 = vsel %vm2717, %v2720, %v2722
    %v2724 = vsel %vm2716, %v2703, %v2706
    %v2725 = vsel %vm2719, %v2712, 920167782
    %v2726 = vsel %vm2718, %v2709, %v2725
    %v2727 = vsel %vm2717, %v2724, %v2726
    %v2728 = vsel %vm2716, %v2706, %v2709
    %v2729 = vsel %vm2719, %v2715, 1326507024
    %v2730 = vsel %vm2718, %v2712, %v2729
    %v2731 = vsel %vm2717, %v2728, %v2730
    %v2732 = vshll.u32 %v2692, 8
    %v2733 = vand.u32 %v2732, 65535
    %v2734 = vshrl.u32 %v2732, 16
    %v2735 = vand.u32 %v2731, 65535
    %v2736 = vshrl.u32 %v2731, 16
    %v2737 = vmul.u32 %v2733, %v2735
    %v2738 = vmul.u32 %v2733, %v2736
    %v2739 = vmul.u32 %v2734, %v2735
    %v2740 = vmul.u32 %v2734, %v2736
    %v2741 = vshll.u32 %v2738, 16
    %v2742 = vshrl.u32 %v2738, 16
    %v2743 = vshll.u32 %v2739, 16
    %v2744 = vshrl.u32 %v2739, 16
    %vm2745 = vc.u32 %v2737, %v2741
    %v2746 = vsel %vm2745, 1, 0
    %v2747 = vadd.s32 %v2737, %v2741
    %v2748 = vadd.s32 %v2740, %v2746
    %vm2749 = vc.u32 %v2747, %v2743
    %v2750 = vsel %vm2749, 1, 0
    %v2751 = vadd.s32 %v2747, %v2743
    %v2752 = vadd.s32 %v2748, %v2750
    %v2753 = vadd.s32 %v2752, %v2742
    %v2754 = vadd.s32 %v2753, %v2744
    %v2755 = vand.u32 %v2732, 65535
    %v2756 = vshrl.u32 %v2732, 16
    %v2757 = vand.u32 %v2727, 65535
    %v2758 = vshrl.u32 %v2727, 16
    %v2759 = vmul.u32 %v2755, %v2757
    %v2760 = vmul.u32 %v2755, %v2758
    %v2761 = vmul.u32 %v2756, %v2757
    %v2762 = vmul.u32 %v2756, %v2758
    %v2763 = vshll.u32 %v2760, 16
    %v2764 = vshrl.u32 %v2760, 16
    %v2765 = vshll.u32 %v2761, 16
    %v2766 = vshrl.u32 %v2761, 16
    %vm2767 = vc.u32 %v2759, %v2763
    %v2768 = vsel %vm2767, 1, 0
    %v2769 = vadd.s32 %v2759, %v2763
    %v2770 = vadd.s32 %v2762, %v2768
    %vm2771 = vc.u32 %v2769, %v2765
    %v2772 = vsel %vm2771, 1, 0
    %v2773 = vadd.s32 %v2769, %v2765
    %v2774 = vadd.s32 %v2770, %v2772
    %v2775 = vadd.s32 %v2774, %v2764
    %v2776 = vadd.s32 %v2775, %v2766
    %v2777 = vmul.u32 %v2732, %v2723
    %v2778 = vadd.s32 %v2754, %v2773
    %vm2779 = vc.u32 %v2754, %v2773
    %v2780 = vadd.s32 %v2776, 1
    %v2781 = vsel %vm2779, %v2780, %v2776
    %v2782 = vadd.s32 %v2777, %v2781
    %v2783 = vadd.s32 %v2782, 536870912
    %v2784 = vshrl.u32 %v2783, 30
    %v2785 = vshll.u32 %v2784, 30
    %v2786 = vsub.s32 %v2782, %v2785
    %vm2787 = vcmp.lt.s32.totalorder %v2786, 0
    %v2788 = vsub.s32 0, %v2786
    %v2789 = vsel %vm2787, %v2788, %v2786
    %v2790 = vclz %v2789
    %v2791 = vsub.s32 %v2790, 2
    %vm2792 = vcmp.gt.s32.totalorder 0, %v2791
    %v2793 = vsel %vm2792, 0, %v2791
    %v2794 = vsub.s32 32, %v2793
    %v2795 = vshll.u32 %v2786, %v2793
    %v2796 = vshrl.u32 %v2778, %v2794
    %v2797 = vor.u32 %v2795, %v2796
    %v2798 = vsub.s32 4294967266, %v2793
    %v2799 = vadd.s32 %v2798, 127
    %v2800 = vshll.u32 %v2799, 23
    %v2801 = vor.u32 4788187, %v2800
    %v2802 = vand.u32 2147483647, %v2801
    %v2804 = vcvt.s32.f32 %v2797
    %v2805 = vmul.f32 %v2804, %v2802
    %v2806 = vxor.u32 %v2805, 2147483648
    %v2807 = vsel %vm2686, %v2806, %v2805
    %v2808 = vsub.s32 4, %v2784
    %v2809 = vsel %vm2686, %v2808, %v2784
    %v2810 = vsel %vm2685, %v526, %v2807
    %v2811 = vsel %vm2685, 0, %v2809
    %v2812 = vmul.f32 %v2810, %v2810
    %v2813 = vmul.f32 %v2812, -0.001358992
    %v2814 = vadd.f32 %v2813, 0.041655596
    %v2815 = vmul.f32 %v2812, %v2814
    %v2816 = vadd.f32 %v2815, -0.4999988
    %v2817 = vmul.f32 %v2812, %v2816
    %v2818 = vadd.f32 1.0, %v2817
    %v2819 = vmul.f32 %v2810, %v2810
    %v2820 = vmul.f32 %v2819, -0.00019511016
    %v2821 = vadd.f32 %v2820, 0.008332121
    %v2822 = vmul.f32 %v2819, %v2821
    %v2823 = vadd.f32 %v2822, -0.16666654
    %v2824 = vmul.f32 %v2819, %v2823
    %v2825 = vadd.f32 %v2824, 1.0
    %v2826 = vmul.f32 %v2825, %v2810
    %vm2827 = vweird.f32 %v526
    %v2828 = vand.u32 %v2811, 3
    %vm2829 = vcmp.lt.s32.totalorder %v2828, 2
    %vm2830 = vcmp.eq.s32.totalorder %v2828, 0
    %v2831 = vxor.u32 %v2826, 2147483648
    %v2832 = vsel %vm2830, %v2818, %v2831
    %vm2833 = vcmp.eq.s32.totalorder %v2828, 2
    %v2834 = vxor.u32 %v2818, 2147483648
    %v2835 = vsel %vm2833, %v2834, %v2826
    %v2836 = vsel %vm2829, %v2832, %v2835
    %v2837 = vsel %vm2827, nan, %v2836
    %v2838 = vand.u32 2147483647, %v527
    %vm2839 = vcmp.le.f32.partialorder %v2838, 0.7853982
    %vm2840 = vcmp.lt.s32.totalorder %v527, 0
    %v2841 = vand.u32 %v527, 2139095040
    %v2842 = vshrl.u32 %v2841, 23
    %v2843 = vsub.s32 %v2842, 127
    %v2844 = vand.u32 2147483647, %v527
    %v2845 = vand.u32 %v2844, 8388607
    %v2846 = vor.u32 %v2845, 8388608
    %v2847 = vsub.s32 0, %v2846
    %v2848 = vadd.s32 %v2843, 1
    %vm2849 = vcmp.gt.s32.totalorder %v2848, 0
    %v2850 = vsel %vm2849, %v2848, 0
    %v2851 = vshrl.u32 %v2850, 5
    %v2852 = vand.u32 %v2850, 31
    %v2853 = vsub.s32 32, %v2852
    %v2854 = vshrl.u32 683565275, %v2853
    %v2855 = vshll.u32 683565275, %v2852
    %v2856 = vshrl.u32 2475754826, %v2853
    %v2857 = vor.u32 %v2855, %v2856
    %v2858 = vshll.u32 2475754826, %v2852
    %v2859 = vshrl.u32 2131351028, %v2853
    %v2860 = vor.u32 %v2858, %v2859
    %v2861 = vshll.u32 2131351028, %v2852
    %v2862 = vshrl.u32 2102212464, %v2853
    %v2863 = vor.u32 %v2861, %v2862
    %v2864 = vshll.u32 2102212464, %v2852
    %v2865 = vshrl.u32 920167782, %v2853
    %v2866 = vor.u32 %v2864, %v2865
    %v2867 = vshll.u32 920167782, %v2852
    %v2868 = vshrl.u32 1326507024, %v2853
    %v2869 = vor.u32 %v2867, %v2868
    %vm2870 = vcmp.lt.s32.totalorder %v2851, 1
    %vm2871 = vcmp.lt.s32.totalorder %v2851, 2
    %vm2872 = vcmp.lt.s32.totalorder %v2851, 3
    %vm2873 = vcmp.lt.s32.totalorder %v2851, 4
    %v2874 = vsel %vm2870, %v2854, %v2857
    %v2875 = vsel %vm2873, %v2863, 2102212464
    %v2876 = vsel %vm2872, %v2860, %v2875
    %v2877 = vsel %vm2871, %v2874, %v2876
    %v2878 = vsel %vm2870, %v2857, %v2860
    %v2879 = vsel %vm2873, %v2866, 920167782
    %v2880 = vsel %vm2872, %v2863, %v2879
    %v2881 = vsel %vm2871, %v2878, %v2880
    %v2882 = vsel %vm2870, %v2860, %v2863
    %v2883 = vsel %vm2873, %v2869, 1326507024
    %v2884 = vsel %vm2872, %v2866, %v2883
    %v2885 = vsel %vm2871, %v2882, %v2884
    %v2886 = vshll.u32 %v2846, 8
    %v2887 = vand.u32 %v2886, 65535
    %v2888 = vshrl.u32 %v2886, 16
    %v2889 = vand.u32 %v2885, 65535
    %v2890 = vshrl.u32 %v2885, 16
    %v2891 = vmul.u32 %v2887, %v2889
    %v2892 = vmul.u32 %v2887, %v2890
    %v2893 = vmul.u32 %v2888, %v2889
    %v2894 = vmul.u32 %v2888, %v2890
    %v2895 = vshll.u32 %v2892, 16
    %v2896 = vshrl.u32 %v2892, 16
    %v2897 = vshll.u32 %v2893, 16
    %v2898 = vshrl.u32 %v2893, 16
    %vm2899 = vc.u32 %v2891, %v2895
    %v2900 = vsel %vm2899, 1, 0
    %v2901 = vadd.s32 %v2891, %v2895
    %v2902 = vadd.s32 %v2894, %v2900
    %vm2903 = vc.u32 %v2901, %v2897
    %v2904 = vsel %vm2903, 1, 0
    %v2905 = vadd.s32 %v2901, %v2897
    %v2906 = vadd.s32 %v2902, %v2904
    %v2907 = vadd.s32 %v2906, %v2896
    %v2908 = vadd.s32 %v2907, %v2898
    %v2909 = vand.u32 %v2886, 65535
    %v2910 = vshrl.u32 %v2886, 16
    %v2911 = vand.u32 %v2881, 65535
    %v2912 = vshrl.u32 %v2881, 16
    %v2913 = vmul.u32 %v2909, %v2911
    %v2914 = vmul.u32 %v2909, %v2912
    %v2915 = vmul.u32 %v2910, %v2911
    %v2916 = vmul.u32 %v2910, %v2912
    %v2917 = vshll.u32 %v2914, 16
    %v2918 = vshrl.u32 %v2914, 16
    %v2919 = vshll.u32 %v2915, 16
    %v2920 = vshrl.u32 %v2915, 16
    %vm2921 = vc.u32 %v2913, %v2917
    %v2922 = vsel %vm2921, 1, 0
    %v2923 = vadd.s32 %v2913, %v2917
    %v2924 = vadd.s32 %v2916, %v2922
    %vm2925 = vc.u32 %v2923, %v2919
    %v2926 = vsel %vm2925, 1, 0
    %v2927 = vadd.s32 %v2923, %v2919
    %v2928 = vadd.s32 %v2924, %v2926
    %v2929 = vadd.s32 %v2928, %v2918
    %v2930 = vadd.s32 %v2929, %v2920
    %v2931 = vmul.u32 %v2886, %v2877
    %v2932 = vadd.s32 %v2908, %v2927
    %vm2933 = vc.u32 %v2908, %v2927
    %v2934 = vadd.s32 %v2930, 1
    %v2935 = vsel %vm2933, %v2934, %v2930
    %v2936 = vadd.s32 %v2931, %v2935
    %v2937 = vadd.s32 %v2936, 536870912
    %v2938 = vshrl.u32 %v2937, 30
    %v2939 = vshll.u32 %v2938, 30
    %v2940 = vsub.s32 %v2936, %v2939
    %vm2941 = vcmp.lt.s32.totalorder %v2940, 0
    %v2942 = vsub.s32 0, %v2940
    %v2943 = vsel %vm2941, %v2942, %v2940
    %v2944 = vclz %v2943
    %v2945 = vsub.s32 %v2944, 2
    %vm2946 = vcmp.gt.s32.totalorder 0, %v2945
    %v2947 = vsel %vm2946, 0, %v2945
    %v2948 = vsub.s32 32, %v2947
    %v2949 = vshll.u32 %v2940, %v2947
    %v2950 = vshrl.u32 %v2932, %v2948
    %v2951 = vor.u32 %v2949, %v2950
    %v2952 = vsub.s32 4294967266, %v2947
    %v2953 = vadd.s32 %v2952, 127
    %v2954 = vshll.u32 %v2953, 23
    %v2955 = vor.u32 4788187, %v2954
    %v2956 = vand.u32 2147483647, %v2955
    %v2958 = vcvt.s32.f32 %v2951
    %v2959 = vmul.f32 %v2958, %v2956
    %v2960 = vxor.u32 %v2959, 2147483648
    %v2961 = vsel %vm2840, %v2960, %v2959
    %v2962 = vsub.s32 4, %v2938
    %v2963 = vsel %vm2840, %v2962, %v2938
    %v2964 = vsel %vm2839, %v527, %v2961
    %v2965 = vsel %vm2839, 0, %v2963
    %v2966 = vmul.f32 %v2964, %v2964
    %v2967 = vmul.f32 %v2966, -0.001358992
    %v2968 = vadd.f32 %v2967, 0.041655596
    %v2969 = vmul.f32 %v2966, %v2968
    %v2970 = vadd.f32 %v2969, -0.4999988
    %v2971 = vmul.f32 %v2966, %v2970
    %v2972 = vadd.f32 1.0, %v2971
    %v2973 = vmul.f32 %v2964, %v2964
    %v2974 = vmul.f32 %v2973, -0.00019511016
    %v2975 = vadd.f32 %v2974, 0.008332121
    %v2976 = vmul.f32 %v2973, %v2975
    %v2977 = vadd.f32 %v2976, -0.16666654
    %v2978 = vmul.f32 %v2973, %v2977
    %v2979 = vadd.f32 %v2978, 1.0
    %v2980 = vmul.f32 %v2979, %v2964
    %vm2981 = vweird.f32 %v527
    %v2982 = vand.u32 %v2965, 3
    %vm2983 = vcmp.lt.s32.totalorder %v2982, 2
    %vm2984 = vcmp.eq.s32.totalorder %v2982, 0
    %v2985 = vxor.u32 %v2980, 2147483648
    %v2986 = vsel %vm2984, %v2972, %v2985
    %vm2987 = vcmp.eq.s32.totalorder %v2982, 2
    %v2988 = vxor.u32 %v2972, 2147483648
    %v2989 = vsel %vm2987, %v2988, %v2980
    %v2990 = vsel %vm2983, %v2986, %v2989
    %v2991 = vsel %vm2981, nan, %v2990
    %v2992 = vand.u32 2147483647, %v512
    %vm2993 = vcmp.le.f32.partialorder %v2992, 0.7853982
    %vm2994 = vcmp.lt.s32.totalorder %v512, 0
    %v2995 = vand.u32 %v512, 2139095040
    %v2996 = vshrl.u32 %v2995, 23
    %v2997 = vsub.s32 %v2996, 127
    %v2998 = vand.u32 2147483647, %v512
    %v2999 = vand.u32 %v2998, 8388607
    %v3000 = vor.u32 %v2999, 8388608
    %v3001 = vsub.s32 0, %v3000
    %v3002 = vadd.s32 %v2997, 1
    %vm3003 = vcmp.gt.s32.totalorder %v3002, 0
    %v3004 = vsel %vm3003, %v3002, 0
    %v3005 = vshrl.u32 %v3004, 5
    %v3006 = vand.u32 %v3004, 31
    %v3007 = vsub.s32 32, %v3006
    %v3008 = vshrl.u32 683565275, %v3007
    %v3009 = vshll.u32 683565275, %v3006
    %v3010 = vshrl.u32 2475754826, %v3007
    %v3011 = vor.u32 %v3009, %v3010
    %v3012 = vshll.u32 2475754826, %v3006
    %v3013 = vshrl.u32 2131351028, %v3007
    %v3014 = vor.u32 %v3012, %v3013
    %v3015 = vshll.u32 2131351028, %v3006
    %v3016 = vshrl.u32 2102212464, %v3007
    %v3017 = vor.u32 %v3015, %v3016
    %v3018 = vshll.u32 2102212464, %v3006
    %v3019 = vshrl.u32 920167782, %v3007
    %v3020 = vor.u32 %v3018, %v3019
    %v3021 = vshll.u32 920167782, %v3006
    %v3022 = vshrl.u32 1326507024, %v3007
    %v3023 = vor.u32 %v3021, %v3022
    %vm3024 = vcmp.lt.s32.totalorder %v3005, 1
    %vm3025 = vcmp.lt.s32.totalorder %v3005, 2
    %vm3026 = vcmp.lt.s32.totalorder %v3005, 3
    %vm3027 = vcmp.lt.s32.totalorder %v3005, 4
    %v3028 = vsel %vm3024, %v3008, %v3011
    %v3029 = vsel %vm3027, %v3017, 2102212464
    %v3030 = vsel %vm3026, %v3014, %v3029
    %v3031 = vsel %vm3025, %v3028, %v3030
    %v3032 = vsel %vm3024, %v3011, %v3014
    %v3033 = vsel %vm3027, %v3020, 920167782
    %v3034 = vsel %vm3026, %v3017, %v3033
    %v3035 = vsel %vm3025, %v3032, %v3034
    %v3036 = vsel %vm3024, %v3014, %v3017
    %v3037 = vsel %vm3027, %v3023, 1326507024
    %v3038 = vsel %vm3026, %v3020, %v3037
    %v3039 = vsel %vm3025, %v3036, %v3038
    %v3040 = vshll.u32 %v3000, 8
    %v3041 = vand.u32 %v3040, 65535
    %v3042 = vshrl.u32 %v3040, 16
    %v3043 = vand.u32 %v3039, 65535
    %v3044 = vshrl.u32 %v3039, 16
    %v3045 = vmul.u32 %v3041, %v3043
    %v3046 = vmul.u32 %v3041, %v3044
    %v3047 = vmul.u32 %v3042, %v3043
    %v3048 = vmul.u32 %v3042, %v3044
    %v3049 = vshll.u32 %v3046, 16
    %v3050 = vshrl.u32 %v3046, 16
    %v3051 = vshll.u32 %v3047, 16
    %v3052 = vshrl.u32 %v3047, 16
    %vm3053 = vc.u32 %v3045, %v3049
    %v3054 = vsel %vm3053, 1, 0
    %v3055 = vadd.s32 %v3045, %v3049
    %v3056 = vadd.s32 %v3048, %v3054
    %vm3057 = vc.u32 %v3055, %v3051
    %v3058 = vsel %vm3057, 1, 0
    %v3059 = vadd.s32 %v3055, %v3051
    %v3060 = vadd.s32 %v3056, %v3058
    %v3061 = vadd.s32 %v3060, %v3050
    %v3062 = vadd.s32 %v3061, %v3052
    %v3063 = vand.u32 %v3040, 65535
    %v3064 = vshrl.u32 %v3040, 16
    %v3065 = vand.u32 %v3035, 65535
    %v3066 = vshrl.u32 %v3035, 16
    %v3067 = vmul.u32 %v3063, %v3065
    %v3068 = vmul.u32 %v3063, %v3066
    %v3069 = vmul.u32 %v3064, %v3065
    %v3070 = vmul.u32 %v3064, %v3066
    %v3071 = vshll.u32 %v3068, 16
    %v3072 = vshrl.u32 %v3068, 16
    %v3073 = vshll.u32 %v3069, 16
    %v3074 = vshrl.u32 %v3069, 16
    %vm3075 = vc.u32 %v3067, %v3071
    %v3076 = vsel %vm3075, 1, 0
    %v3077 = vadd.s32 %v3067, %v3071
    %v3078 = vadd.s32 %v3070, %v3076
    %vm3079 = vc.u32 %v3077, %v3073
    %v3080 = vsel %vm3079, 1, 0
    %v3081 = vadd.s32 %v3077, %v3073
    %v3082 = vadd.s32 %v3078, %v3080
    %v3083 = vadd.s32 %v3082, %v3072
    %v3084 = vadd.s32 %v3083, %v3074
    %v3085 = vmul.u32 %v3040, %v3031
    %v3086 = vadd.s32 %v3062, %v3081
    %vm3087 = vc.u32 %v3062, %v3081
    %v3088 = vadd.s32 %v3084, 1
    %v3089 = vsel %vm3087, %v3088, %v3084
    %v3090 = vadd.s32 %v3085, %v3089
    %v3091 = vadd.s32 %v3090, 536870912
    %v3092 = vshrl.u32 %v3091, 30
    %v3093 = vshll.u32 %v3092, 30
    %v3094 = vsub.s32 %v3090, %v3093
    %vm3095 = vcmp.lt.s32.totalorder %v3094, 0
    %v3096 = vsub.s32 0, %v3094
    %v3097 = vsel %vm3095, %v3096, %v3094
    %v3098 = vclz %v3097
    %v3099 = vsub.s32 %v3098, 2
    %vm3100 = vcmp.gt.s32.totalorder 0, %v3099
    %v3101 = vsel %vm3100, 0, %v3099
    %v3102 = vsub.s32 32, %v3101
    %v3103 = vshll.u32 %v3094, %v3101
    %v3104 = vshrl.u32 %v3086, %v3102
    %v3105 = vor.u32 %v3103, %v3104
    %v3106 = vsub.s32 4294967266, %v3101
    %v3107 = vadd.s32 %v3106, 127
    %v3108 = vshll.u32 %v3107, 23
    %v3109 = vor.u32 4788187, %v3108
    %v3110 = vand.u32 2147483647, %v3109
    %v3112 = vcvt.s32.f32 %v3105
    %v3113 = vmul.f32 %v3112, %v3110
    %v3114 = vxor.u32 %v3113, 2147483648
    %v3115 = vsel %vm2994, %v3114, %v3113
    %v3116 = vsub.s32 4, %v3092
    %v3117 = vsel %vm2994, %v3116, %v3092
    %v3118 = vsel %vm2993, %v512, %v3115
    %v3119 = vsel %vm2993, 0, %v3117
    %v3120 = vmul.f32 %v3118, %v3118
    %v3121 = vmul.f32 %v3120, -0.001358992
    %v3122 = vadd.f32 %v3121, 0.041655596
    %v3123 = vmul.f32 %v3120, %v3122
    %v3124 = vadd.f32 %v3123, -0.4999988
    %v3125 = vmul.f32 %v3120, %v3124
    %v3126 = vadd.f32 1.0, %v3125
    %v3127 = vmul.f32 %v3118, %v3118
    %v3128 = vmul.f32 %v3127, -0.00019511016
    %v3129 = vadd.f32 %v3128, 0.008332121
    %v3130 = vmul.f32 %v3127, %v3129
    %v3131 = vadd.f32 %v3130, -0.16666654
    %v3132 = vmul.f32 %v3127, %v3131
    %v3133 = vadd.f32 %v3132, 1.0
    %v3134 = vmul.f32 %v3133, %v3118
    %vm3135 = vweird.f32 %v512
    %v3136 = vadd.s32 %v3119, 3
    %v3137 = vand.u32 %v3136, 3
    %vm3138 = vcmp.lt.s32.totalorder %v3137, 2
    %vm3139 = vcmp.eq.s32.totalorder %v3137, 0
    %v3140 = vxor.u32 %v3134, 2147483648
    %v3141 = vsel %vm3139, %v3126, %v3140
    %vm3142 = vcmp.eq.s32.totalorder %v3137, 2
    %v3143 = vxor.u32 %v3126, 2147483648
    %v3144 = vsel %vm3142, %v3143, %v3134
    %v3145 = vsel %vm3138, %v3141, %v3144
    %v3146 = vsel %vm3135, nan, %v3145
    %v3147 = vand.u32 2147483647, %v513
    %vm3148 = vcmp.le.f32.partialorder %v3147, 0.7853982
    %vm3149 = vcmp.lt.s32.totalorder %v513, 0
    %v3150 = vand.u32 %v513, 2139095040
    %v3151 = vshrl.u32 %v3150, 23
    %v3152 = vsub.s32 %v3151, 127
    %v3153 = vand.u32 2147483647, %v513
    %v3154 = vand.u32 %v3153, 8388607
    %v3155 = vor.u32 %v3154, 8388608
    %v3156 = vsub.s32 0, %v3155
    %v3157 = vadd.s32 %v3152, 1
    %vm3158 = vcmp.gt.s32.totalorder %v3157, 0
    %v3159 = vsel %vm3158, %v3157, 0
    %v3160 = vshrl.u32 %v3159, 5
    %v3161 = vand.u32 %v3159, 31
    %v3162 = vsub.s32 32, %v3161
    %v3163 = vshrl.u32 683565275, %v3162
    %v3164 = vshll.u32 683565275, %v3161
    %v3165 = vshrl.u32 2475754826, %v3162
    %v3166 = vor.u32 %v3164, %v3165
    %v3167 = vshll.u32 2475754826, %v3161
    %v3168 = vshrl.u32 2131351028, %v3162
    %v3169 = vor.u32 %v3167, %v3168
    %v3170 = vshll.u32 2131351028, %v3161
    %v3171 = vshrl.u32 2102212464, %v3162
    %v3172 = vor.u32 %v3170, %v3171
    %v3173 = vshll.u32 2102212464, %v3161
    %v3174 = vshrl.u32 920167782, %v3162
    %v3175 = vor.u32 %v3173, %v3174
    %v3176 = vshll.u32 920167782, %v3161
    %v3177 = vshrl.u32 1326507024, %v3162
    %v3178 = vor.u32 %v3176, %v3177
    %vm3179 = vcmp.lt.s32.totalorder %v3160, 1
    %vm3180 = vcmp.lt.s32.totalorder %v3160, 2
    %vm3181 = vcmp.lt.s32.totalorder %v3160, 3
    %vm3182 = vcmp.lt.s32.totalorder %v3160, 4
    %v3183 = vsel %vm3179, %v3163, %v3166
    %v3184 = vsel %vm3182, %v3172, 2102212464
    %v3185 = vsel %vm3181, %v3169, %v3184
    %v3186 = vsel %vm3180, %v3183, %v3185
    %v3187 = vsel %vm3179, %v3166, %v3169
    %v3188 = vsel %vm3182, %v3175, 920167782
    %v3189 = vsel %vm3181, %v3172, %v3188
    %v3190 = vsel %vm3180, %v3187, %v3189
    %v3191 = vsel %vm3179, %v3169, %v3172
    %v3192 = vsel %vm3182, %v3178, 1326507024
    %v3193 = vsel %vm3181, %v3175, %v3192
    %v3194 = vsel %vm3180, %v3191, %v3193
    %v3195 = vshll.u32 %v3155, 8
    %v3196 = vand.u32 %v3195, 65535
    %v3197 = vshrl.u32 %v3195, 16
    %v3198 = vand.u32 %v3194, 65535
    %v3199 = vshrl.u32 %v3194, 16
    %v3200 = vmul.u32 %v3196, %v3198
    %v3201 = vmul.u32 %v3196, %v3199
    %v3202 = vmul.u32 %v3197, %v3198
    %v3203 = vmul.u32 %v3197, %v3199
    %v3204 = vshll.u32 %v3201, 16
    %v3205 = vshrl.u32 %v3201, 16
    %v3206 = vshll.u32 %v3202, 16
    %v3207 = vshrl.u32 %v3202, 16
    %vm3208 = vc.u32 %v3200, %v3204
    %v3209 = vsel %vm3208, 1, 0
    %v3210 = vadd.s32 %v3200, %v3204
    %v3211 = vadd.s32 %v3203, %v3209
    %vm3212 = vc.u32 %v3210, %v3206
    %v3213 = vsel %vm3212, 1, 0
    %v3214 = vadd.s32 %v3210, %v3206
    %v3215 = vadd.s32 %v3211, %v3213
    %v3216 = vadd.s32 %v3215, %v3205
    %v3217 = vadd.s32 %v3216, %v3207
    %v3218 = vand.u32 %v3195, 65535
    %v3219 = vshrl.u32 %v3195, 16
    %v3220 = vand.u32 %v3190, 65535
    %v3221 = vshrl.u32 %v3190, 16
    %v3222 = vmul.u32 %v3218, %v3220
    %v3223 = vmul.u32 %v3218, %v3221
    %v3224 = vmul.u32 %v3219, %v3220
    %v3225 = vmul.u32 %v3219, %v3221
    %v3226 = vshll.u32 %v3223, 16
    %v3227 = vshrl.u32 %v3223, 16
    %v3228 = vshll.u32 %v3224, 16
    %v3229 = vshrl.u32 %v3224, 16
    %vm3230 = vc.u32 %v3222, %v3226
    %v3231 = vsel %vm3230, 1, 0
    %v3232 = vadd.s32 %v3222, %v3226
    %v3233 = vadd.s32 %v3225, %v3231
    %vm3234 = vc.u32 %v3232, %v3228
    %v3235 = vsel %vm3234, 1, 0
    %v3236 = vadd.s32 %v3232, %v3228
    %v3237 = vadd.s32 %v3233, %v3235
    %v3238 = vadd.s32 %v3237, %v3227
    %v3239 = vadd.s32 %v3238, %v3229
    %v3240 = vmul.u32 %v3195, %v3186
    %v3241 = vadd.s32 %v3217, %v3236
    %vm3242 = vc.u32 %v3217, %v3236
    %v3243 = vadd.s32 %v3239, 1
    %v3244 = vsel %vm3242, %v3243, %v3239
    %v3245 = vadd.s32 %v3240, %v3244
    %v3246 = vadd.s32 %v3245, 536870912
    %v3247 = vshrl.u32 %v3246, 30
    %v3248 = vshll.u32 %v3247, 30
    %v3249 = vsub.s32 %v3245, %v3248
    %vm3250 = vcmp.lt.s32.totalorder %v3249, 0
    %v3251 = vsub.s32 0, %v3249
    %v3252 = vsel %vm3250, %v3251, %v3249
    %v3253 = vclz %v3252
    %v3254 = vsub.s32 %v3253, 2
    %vm3255 = vcmp.gt.s32.totalorder 0, %v3254
    %v3256 = vsel %vm3255, 0, %v3254
    %v3257 = vsub.s32 32, %v3256
    %v3258 = vshll.u32 %v3249, %v3256
    %v3259 = vshrl.u32 %v3241, %v3257
    %v3260 = vor.u32 %v3258, %v3259
    %v3261 = vsub.s32 4294967266, %v3256
    %v3262 = vadd.s32 %v3261, 127
    %v3263 = vshll.u32 %v3262, 23
    %v3264 = vor.u32 4788187, %v3263
    %v3265 = vand.u32 2147483647, %v3264
    %v3267 = vcvt.s32.f32 %v3260
    %v3268 = vmul.f32 %v3267, %v3265
    %v3269 = vxor.u32 %v3268, 2147483648
    %v3270 = vsel %vm3149, %v3269, %v3268
    %v3271 = vsub.s32 4, %v3247
    %v3272 = vsel %vm3149, %v3271, %v3247
    %v3273 = vsel %vm3148, %v513, %v3270
    %v3274 = vsel %vm3148, 0, %v3272
    %v3275 = vmul.f32 %v3273, %v3273
    %v3276 = vmul.f32 %v3275, -0.001358992
    %v3277 = vadd.f32 %v3276, 0.041655596
    %v3278 = vmul.f32 %v3275, %v3277
    %v3279 = vadd.f32 %v3278, -0.4999988
    %v3280 = vmul.f32 %v3275, %v3279
    %v3281 = vadd.f32 1.0, %v3280
    %v3282 = vmul.f32 %v3273, %v3273
    %v3283 = vmul.f32 %v3282, -0.00019511016
    %v3284 = vadd.f32 %v3283, 0.008332121
    %v3285 = vmul.f32 %v3282, %v3284
    %v3286 = vadd.f32 %v3285, -0.16666654
    %v3287 = vmul.f32 %v3282, %v3286
    %v3288 = vadd.f32 %v3287, 1.0
    %v3289 = vmul.f32 %v3288, %v3273
    %vm3290 = vweird.f32 %v513
    %v3291 = vadd.s32 %v3274, 3
    %v3292 = vand.u32 %v3291, 3
    %vm3293 = vcmp.lt.s32.totalorder %v3292, 2
    %vm3294 = vcmp.eq.s32.totalorder %v3292, 0
    %v3295 = vxor.u32 %v3289, 2147483648
    %v3296 = vsel %vm3294, %v3281, %v3295
    %vm3297 = vcmp.eq.s32.totalorder %v3292, 2
    %v3298 = vxor.u32 %v3281, 2147483648
    %v3299 = vsel %vm3297, %v3298, %v3289
    %v3300 = vsel %vm3293, %v3296, %v3299
    %v3301 = vsel %vm3290, nan, %v3300
    %v3302 = vand.u32 2147483647, %v514
    %vm3303 = vcmp.le.f32.partialorder %v3302, 0.7853982
    %vm3304 = vcmp.lt.s32.totalorder %v514, 0
    %v3305 = vand.u32 %v514, 2139095040
    %v3306 = vshrl.u32 %v3305, 23
    %v3307 = vsub.s32 %v3306, 127
    %v3308 = vand.u32 2147483647, %v514
    %v3309 = vand.u32 %v3308, 8388607
    %v3310 = vor.u32 %v3309, 8388608
    %v3311 = vsub.s32 0, %v3310
    %v3312 = vadd.s32 %v3307, 1
    %vm3313 = vcmp.gt.s32.totalorder %v3312, 0
    %v3314 = vsel %vm3313, %v3312, 0
    %v3315 = vshrl.u32 %v3314, 5
    %v3316 = vand.u32 %v3314, 31
    %v3317 = vsub.s32 32, %v3316
    %v3318 = vshrl.u32 683565275, %v3317
    %v3319 = vshll.u32 683565275, %v3316
    %v3320 = vshrl.u32 2475754826, %v3317
    %v3321 = vor.u32 %v3319, %v3320
    %v3322 = vshll.u32 2475754826, %v3316
    %v3323 = vshrl.u32 2131351028, %v3317
    %v3324 = vor.u32 %v3322, %v3323
    %v3325 = vshll.u32 2131351028, %v3316
    %v3326 = vshrl.u32 2102212464, %v3317
    %v3327 = vor.u32 %v3325, %v3326
    %v3328 = vshll.u32 2102212464, %v3316
    %v3329 = vshrl.u32 920167782, %v3317
    %v3330 = vor.u32 %v3328, %v3329
    %v3331 = vshll.u32 920167782, %v3316
    %v3332 = vshrl.u32 1326507024, %v3317
    %v3333 = vor.u32 %v3331, %v3332
    %vm3334 = vcmp.lt.s32.totalorder %v3315, 1
    %vm3335 = vcmp.lt.s32.totalorder %v3315, 2
    %vm3336 = vcmp.lt.s32.totalorder %v3315, 3
    %vm3337 = vcmp.lt.s32.totalorder %v3315, 4
    %v3338 = vsel %vm3334, %v3318, %v3321
    %v3339 = vsel %vm3337, %v3327, 2102212464
    %v3340 = vsel %vm3336, %v3324, %v3339
    %v3341 = vsel %vm3335, %v3338, %v3340
    %v3342 = vsel %vm3334, %v3321, %v3324
    %v3343 = vsel %vm3337, %v3330, 920167782
    %v3344 = vsel %vm3336, %v3327, %v3343
    %v3345 = vsel %vm3335, %v3342, %v3344
    %v3346 = vsel %vm3334, %v3324, %v3327
    %v3347 = vsel %vm3337, %v3333, 1326507024
    %v3348 = vsel %vm3336, %v3330, %v3347
    %v3349 = vsel %vm3335, %v3346, %v3348
    %v3350 = vshll.u32 %v3310, 8
    %v3351 = vand.u32 %v3350, 65535
    %v3352 = vshrl.u32 %v3350, 16
    %v3353 = vand.u32 %v3349, 65535
    %v3354 = vshrl.u32 %v3349, 16
    %v3355 = vmul.u32 %v3351, %v3353
    %v3356 = vmul.u32 %v3351, %v3354
    %v3357 = vmul.u32 %v3352, %v3353
    %v3358 = vmul.u32 %v3352, %v3354
    %v3359 = vshll.u32 %v3356, 16
    %v3360 = vshrl.u32 %v3356, 16
    %v3361 = vshll.u32 %v3357, 16
    %v3362 = vshrl.u32 %v3357, 16
    %vm3363 = vc.u32 %v3355, %v3359
    %v3364 = vsel %vm3363, 1, 0
    %v3365 = vadd.s32 %v3355, %v3359
    %v3366 = vadd.s32 %v3358, %v3364
    %vm3367 = vc.u32 %v3365, %v3361
    %v3368 = vsel %vm3367, 1, 0
    %v3369 = vadd.s32 %v3365, %v3361
    %v3370 = vadd.s32 %v3366, %v3368
    %v3371 = vadd.s32 %v3370, %v3360
    %v3372 = vadd.s32 %v3371, %v3362
    %v3373 = vand.u32 %v3350, 65535
    %v3374 = vshrl.u32 %v3350, 16
    %v3375 = vand.u32 %v3345, 65535
    %v3376 = vshrl.u32 %v3345, 16
    %v3377 = vmul.u32 %v3373, %v3375
    %v3378 = vmul.u32 %v3373, %v3376
    %v3379 = vmul.u32 %v3374, %v3375
    %v3380 = vmul.u32 %v3374, %v3376
    %v3381 = vshll.u32 %v3378, 16
    %v3382 = vshrl.u32 %v3378, 16
    %v3383 = vshll.u32 %v3379, 16
    %v3384 = vshrl.u32 %v3379, 16
    %vm3385 = vc.u32 %v3377, %v3381
    %v3386 = vsel %vm3385, 1, 0
    %v3387 = vadd.s32 %v3377, %v3381
    %v3388 = vadd.s32 %v3380, %v3386
    %vm3389 = vc.u32 %v3387, %v3383
    %v3390 = vsel %vm3389, 1, 0
    %v3391 = vadd.s32 %v3387, %v3383
    %v3392 = vadd.s32 %v3388, %v3390
    %v3393 = vadd.s32 %v3392, %v3382
    %v3394 = vadd.s32 %v3393, %v3384
    %v3395 = vmul.u32 %v3350, %v3341
    %v3396 = vadd.s32 %v3372, %v3391
    %vm3397 = vc.u32 %v3372, %v3391
    %v3398 = vadd.s32 %v3394, 1
    %v3399 = vsel %vm3397, %v3398, %v3394
    %v3400 = vadd.s32 %v3395, %v3399
    %v3401 = vadd.s32 %v3400, 536870912
    %v3402 = vshrl.u32 %v3401, 30
    %v3403 = vshll.u32 %v3402, 30
    %v3404 = vsub.s32 %v3400, %v3403
    %vm3405 = vcmp.lt.s32.totalorder %v3404, 0
    %v3406 = vsub.s32 0, %v3404
    %v3407 = vsel %vm3405, %v3406, %v3404
    %v3408 = vclz %v3407
    %v3409 = vsub.s32 %v3408, 2
    %vm3410 = vcmp.gt.s32.totalorder 0, %v3409
    %v3411 = vsel %vm3410, 0, %v3409
    %v3412 = vsub.s32 32, %v3411
    %v3413 = vshll.u32 %v3404, %v3411
    %v3414 = vshrl.u32 %v3396, %v3412
    %v3415 = vor.u32 %v3413, %v3414
    %v3416 = vsub.s32 4294967266, %v3411
    %v3417 = vadd.s32 %v3416, 127
    %v3418 = vshll.u32 %v3417, 23
    %v3419 = vor.u32 4788187, %v3418
    %v3420 = vand.u32 2147483647, %v3419
    %v3422 = vcvt.s32.f32 %v3415
    %v3423 = vmul.f32 %v3422, %v3420
    %v3424 = vxor.u32 %v3423, 2147483648
    %v3425 = vsel %vm3304, %v3424, %v3423
    %v3426 = vsub.s32 4, %v3402
    %v3427 = vsel %vm3304, %v3426, %v3402
    %v3428 = vsel %vm3303, %v514, %v3425
    %v3429 = vsel %vm3303, 0, %v3427
    %v3430 = vmul.f32 %v3428, %v3428
    %v3431 = vmul.f32 %v3430, -0.001358992
    %v3432 = vadd.f32 %v3431, 0.041655596
    %v3433 = vmul.f32 %v3430, %v3432
    %v3434 = vadd.f32 %v3433, -0.4999988
    %v3435 = vmul.f32 %v3430, %v3434
    %v3436 = vadd.f32 1.0, %v3435
    %v3437 = vmul.f32 %v3428, %v3428
    %v3438 = vmul.f32 %v3437, -0.00019511016
    %v3439 = vadd.f32 %v3438, 0.008332121
    %v3440 = vmul.f32 %v3437, %v3439
    %v3441 = vadd.f32 %v3440, -0.16666654
    %v3442 = vmul.f32 %v3437, %v3441
    %v3443 = vadd.f32 %v3442, 1.0
    %v3444 = vmul.f32 %v3443, %v3428
    %vm3445 = vweird.f32 %v514
    %v3446 = vadd.s32 %v3429, 3
    %v3447 = vand.u32 %v3446, 3
    %vm3448 = vcmp.lt.s32.totalorder %v3447, 2
    %vm3449 = vcmp.eq.s32.totalorder %v3447, 0
    %v3450 = vxor.u32 %v3444, 2147483648
    %v3451 = vsel %vm3449, %v3436, %v3450
    %vm3452 = vcmp.eq.s32.totalorder %v3447, 2
    %v3453 = vxor.u32 %v3436, 2147483648
    %v3454 = vsel %vm3452, %v3453, %v3444
    %v3455 = vsel %vm3448, %v3451, %v3454
    %v3456 = vsel %vm3445, nan, %v3455
    %v3457 = vand.u32 2147483647, %v515
    %vm3458 = vcmp.le.f32.partialorder %v3457, 0.7853982
    %vm3459 = vcmp.lt.s32.totalorder %v515, 0
    %v3460 = vand.u32 %v515, 2139095040
    %v3461 = vshrl.u32 %v3460, 23
    %v3462 = vsub.s32 %v3461, 127
    %v3463 = vand.u32 2147483647, %v515
    %v3464 = vand.u32 %v3463, 8388607
    %v3465 = vor.u32 %v3464, 8388608
    %v3466 = vsub.s32 0, %v3465
    %v3467 = vadd.s32 %v3462, 1
    %vm3468 = vcmp.gt.s32.totalorder %v3467, 0
    %v3469 = vsel %vm3468, %v3467, 0
    %v3470 = vshrl.u32 %v3469, 5
    %v3471 = vand.u32 %v3469, 31
    %v3472 = vsub.s32 32, %v3471
    %v3473 = vshrl.u32 683565275, %v3472
    %v3474 = vshll.u32 683565275, %v3471
    %v3475 = vshrl.u32 2475754826, %v3472
    %v3476 = vor.u32 %v3474, %v3475
    %v3477 = vshll.u32 2475754826, %v3471
    %v3478 = vshrl.u32 2131351028, %v3472
    %v3479 = vor.u32 %v3477, %v3478
    %v3480 = vshll.u32 2131351028, %v3471
    %v3481 = vshrl.u32 2102212464, %v3472
    %v3482 = vor.u32 %v3480, %v3481
    %v3483 = vshll.u32 2102212464, %v3471
    %v3484 = vshrl.u32 920167782, %v3472
    %v3485 = vor.u32 %v3483, %v3484
    %v3486 = vshll.u32 920167782, %v3471
    %v3487 = vshrl.u32 1326507024, %v3472
    %v3488 = vor.u32 %v3486, %v3487
    %vm3489 = vcmp.lt.s32.totalorder %v3470, 1
    %vm3490 = vcmp.lt.s32.totalorder %v3470, 2
    %vm3491 = vcmp.lt.s32.totalorder %v3470, 3
    %vm3492 = vcmp.lt.s32.totalorder %v3470, 4
    %v3493 = vsel %vm3489, %v3473, %v3476
    %v3494 = vsel %vm3492, %v3482, 2102212464
    %v3495 = vsel %vm3491, %v3479, %v3494
    %v3496 = vsel %vm3490, %v3493, %v3495
    %v3497 = vsel %vm3489, %v3476, %v3479
    %v3498 = vsel %vm3492, %v3485, 920167782
    %v3499 = vsel %vm3491, %v3482, %v3498
    %v3500 = vsel %vm3490, %v3497, %v3499
    %v3501 = vsel %vm3489, %v3479, %v3482
    %v3502 = vsel %vm3492, %v3488, 1326507024
    %v3503 = vsel %vm3491, %v3485, %v3502
    %v3504 = vsel %vm3490, %v3501, %v3503
    %v3505 = vshll.u32 %v3465, 8
    %v3506 = vand.u32 %v3505, 65535
    %v3507 = vshrl.u32 %v3505, 16
    %v3508 = vand.u32 %v3504, 65535
    %v3509 = vshrl.u32 %v3504, 16
    %v3510 = vmul.u32 %v3506, %v3508
    %v3511 = vmul.u32 %v3506, %v3509
    %v3512 = vmul.u32 %v3507, %v3508
    %v3513 = vmul.u32 %v3507, %v3509
    %v3514 = vshll.u32 %v3511, 16
    %v3515 = vshrl.u32 %v3511, 16
    %v3516 = vshll.u32 %v3512, 16
    %v3517 = vshrl.u32 %v3512, 16
    %vm3518 = vc.u32 %v3510, %v3514
    %v3519 = vsel %vm3518, 1, 0
    %v3520 = vadd.s32 %v3510, %v3514
    %v3521 = vadd.s32 %v3513, %v3519
    %vm3522 = vc.u32 %v3520, %v3516
    %v3523 = vsel %vm3522, 1, 0
    %v3524 = vadd.s32 %v3520, %v3516
    %v3525 = vadd.s32 %v3521, %v3523
    %v3526 = vadd.s32 %v3525, %v3515
    %v3527 = vadd.s32 %v3526, %v3517
    %v3528 = vand.u32 %v3505, 65535
    %v3529 = vshrl.u32 %v3505, 16
    %v3530 = vand.u32 %v3500, 65535
    %v3531 = vshrl.u32 %v3500, 16
    %v3532 = vmul.u32 %v3528, %v3530
    %v3533 = vmul.u32 %v3528, %v3531
    %v3534 = vmul.u32 %v3529, %v3530
    %v3535 = vmul.u32 %v3529, %v3531
    %v3536 = vshll.u32 %v3533, 16
    %v3537 = vshrl.u32 %v3533, 16
    %v3538 = vshll.u32 %v3534, 16
    %v3539 = vshrl.u32 %v3534, 16
    %vm3540 = vc.u32 %v3532, %v3536
    %v3541 = vsel %vm3540, 1, 0
    %v3542 = vadd.s32 %v3532, %v3536
    %v3543 = vadd.s32 %v3535, %v3541
    %vm3544 = vc.u32 %v3542, %v3538
    %v3545 = vsel %vm3544, 1, 0
    %v3546 = vadd.s32 %v3542, %v3538
    %v3547 = vadd.s32 %v3543, %v3545
    %v3548 = vadd.s32 %v3547, %v3537
    %v3549 = vadd.s32 %v3548, %v3539
    %v3550 = vmul.u32 %v3505, %v3496
    %v3551 = vadd.s32 %v3527, %v3546
    %vm3552 = vc.u32 %v3527, %v3546
    %v3553 = vadd.s32 %v3549, 1
    %v3554 = vsel %vm3552, %v3553, %v3549
    %v3555 = vadd.s32 %v3550, %v3554
    %v3556 = vadd.s32 %v3555, 536870912
    %v3557 = vshrl.u32 %v3556, 30
    %v3558 = vshll.u32 %v3557, 30
    %v3559 = vsub.s32 %v3555, %v3558
    %vm3560 = vcmp.lt.s32.totalorder %v3559, 0
    %v3561 = vsub.s32 0, %v3559
    %v3562 = vsel %vm3560, %v3561, %v3559
    %v3563 = vclz %v3562
    %v3564 = vsub.s32 %v3563, 2
    %vm3565 = vcmp.gt.s32.totalorder 0, %v3564
    %v3566 = vsel %vm3565, 0, %v3564
    %v3567 = vsub.s32 32, %v3566
    %v3568 = vshll.u32 %v3559, %v3566
    %v3569 = vshrl.u32 %v3551, %v3567
    %v3570 = vor.u32 %v3568, %v3569
    %v3571 = vsub.s32 4294967266, %v3566
    %v3572 = vadd.s32 %v3571, 127
    %v3573 = vshll.u32 %v3572, 23
    %v3574 = vor.u32 4788187, %v3573
    %v3575 = vand.u32 2147483647, %v3574
    %v3577 = vcvt.s32.f32 %v3570
    %v3578 = vmul.f32 %v3577, %v3575
    %v3579 = vxor.u32 %v3578, 2147483648
    %v3580 = vsel %vm3459, %v3579, %v3578
    %v3581 = vsub.s32 4, %v3557
    %v3582 = vsel %vm3459, %v3581, %v3557
    %v3583 = vsel %vm3458, %v515, %v3580
    %v3584 = vsel %vm3458, 0, %v3582
    %v3585 = vmul.f32 %v3583, %v3583
    %v3586 = vmul.f32 %v3585, -0.001358992
    %v3587 = vadd.f32 %v3586, 0.041655596
    %v3588 = vmul.f32 %v3585, %v3587
    %v3589 = vadd.f32 %v3588, -0.4999988
    %v3590 = vmul.f32 %v3585, %v3589
    %v3591 = vadd.f32 1.0, %v3590
    %v3592 = vmul.f32 %v3583, %v3583
    %v3593 = vmul.f32 %v3592, -0.00019511016
    %v3594 = vadd.f32 %v3593, 0.008332121
    %v3595 = vmul.f32 %v3592, %v3594
    %v3596 = vadd.f32 %v3595, -0.16666654
    %v3597 = vmul.f32 %v3592, %v3596
    %v3598 = vadd.f32 %v3597, 1.0
    %v3599 = vmul.f32 %v3598, %v3583
    %vm3600 = vweird.f32 %v515
    %v3601 = vadd.s32 %v3584, 3
    %v3602 = vand.u32 %v3601, 3
    %vm3603 = vcmp.lt.s32.totalorder %v3602, 2
    %vm3604 = vcmp.eq.s32.totalorder %v3602, 0
    %v3605 = vxor.u32 %v3599, 2147483648
    %v3606 = vsel %vm3604, %v3591, %v3605
    %vm3607 = vcmp.eq.s32.totalorder %v3602, 2
    %v3608 = vxor.u32 %v3591, 2147483648
    %v3609 = vsel %vm3607, %v3608, %v3599
    %v3610 = vsel %vm3603, %v3606, %v3609
    %v3611 = vsel %vm3600, nan, %v3610
    %v3612 = vand.u32 2147483647, %v516
    %vm3613 = vcmp.le.f32.partialorder %v3612, 0.7853982
    %vm3614 = vcmp.lt.s32.totalorder %v516, 0
    %v3615 = vand.u32 %v516, 2139095040
    %v3616 = vshrl.u32 %v3615, 23
    %v3617 = vsub.s32 %v3616, 127
    %v3618 = vand.u32 2147483647, %v516
    %v3619 = vand.u32 %v3618, 8388607
    %v3620 = vor.u32 %v3619, 8388608
    %v3621 = vsub.s32 0, %v3620
    %v3622 = vadd.s32 %v3617, 1
    %vm3623 = vcmp.gt.s32.totalorder %v3622, 0
    %v3624 = vsel %vm3623, %v3622, 0
    %v3625 = vshrl.u32 %v3624, 5
    %v3626 = vand.u32 %v3624, 31
    %v3627 = vsub.s32 32, %v3626
    %v3628 = vshrl.u32 683565275, %v3627
    %v3629 = vshll.u32 683565275, %v3626
    %v3630 = vshrl.u32 2475754826, %v3627
    %v3631 = vor.u32 %v3629, %v3630
    %v3632 = vshll.u32 2475754826, %v3626
    %v3633 = vshrl.u32 2131351028, %v3627
    %v3634 = vor.u32 %v3632, %v3633
    %v3635 = vshll.u32 2131351028, %v3626
    %v3636 = vshrl.u32 2102212464, %v3627
    %v3637 = vor.u32 %v3635, %v3636
    %v3638 = vshll.u32 2102212464, %v3626
    %v3639 = vshrl.u32 920167782, %v3627
    %v3640 = vor.u32 %v3638, %v3639
    %v3641 = vshll.u32 920167782, %v3626
    %v3642 = vshrl.u32 1326507024, %v3627
    %v3643 = vor.u32 %v3641, %v3642
    %vm3644 = vcmp.lt.s32.totalorder %v3625, 1
    %vm3645 = vcmp.lt.s32.totalorder %v3625, 2
    %vm3646 = vcmp.lt.s32.totalorder %v3625, 3
    %vm3647 = vcmp.lt.s32.totalorder %v3625, 4
    %v3648 = vsel %vm3644, %v3628, %v3631
    %v3649 = vsel %vm3647, %v3637, 2102212464
    %v3650 = vsel %vm3646, %v3634, %v3649
    %v3651 = vsel %vm3645, %v3648, %v3650
    %v3652 = vsel %vm3644, %v3631, %v3634
    %v3653 = vsel %vm3647, %v3640, 920167782
    %v3654 = vsel %vm3646, %v3637, %v3653
    %v3655 = vsel %vm3645, %v3652, %v3654
    %v3656 = vsel %vm3644, %v3634, %v3637
    %v3657 = vsel %vm3647, %v3643, 1326507024
    %v3658 = vsel %vm3646, %v3640, %v3657
    %v3659 = vsel %vm3645, %v3656, %v3658
    %v3660 = vshll.u32 %v3620, 8
    %v3661 = vand.u32 %v3660, 65535
    %v3662 = vshrl.u32 %v3660, 16
    %v3663 = vand.u32 %v3659, 65535
    %v3664 = vshrl.u32 %v3659, 16
    %v3665 = vmul.u32 %v3661, %v3663
    %v3666 = vmul.u32 %v3661, %v3664
    %v3667 = vmul.u32 %v3662, %v3663
    %v3668 = vmul.u32 %v3662, %v3664
    %v3669 = vshll.u32 %v3666, 16
    %v3670 = vshrl.u32 %v3666, 16
    %v3671 = vshll.u32 %v3667, 16
    %v3672 = vshrl.u32 %v3667, 16
    %vm3673 = vc.u32 %v3665, %v3669
    %v3674 = vsel %vm3673, 1, 0
    %v3675 = vadd.s32 %v3665, %v3669
    %v3676 = vadd.s32 %v3668, %v3674
    %vm3677 = vc.u32 %v3675, %v3671
    %v3678 = vsel %vm3677, 1, 0
    %v3679 = vadd.s32 %v3675, %v3671
    %v3680 = vadd.s32 %v3676, %v3678
    %v3681 = vadd.s32 %v3680, %v3670
    %v3682 = vadd.s32 %v3681, %v3672
    %v3683 = vand.u32 %v3660, 65535
    %v3684 = vshrl.u32 %v3660, 16
    %v3685 = vand.u32 %v3655, 65535
    %v3686 = vshrl.u32 %v3655, 16
    %v3687 = vmul.u32 %v3683, %v3685
    %v3688 = vmul.u32 %v3683, %v3686
    %v3689 = vmul.u32 %v3684, %v3685
    %v3690 = vmul.u32 %v3684, %v3686
    %v3691 = vshll.u32 %v3688, 16
    %v3692 = vshrl.u32 %v3688, 16
    %v3693 = vshll.u32 %v3689, 16
    %v3694 = vshrl.u32 %v3689, 16
    %vm3695 = vc.u32 %v3687, %v3691
    %v3696 = vsel %vm3695, 1, 0
    %v3697 = vadd.s32 %v3687, %v3691
    %v3698 = vadd.s32 %v3690, %v3696
    %vm3699 = vc.u32 %v3697, %v3693
    %v3700 = vsel %vm3699, 1, 0
    %v3701 = vadd.s32 %v3697, %v3693
    %v3702 = vadd.s32 %v3698, %v3700
    %v3703 = vadd.s32 %v3702, %v3692
    %v3704 = vadd.s32 %v3703, %v3694
    %v3705 = vmul.u32 %v3660, %v3651
    %v3706 = vadd.s32 %v3682, %v3701
    %vm3707 = vc.u32 %v3682, %v3701
    %v3708 = vadd.s32 %v3704, 1
    %v3709 = vsel %vm3707, %v3708, %v3704
    %v3710 = vadd.s32 %v3705, %v3709
    %v3711 = vadd.s32 %v3710, 536870912
    %v3712 = vshrl.u32 %v3711, 30
    %v3713 = vshll.u32 %v3712, 30
    %v3714 = vsub.s32 %v3710, %v3713
    %vm3715 = vcmp.lt.s32.totalorder %v3714, 0
    %v3716 = vsub.s32 0, %v3714
    %v3717 = vsel %vm3715, %v3716, %v3714
    %v3718 = vclz %v3717
    %v3719 = vsub.s32 %v3718, 2
    %vm3720 = vcmp.gt.s32.totalorder 0, %v3719
    %v3721 = vsel %vm3720, 0, %v3719
    %v3722 = vsub.s32 32, %v3721
    %v3723 = vshll.u32 %v3714, %v3721
    %v3724 = vshrl.u32 %v3706, %v3722
    %v3725 = vor.u32 %v3723, %v3724
    %v3726 = vsub.s32 4294967266, %v3721
    %v3727 = vadd.s32 %v3726, 127
    %v3728 = vshll.u32 %v3727, 23
    %v3729 = vor.u32 4788187, %v3728
    %v3730 = vand.u32 2147483647, %v3729
    %v3732 = vcvt.s32.f32 %v3725
    %v3733 = vmul.f32 %v3732, %v3730
    %v3734 = vxor.u32 %v3733, 2147483648
    %v3735 = vsel %vm3614, %v3734, %v3733
    %v3736 = vsub.s32 4, %v3712
    %v3737 = vsel %vm3614, %v3736, %v3712
    %v3738 = vsel %vm3613, %v516, %v3735
    %v3739 = vsel %vm3613, 0, %v3737
    %v3740 = vmul.f32 %v3738, %v3738
    %v3741 = vmul.f32 %v3740, -0.001358992
    %v3742 = vadd.f32 %v3741, 0.041655596
    %v3743 = vmul.f32 %v3740, %v3742
    %v3744 = vadd.f32 %v3743, -0.4999988
    %v3745 = vmul.f32 %v3740, %v3744
    %v3746 = vadd.f32 1.0, %v3745
    %v3747 = vmul.f32 %v3738, %v3738
    %v3748 = vmul.f32 %v3747, -0.00019511016
    %v3749 = vadd.f32 %v3748, 0.008332121
    %v3750 = vmul.f32 %v3747, %v3749
    %v3751 = vadd.f32 %v3750, -0.16666654
    %v3752 = vmul.f32 %v3747, %v3751
    %v3753 = vadd.f32 %v3752, 1.0
    %v3754 = vmul.f32 %v3753, %v3738
    %vm3755 = vweird.f32 %v516
    %v3756 = vadd.s32 %v3739, 3
    %v3757 = vand.u32 %v3756, 3
    %vm3758 = vcmp.lt.s32.totalorder %v3757, 2
    %vm3759 = vcmp.eq.s32.totalorder %v3757, 0
    %v3760 = vxor.u32 %v3754, 2147483648
    %v3761 = vsel %vm3759, %v3746, %v3760
    %vm3762 = vcmp.eq.s32.totalorder %v3757, 2
    %v3763 = vxor.u32 %v3746, 2147483648
    %v3764 = vsel %vm3762, %v3763, %v3754
    %v3765 = vsel %vm3758, %v3761, %v3764
    %v3766 = vsel %vm3755, nan, %v3765
    %v3767 = vand.u32 2147483647, %v517
    %vm3768 = vcmp.le.f32.partialorder %v3767, 0.7853982
    %vm3769 = vcmp.lt.s32.totalorder %v517, 0
    %v3770 = vand.u32 %v517, 2139095040
    %v3771 = vshrl.u32 %v3770, 23
    %v3772 = vsub.s32 %v3771, 127
    %v3773 = vand.u32 2147483647, %v517
    %v3774 = vand.u32 %v3773, 8388607
    %v3775 = vor.u32 %v3774, 8388608
    %v3776 = vsub.s32 0, %v3775
    %v3777 = vadd.s32 %v3772, 1
    %vm3778 = vcmp.gt.s32.totalorder %v3777, 0
    %v3779 = vsel %vm3778, %v3777, 0
    %v3780 = vshrl.u32 %v3779, 5
    %v3781 = vand.u32 %v3779, 31
    %v3782 = vsub.s32 32, %v3781
    %v3783 = vshrl.u32 683565275, %v3782
    %v3784 = vshll.u32 683565275, %v3781
    %v3785 = vshrl.u32 2475754826, %v3782
    %v3786 = vor.u32 %v3784, %v3785
    %v3787 = vshll.u32 2475754826, %v3781
    %v3788 = vshrl.u32 2131351028, %v3782
    %v3789 = vor.u32 %v3787, %v3788
    %v3790 = vshll.u32 2131351028, %v3781
    %v3791 = vshrl.u32 2102212464, %v3782
    %v3792 = vor.u32 %v3790, %v3791
    %v3793 = vshll.u32 2102212464, %v3781
    %v3794 = vshrl.u32 920167782, %v3782
    %v3795 = vor.u32 %v3793, %v3794
    %v3796 = vshll.u32 920167782, %v3781
    %v3797 = vshrl.u32 1326507024, %v3782
    %v3798 = vor.u32 %v3796, %v3797
    %vm3799 = vcmp.lt.s32.totalorder %v3780, 1
    %vm3800 = vcmp.lt.s32.totalorder %v3780, 2
    %vm3801 = vcmp.lt.s32.totalorder %v3780, 3
    %vm3802 = vcmp.lt.s32.totalorder %v3780, 4
    %v3803 = vsel %vm3799, %v3783, %v3786
    %v3804 = vsel %vm3802, %v3792, 2102212464
    %v3805 = vsel %vm3801, %v3789, %v3804
    %v3806 = vsel %vm3800, %v3803, %v3805
    %v3807 = vsel %vm3799, %v3786, %v3789
    %v3808 = vsel %vm3802, %v3795, 920167782
    %v3809 = vsel %vm3801, %v3792, %v3808
    %v3810 = vsel %vm3800, %v3807, %v3809
    %v3811 = vsel %vm3799, %v3789, %v3792
    %v3812 = vsel %vm3802, %v3798, 1326507024
    %v3813 = vsel %vm3801, %v3795, %v3812
    %v3814 = vsel %vm3800, %v3811, %v3813
    %v3815 = vshll.u32 %v3775, 8
    %v3816 = vand.u32 %v3815, 65535
    %v3817 = vshrl.u32 %v3815, 16
    %v3818 = vand.u32 %v3814, 65535
    %v3819 = vshrl.u32 %v3814, 16
    %v3820 = vmul.u32 %v3816, %v3818
    %v3821 = vmul.u32 %v3816, %v3819
    %v3822 = vmul.u32 %v3817, %v3818
    %v3823 = vmul.u32 %v3817, %v3819
    %v3824 = vshll.u32 %v3821, 16
    %v3825 = vshrl.u32 %v3821, 16
    %v3826 = vshll.u32 %v3822, 16
    %v3827 = vshrl.u32 %v3822, 16
    %vm3828 = vc.u32 %v3820, %v3824
    %v3829 = vsel %vm3828, 1, 0
    %v3830 = vadd.s32 %v3820, %v3824
    %v3831 = vadd.s32 %v3823, %v3829
    %vm3832 = vc.u32 %v3830, %v3826
    %v3833 = vsel %vm3832, 1, 0
    %v3834 = vadd.s32 %v3830, %v3826
    %v3835 = vadd.s32 %v3831, %v3833
    %v3836 = vadd.s32 %v3835, %v3825
    %v3837 = vadd.s32 %v3836, %v3827
    %v3838 = vand.u32 %v3815, 65535
    %v3839 = vshrl.u32 %v3815, 16
    %v3840 = vand.u32 %v3810, 65535
    %v3841 = vshrl.u32 %v3810, 16
    %v3842 = vmul.u32 %v3838, %v3840
    %v3843 = vmul.u32 %v3838, %v3841
    %v3844 = vmul.u32 %v3839, %v3840
    %v3845 = vmul.u32 %v3839, %v3841
    %v3846 = vshll.u32 %v3843, 16
    %v3847 = vshrl.u32 %v3843, 16
    %v3848 = vshll.u32 %v3844, 16
    %v3849 = vshrl.u32 %v3844, 16
    %vm3850 = vc.u32 %v3842, %v3846
    %v3851 = vsel %vm3850, 1, 0
    %v3852 = vadd.s32 %v3842, %v3846
    %v3853 = vadd.s32 %v3845, %v3851
    %vm3854 = vc.u32 %v3852, %v3848
    %v3855 = vsel %vm3854, 1, 0
    %v3856 = vadd.s32 %v3852, %v3848
    %v3857 = vadd.s32 %v3853, %v3855
    %v3858 = vadd.s32 %v3857, %v3847
    %v3859 = vadd.s32 %v3858, %v3849
    %v3860 = vmul.u32 %v3815, %v3806
    %v3861 = vadd.s32 %v3837, %v3856
    %vm3862 = vc.u32 %v3837, %v3856
    %v3863 = vadd.s32 %v3859, 1
    %v3864 = vsel %vm3862, %v3863, %v3859
    %v3865 = vadd.s32 %v3860, %v3864
    %v3866 = vadd.s32 %v3865, 536870912
    %v3867 = vshrl.u32 %v3866, 30
    %v3868 = vshll.u32 %v3867, 30
    %v3869 = vsub.s32 %v3865, %v3868
    %vm3870 = vcmp.lt.s32.totalorder %v3869, 0
    %v3871 = vsub.s32 0, %v3869
    %v3872 = vsel %vm3870, %v3871, %v3869
    %v3873 = vclz %v3872
    %v3874 = vsub.s32 %v3873, 2
    %vm3875 = vcmp.gt.s32.totalorder 0, %v3874
    %v3876 = vsel %vm3875, 0, %v3874
    %v3877 = vsub.s32 32, %v3876
    %v3878 = vshll.u32 %v3869, %v3876
    %v3879 = vshrl.u32 %v3861, %v3877
    %v3880 = vor.u32 %v3878, %v3879
    %v3881 = vsub.s32 4294967266, %v3876
    %v3882 = vadd.s32 %v3881, 127
    %v3883 = vshll.u32 %v3882, 23
    %v3884 = vor.u32 4788187, %v3883
    %v3885 = vand.u32 2147483647, %v3884
    %v3887 = vcvt.s32.f32 %v3880
    %v3888 = vmul.f32 %v3887, %v3885
    %v3889 = vxor.u32 %v3888, 2147483648
    %v3890 = vsel %vm3769, %v3889, %v3888
    %v3891 = vsub.s32 4, %v3867
    %v3892 = vsel %vm3769, %v3891, %v3867
    %v3893 = vsel %vm3768, %v517, %v3890
    %v3894 = vsel %vm3768, 0, %v3892
    %v3895 = vmul.f32 %v3893, %v3893
    %v3896 = vmul.f32 %v3895, -0.001358992
    %v3897 = vadd.f32 %v3896, 0.041655596
    %v3898 = vmul.f32 %v3895, %v3897
    %v3899 = vadd.f32 %v3898, -0.4999988
    %v3900 = vmul.f32 %v3895, %v3899
    %v3901 = vadd.f32 1.0, %v3900
    %v3902 = vmul.f32 %v3893, %v3893
    %v3903 = vmul.f32 %v3902, -0.00019511016
    %v3904 = vadd.f32 %v3903, 0.008332121
    %v3905 = vmul.f32 %v3902, %v3904
    %v3906 = vadd.f32 %v3905, -0.16666654
    %v3907 = vmul.f32 %v3902, %v3906
    %v3908 = vadd.f32 %v3907, 1.0
    %v3909 = vmul.f32 %v3908, %v3893
    %vm3910 = vweird.f32 %v517
    %v3911 = vadd.s32 %v3894, 3
    %v3912 = vand.u32 %v3911, 3
    %vm3913 = vcmp.lt.s32.totalorder %v3912, 2
    %vm3914 = vcmp.eq.s32.totalorder %v3912, 0
    %v3915 = vxor.u32 %v3909, 2147483648
    %v3916 = vsel %vm3914, %v3901, %v3915
    %vm3917 = vcmp.eq.s32.totalorder %v3912, 2
    %v3918 = vxor.u32 %v3901, 2147483648
    %v3919 = vsel %vm3917, %v3918, %v3909
    %v3920 = vsel %vm3913, %v3916, %v3919
    %v3921 = vsel %vm3910, nan, %v3920
    %v3922 = vand.u32 2147483647, %v518
    %vm3923 = vcmp.le.f32.partialorder %v3922, 0.7853982
    %vm3924 = vcmp.lt.s32.totalorder %v518, 0
    %v3925 = vand.u32 %v518, 2139095040
    %v3926 = vshrl.u32 %v3925, 23
    %v3927 = vsub.s32 %v3926, 127
    %v3928 = vand.u32 2147483647, %v518
    %v3929 = vand.u32 %v3928, 8388607
    %v3930 = vor.u32 %v3929, 8388608
    %v3931 = vsub.s32 0, %v3930
    %v3932 = vadd.s32 %v3927, 1
    %vm3933 = vcmp.gt.s32.totalorder %v3932, 0
    %v3934 = vsel %vm3933, %v3932, 0
    %v3935 = vshrl.u32 %v3934, 5
    %v3936 = vand.u32 %v3934, 31
    %v3937 = vsub.s32 32, %v3936
    %v3938 = vshrl.u32 683565275, %v3937
    %v3939 = vshll.u32 683565275, %v3936
    %v3940 = vshrl.u32 2475754826, %v3937
    %v3941 = vor.u32 %v3939, %v3940
    %v3942 = vshll.u32 2475754826, %v3936
    %v3943 = vshrl.u32 2131351028, %v3937
    %v3944 = vor.u32 %v3942, %v3943
    %v3945 = vshll.u32 2131351028, %v3936
    %v3946 = vshrl.u32 2102212464, %v3937
    %v3947 = vor.u32 %v3945, %v3946
    %v3948 = vshll.u32 2102212464, %v3936
    %v3949 = vshrl.u32 920167782, %v3937
    %v3950 = vor.u32 %v3948, %v3949
    %v3951 = vshll.u32 920167782, %v3936
    %v3952 = vshrl.u32 1326507024, %v3937
    %v3953 = vor.u32 %v3951, %v3952
    %vm3954 = vcmp.lt.s32.totalorder %v3935, 1
    %vm3955 = vcmp.lt.s32.totalorder %v3935, 2
    %vm3956 = vcmp.lt.s32.totalorder %v3935, 3
    %vm3957 = vcmp.lt.s32.totalorder %v3935, 4
    %v3958 = vsel %vm3954, %v3938, %v3941
    %v3959 = vsel %vm3957, %v3947, 2102212464
    %v3960 = vsel %vm3956, %v3944, %v3959
    %v3961 = vsel %vm3955, %v3958, %v3960
    %v3962 = vsel %vm3954, %v3941, %v3944
    %v3963 = vsel %vm3957, %v3950, 920167782
    %v3964 = vsel %vm3956, %v3947, %v3963
    %v3965 = vsel %vm3955, %v3962, %v3964
    %v3966 = vsel %vm3954, %v3944, %v3947
    %v3967 = vsel %vm3957, %v3953, 1326507024
    %v3968 = vsel %vm3956, %v3950, %v3967
    %v3969 = vsel %vm3955, %v3966, %v3968
    %v3970 = vshll.u32 %v3930, 8
    %v3971 = vand.u32 %v3970, 65535
    %v3972 = vshrl.u32 %v3970, 16
    %v3973 = vand.u32 %v3969, 65535
    %v3974 = vshrl.u32 %v3969, 16
    %v3975 = vmul.u32 %v3971, %v3973
    %v3976 = vmul.u32 %v3971, %v3974
    %v3977 = vmul.u32 %v3972, %v3973
    %v3978 = vmul.u32 %v3972, %v3974
    %v3979 = vshll.u32 %v3976, 16
    %v3980 = vshrl.u32 %v3976, 16
    %v3981 = vshll.u32 %v3977, 16
    %v3982 = vshrl.u32 %v3977, 16
    %vm3983 = vc.u32 %v3975, %v3979
    %v3984 = vsel %vm3983, 1, 0
    %v3985 = vadd.s32 %v3975, %v3979
    %v3986 = vadd.s32 %v3978, %v3984
    %vm3987 = vc.u32 %v3985, %v3981
    %v3988 = vsel %vm3987, 1, 0
    %v3989 = vadd.s32 %v3985, %v3981
    %v3990 = vadd.s32 %v3986, %v3988
    %v3991 = vadd.s32 %v3990, %v3980
    %v3992 = vadd.s32 %v3991, %v3982
    %v3993 = vand.u32 %v3970, 65535
    %v3994 = vshrl.u32 %v3970, 16
    %v3995 = vand.u32 %v3965, 65535
    %v3996 = vshrl.u32 %v3965, 16
    %v3997 = vmul.u32 %v3993, %v3995
    %v3998 = vmul.u32 %v3993, %v3996
    %v3999 = vmul.u32 %v3994, %v3995
    %v4000 = vmul.u32 %v3994, %v3996
    %v4001 = vshll.u32 %v3998, 16
    %v4002 = vshrl.u32 %v3998, 16
    %v4003 = vshll.u32 %v3999, 16
    %v4004 = vshrl.u32 %v3999, 16
    %vm4005 = vc.u32 %v3997, %v4001
    %v4006 = vsel %vm4005, 1, 0
    %v4007 = vadd.s32 %v3997, %v4001
    %v4008 = vadd.s32 %v4000, %v4006
    %vm4009 = vc.u32 %v4007, %v4003
    %v4010 = vsel %vm4009, 1, 0
    %v4011 = vadd.s32 %v4007, %v4003
    %v4012 = vadd.s32 %v4008, %v4010
    %v4013 = vadd.s32 %v4012, %v4002
    %v4014 = vadd.s32 %v4013, %v4004
    %v4015 = vmul.u32 %v3970, %v3961
    %v4016 = vadd.s32 %v3992, %v4011
    %vm4017 = vc.u32 %v3992, %v4011
    %v4018 = vadd.s32 %v4014, 1
    %v4019 = vsel %vm4017, %v4018, %v4014
    %v4020 = vadd.s32 %v4015, %v4019
    %v4021 = vadd.s32 %v4020, 536870912
    %v4022 = vshrl.u32 %v4021, 30
    %v4023 = vshll.u32 %v4022, 30
    %v4024 = vsub.s32 %v4020, %v4023
    %vm4025 = vcmp.lt.s32.totalorder %v4024, 0
    %v4026 = vsub.s32 0, %v4024
    %v4027 = vsel %vm4025, %v4026, %v4024
    %v4028 = vclz %v4027
    %v4029 = vsub.s32 %v4028, 2
    %vm4030 = vcmp.gt.s32.totalorder 0, %v4029
    %v4031 = vsel %vm4030, 0, %v4029
    %v4032 = vsub.s32 32, %v4031
    %v4033 = vshll.u32 %v4024, %v4031
    %v4034 = vshrl.u32 %v4016, %v4032
    %v4035 = vor.u32 %v4033, %v4034
    %v4036 = vsub.s32 4294967266, %v4031
    %v4037 = vadd.s32 %v4036, 127
    %v4038 = vshll.u32 %v4037, 23
    %v4039 = vor.u32 4788187, %v4038
    %v4040 = vand.u32 2147483647, %v4039
    %v4042 = vcvt.s32.f32 %v4035
    %v4043 = vmul.f32 %v4042, %v4040
    %v4044 = vxor.u32 %v4043, 2147483648
    %v4045 = vsel %vm3924, %v4044, %v4043
    %v4046 = vsub.s32 4, %v4022
    %v4047 = vsel %vm3924, %v4046, %v4022
    %v4048 = vsel %vm3923, %v518, %v4045
    %v4049 = vsel %vm3923, 0, %v4047
    %v4050 = vmul.f32 %v4048, %v4048
    %v4051 = vmul.f32 %v4050, -0.001358992
    %v4052 = vadd.f32 %v4051, 0.041655596
    %v4053 = vmul.f32 %v4050, %v4052
    %v4054 = vadd.f32 %v4053, -0.4999988
    %v4055 = vmul.f32 %v4050, %v4054
    %v4056 = vadd.f32 1.0, %v4055
    %v4057 = vmul.f32 %v4048, %v4048
    %v4058 = vmul.f32 %v4057, -0.00019511016
    %v4059 = vadd.f32 %v4058, 0.008332121
    %v4060 = vmul.f32 %v4057, %v4059
    %v4061 = vadd.f32 %v4060, -0.16666654
    %v4062 = vmul.f32 %v4057, %v4061
    %v4063 = vadd.f32 %v4062, 1.0
    %v4064 = vmul.f32 %v4063, %v4048
    %vm4065 = vweird.f32 %v518
    %v4066 = vadd.s32 %v4049, 3
    %v4067 = vand.u32 %v4066, 3
    %vm4068 = vcmp.lt.s32.totalorder %v4067, 2
    %vm4069 = vcmp.eq.s32.totalorder %v4067, 0
    %v4070 = vxor.u32 %v4064, 2147483648
    %v4071 = vsel %vm4069, %v4056, %v4070
    %vm4072 = vcmp.eq.s32.totalorder %v4067, 2
    %v4073 = vxor.u32 %v4056, 2147483648
    %v4074 = vsel %vm4072, %v4073, %v4064
    %v4075 = vsel %vm4068, %v4071, %v4074
    %v4076 = vsel %vm4065, nan, %v4075
    %v4077 = vand.u32 2147483647, %v519
    %vm4078 = vcmp.le.f32.partialorder %v4077, 0.7853982
    %vm4079 = vcmp.lt.s32.totalorder %v519, 0
    %v4080 = vand.u32 %v519, 2139095040
    %v4081 = vshrl.u32 %v4080, 23
    %v4082 = vsub.s32 %v4081, 127
    %v4083 = vand.u32 2147483647, %v519
    %v4084 = vand.u32 %v4083, 8388607
    %v4085 = vor.u32 %v4084, 8388608
    %v4086 = vsub.s32 0, %v4085
    %v4087 = vadd.s32 %v4082, 1
    %vm4088 = vcmp.gt.s32.totalorder %v4087, 0
    %v4089 = vsel %vm4088, %v4087, 0
    %v4090 = vshrl.u32 %v4089, 5
    %v4091 = vand.u32 %v4089, 31
    %v4092 = vsub.s32 32, %v4091
    %v4093 = vshrl.u32 683565275, %v4092
    %v4094 = vshll.u32 683565275, %v4091
    %v4095 = vshrl.u32 2475754826, %v4092
    %v4096 = vor.u32 %v4094, %v4095
    %v4097 = vshll.u32 2475754826, %v4091
    %v4098 = vshrl.u32 2131351028, %v4092
    %v4099 = vor.u32 %v4097, %v4098
    %v4100 = vshll.u32 2131351028, %v4091
    %v4101 = vshrl.u32 2102212464, %v4092
    %v4102 = vor.u32 %v4100, %v4101
    %v4103 = vshll.u32 2102212464, %v4091
    %v4104 = vshrl.u32 920167782, %v4092
    %v4105 = vor.u32 %v4103, %v4104
    %v4106 = vshll.u32 920167782, %v4091
    %v4107 = vshrl.u32 1326507024, %v4092
    %v4108 = vor.u32 %v4106, %v4107
    %vm4109 = vcmp.lt.s32.totalorder %v4090, 1
    %vm4110 = vcmp.lt.s32.totalorder %v4090, 2
    %vm4111 = vcmp.lt.s32.totalorder %v4090, 3
    %vm4112 = vcmp.lt.s32.totalorder %v4090, 4
    %v4113 = vsel %vm4109, %v4093, %v4096
    %v4114 = vsel %vm4112, %v4102, 2102212464
    %v4115 = vsel %vm4111, %v4099, %v4114
    %v4116 = vsel %vm4110, %v4113, %v4115
    %v4117 = vsel %vm4109, %v4096, %v4099
    %v4118 = vsel %vm4112, %v4105, 920167782
    %v4119 = vsel %vm4111, %v4102, %v4118
    %v4120 = vsel %vm4110, %v4117, %v4119
    %v4121 = vsel %vm4109, %v4099, %v4102
    %v4122 = vsel %vm4112, %v4108, 1326507024
    %v4123 = vsel %vm4111, %v4105, %v4122
    %v4124 = vsel %vm4110, %v4121, %v4123
    %v4125 = vshll.u32 %v4085, 8
    %v4126 = vand.u32 %v4125, 65535
    %v4127 = vshrl.u32 %v4125, 16
    %v4128 = vand.u32 %v4124, 65535
    %v4129 = vshrl.u32 %v4124, 16
    %v4130 = vmul.u32 %v4126, %v4128
    %v4131 = vmul.u32 %v4126, %v4129
    %v4132 = vmul.u32 %v4127, %v4128
    %v4133 = vmul.u32 %v4127, %v4129
    %v4134 = vshll.u32 %v4131, 16
    %v4135 = vshrl.u32 %v4131, 16
    %v4136 = vshll.u32 %v4132, 16
    %v4137 = vshrl.u32 %v4132, 16
    %vm4138 = vc.u32 %v4130, %v4134
    %v4139 = vsel %vm4138, 1, 0
    %v4140 = vadd.s32 %v4130, %v4134
    %v4141 = vadd.s32 %v4133, %v4139
    %vm4142 = vc.u32 %v4140, %v4136
    %v4143 = vsel %vm4142, 1, 0
    %v4144 = vadd.s32 %v4140, %v4136
    %v4145 = vadd.s32 %v4141, %v4143
    %v4146 = vadd.s32 %v4145, %v4135
    %v4147 = vadd.s32 %v4146, %v4137
    %v4148 = vand.u32 %v4125, 65535
    %v4149 = vshrl.u32 %v4125, 16
    %v4150 = vand.u32 %v4120, 65535
    %v4151 = vshrl.u32 %v4120, 16
    %v4152 = vmul.u32 %v4148, %v4150
    %v4153 = vmul.u32 %v4148, %v4151
    %v4154 = vmul.u32 %v4149, %v4150
    %v4155 = vmul.u32 %v4149, %v4151
    %v4156 = vshll.u32 %v4153, 16
    %v4157 = vshrl.u32 %v4153, 16
    %v4158 = vshll.u32 %v4154, 16
    %v4159 = vshrl.u32 %v4154, 16
    %vm4160 = vc.u32 %v4152, %v4156
    %v4161 = vsel %vm4160, 1, 0
    %v4162 = vadd.s32 %v4152, %v4156
    %v4163 = vadd.s32 %v4155, %v4161
    %vm4164 = vc.u32 %v4162, %v4158
    %v4165 = vsel %vm4164, 1, 0
    %v4166 = vadd.s32 %v4162, %v4158
    %v4167 = vadd.s32 %v4163, %v4165
    %v4168 = vadd.s32 %v4167, %v4157
    %v4169 = vadd.s32 %v4168, %v4159
    %v4170 = vmul.u32 %v4125, %v4116
    %v4171 = vadd.s32 %v4147, %v4166
    %vm4172 = vc.u32 %v4147, %v4166
    %v4173 = vadd.s32 %v4169, 1
    %v4174 = vsel %vm4172, %v4173, %v4169
    %v4175 = vadd.s32 %v4170, %v4174
    %v4176 = vadd.s32 %v4175, 536870912
    %v4177 = vshrl.u32 %v4176, 30
    %v4178 = vshll.u32 %v4177, 30
    %v4179 = vsub.s32 %v4175, %v4178
    %vm4180 = vcmp.lt.s32.totalorder %v4179, 0
    %v4181 = vsub.s32 0, %v4179
    %v4182 = vsel %vm4180, %v4181, %v4179
    %v4183 = vclz %v4182
    %v4184 = vsub.s32 %v4183, 2
    %vm4185 = vcmp.gt.s32.totalorder 0, %v4184
    %v4186 = vsel %vm4185, 0, %v4184
    %v4187 = vsub.s32 32, %v4186
    %v4188 = vshll.u32 %v4179, %v4186
    %v4189 = vshrl.u32 %v4171, %v4187
    %v4190 = vor.u32 %v4188, %v4189
    %v4191 = vsub.s32 4294967266, %v4186
    %v4192 = vadd.s32 %v4191, 127
    %v4193 = vshll.u32 %v4192, 23
    %v4194 = vor.u32 4788187, %v4193
    %v4195 = vand.u32 2147483647, %v4194
    %v4197 = vcvt.s32.f32 %v4190
    %v4198 = vmul.f32 %v4197, %v4195
    %v4199 = vxor.u32 %v4198, 2147483648
    %v4200 = vsel %vm4079, %v4199, %v4198
    %v4201 = vsub.s32 4, %v4177
    %v4202 = vsel %vm4079, %v4201, %v4177
    %v4203 = vsel %vm4078, %v519, %v4200
    %v4204 = vsel %vm4078, 0, %v4202
    %v4205 = vmul.f32 %v4203, %v4203
    %v4206 = vmul.f32 %v4205, -0.001358992
    %v4207 = vadd.f32 %v4206, 0.041655596
    %v4208 = vmul.f32 %v4205, %v4207
    %v4209 = vadd.f32 %v4208, -0.4999988
    %v4210 = vmul.f32 %v4205, %v4209
    %v4211 = vadd.f32 1.0, %v4210
    %v4212 = vmul.f32 %v4203, %v4203
    %v4213 = vmul.f32 %v4212, -0.00019511016
    %v4214 = vadd.f32 %v4213, 0.008332121
    %v4215 = vmul.f32 %v4212, %v4214
    %v4216 = vadd.f32 %v4215, -0.16666654
    %v4217 = vmul.f32 %v4212, %v4216
    %v4218 = vadd.f32 %v4217, 1.0
    %v4219 = vmul.f32 %v4218, %v4203
    %vm4220 = vweird.f32 %v519
    %v4221 = vadd.s32 %v4204, 3
    %v4222 = vand.u32 %v4221, 3
    %vm4223 = vcmp.lt.s32.totalorder %v4222, 2
    %vm4224 = vcmp.eq.s32.totalorder %v4222, 0
    %v4225 = vxor.u32 %v4219, 2147483648
    %v4226 = vsel %vm4224, %v4211, %v4225
    %vm4227 = vcmp.eq.s32.totalorder %v4222, 2
    %v4228 = vxor.u32 %v4211, 2147483648
    %v4229 = vsel %vm4227, %v4228, %v4219
    %v4230 = vsel %vm4223, %v4226, %v4229
    %v4231 = vsel %vm4220, nan, %v4230
    %v4232 = vand.u32 2147483647, %v520
    %vm4233 = vcmp.le.f32.partialorder %v4232, 0.7853982
    %vm4234 = vcmp.lt.s32.totalorder %v520, 0
    %v4235 = vand.u32 %v520, 2139095040
    %v4236 = vshrl.u32 %v4235, 23
    %v4237 = vsub.s32 %v4236, 127
    %v4238 = vand.u32 2147483647, %v520
    %v4239 = vand.u32 %v4238, 8388607
    %v4240 = vor.u32 %v4239, 8388608
    %v4241 = vsub.s32 0, %v4240
    %v4242 = vadd.s32 %v4237, 1
    %vm4243 = vcmp.gt.s32.totalorder %v4242, 0
    %v4244 = vsel %vm4243, %v4242, 0
    %v4245 = vshrl.u32 %v4244, 5
    %v4246 = vand.u32 %v4244, 31
    %v4247 = vsub.s32 32, %v4246
    %v4248 = vshrl.u32 683565275, %v4247
    %v4249 = vshll.u32 683565275, %v4246
    %v4250 = vshrl.u32 2475754826, %v4247
    %v4251 = vor.u32 %v4249, %v4250
    %v4252 = vshll.u32 2475754826, %v4246
    %v4253 = vshrl.u32 2131351028, %v4247
    %v4254 = vor.u32 %v4252, %v4253
    %v4255 = vshll.u32 2131351028, %v4246
    %v4256 = vshrl.u32 2102212464, %v4247
    %v4257 = vor.u32 %v4255, %v4256
    %v4258 = vshll.u32 2102212464, %v4246
    %v4259 = vshrl.u32 920167782, %v4247
    %v4260 = vor.u32 %v4258, %v4259
    %v4261 = vshll.u32 920167782, %v4246
    %v4262 = vshrl.u32 1326507024, %v4247
    %v4263 = vor.u32 %v4261, %v4262
    %vm4264 = vcmp.lt.s32.totalorder %v4245, 1
    %vm4265 = vcmp.lt.s32.totalorder %v4245, 2
    %vm4266 = vcmp.lt.s32.totalorder %v4245, 3
    %vm4267 = vcmp.lt.s32.totalorder %v4245, 4
    %v4268 = vsel %vm4264, %v4248, %v4251
    %v4269 = vsel %vm4267, %v4257, 2102212464
    %v4270 = vsel %vm4266, %v4254, %v4269
    %v4271 = vsel %vm4265, %v4268, %v4270
    %v4272 = vsel %vm4264, %v4251, %v4254
    %v4273 = vsel %vm4267, %v4260, 920167782
    %v4274 = vsel %vm4266, %v4257, %v4273
    %v4275 = vsel %vm4265, %v4272, %v4274
    %v4276 = vsel %vm4264, %v4254, %v4257
    %v4277 = vsel %vm4267, %v4263, 1326507024
    %v4278 = vsel %vm4266, %v4260, %v4277
    %v4279 = vsel %vm4265, %v4276, %v4278
    %v4280 = vshll.u32 %v4240, 8
    %v4281 = vand.u32 %v4280, 65535
    %v4282 = vshrl.u32 %v4280, 16
    %v4283 = vand.u32 %v4279, 65535
    %v4284 = vshrl.u32 %v4279, 16
    %v4285 = vmul.u32 %v4281, %v4283
    %v4286 = vmul.u32 %v4281, %v4284
    %v4287 = vmul.u32 %v4282, %v4283
    %v4288 = vmul.u32 %v4282, %v4284
    %v4289 = vshll.u32 %v4286, 16
    %v4290 = vshrl.u32 %v4286, 16
    %v4291 = vshll.u32 %v4287, 16
    %v4292 = vshrl.u32 %v4287, 16
    %vm4293 = vc.u32 %v4285, %v4289
    %v4294 = vsel %vm4293, 1, 0
    %v4295 = vadd.s32 %v4285, %v4289
    %v4296 = vadd.s32 %v4288, %v4294
    %vm4297 = vc.u32 %v4295, %v4291
    %v4298 = vsel %vm4297, 1, 0
    %v4299 = vadd.s32 %v4295, %v4291
    %v4300 = vadd.s32 %v4296, %v4298
    %v4301 = vadd.s32 %v4300, %v4290
    %v4302 = vadd.s32 %v4301, %v4292
    %v4303 = vand.u32 %v4280, 65535
    %v4304 = vshrl.u32 %v4280, 16
    %v4305 = vand.u32 %v4275, 65535
    %v4306 = vshrl.u32 %v4275, 16
    %v4307 = vmul.u32 %v4303, %v4305
    %v4308 = vmul.u32 %v4303, %v4306
    %v4309 = vmul.u32 %v4304, %v4305
    %v4310 = vmul.u32 %v4304, %v4306
    %v4311 = vshll.u32 %v4308, 16
    %v4312 = vshrl.u32 %v4308, 16
    %v4313 = vshll.u32 %v4309, 16
    %v4314 = vshrl.u32 %v4309, 16
    %vm4315 = vc.u32 %v4307, %v4311
    %v4316 = vsel %vm4315, 1, 0
    %v4317 = vadd.s32 %v4307, %v4311
    %v4318 = vadd.s32 %v4310, %v4316
    %vm4319 = vc.u32 %v4317, %v4313
    %v4320 = vsel %vm4319, 1, 0
    %v4321 = vadd.s32 %v4317, %v4313
    %v4322 = vadd.s32 %v4318, %v4320
    %v4323 = vadd.s32 %v4322, %v4312
    %v4324 = vadd.s32 %v4323, %v4314
    %v4325 = vmul.u32 %v4280, %v4271
    %v4326 = vadd.s32 %v4302, %v4321
    %vm4327 = vc.u32 %v4302, %v4321
    %v4328 = vadd.s32 %v4324, 1
    %v4329 = vsel %vm4327, %v4328, %v4324
    %v4330 = vadd.s32 %v4325, %v4329
    %v4331 = vadd.s32 %v4330, 536870912
    %v4332 = vshrl.u32 %v4331, 30
    %v4333 = vshll.u32 %v4332, 30
    %v4334 = vsub.s32 %v4330, %v4333
    %vm4335 = vcmp.lt.s32.totalorder %v4334, 0
    %v4336 = vsub.s32 0, %v4334
    %v4337 = vsel %vm4335, %v4336, %v4334
    %v4338 = vclz %v4337
    %v4339 = vsub.s32 %v4338, 2
    %vm4340 = vcmp.gt.s32.totalorder 0, %v4339
    %v4341 = vsel %vm4340, 0, %v4339
    %v4342 = vsub.s32 32, %v4341
    %v4343 = vshll.u32 %v4334, %v4341
    %v4344 = vshrl.u32 %v4326, %v4342
    %v4345 = vor.u32 %v4343, %v4344
    %v4346 = vsub.s32 4294967266, %v4341
    %v4347 = vadd.s32 %v4346, 127
    %v4348 = vshll.u32 %v4347, 23
    %v4349 = vor.u32 4788187, %v4348
    %v4350 = vand.u32 2147483647, %v4349
    %v4352 = vcvt.s32.f32 %v4345
    %v4353 = vmul.f32 %v4352, %v4350
    %v4354 = vxor.u32 %v4353, 2147483648
    %v4355 = vsel %vm4234, %v4354, %v4353
    %v4356 = vsub.s32 4, %v4332
    %v4357 = vsel %vm4234, %v4356, %v4332
    %v4358 = vsel %vm4233, %v520, %v4355
    %v4359 = vsel %vm4233, 0, %v4357
    %v4360 = vmul.f32 %v4358, %v4358
    %v4361 = vmul.f32 %v4360, -0.001358992
    %v4362 = vadd.f32 %v4361, 0.041655596
    %v4363 = vmul.f32 %v4360, %v4362
    %v4364 = vadd.f32 %v4363, -0.4999988
    %v4365 = vmul.f32 %v4360, %v4364
    %v4366 = vadd.f32 1.0, %v4365
    %v4367 = vmul.f32 %v4358, %v4358
    %v4368 = vmul.f32 %v4367, -0.00019511016
    %v4369 = vadd.f32 %v4368, 0.008332121
    %v4370 = vmul.f32 %v4367, %v4369
    %v4371 = vadd.f32 %v4370, -0.16666654
    %v4372 = vmul.f32 %v4367, %v4371
    %v4373 = vadd.f32 %v4372, 1.0
    %v4374 = vmul.f32 %v4373, %v4358
    %vm4375 = vweird.f32 %v520
    %v4376 = vadd.s32 %v4359, 3
    %v4377 = vand.u32 %v4376, 3
    %vm4378 = vcmp.lt.s32.totalorder %v4377, 2
    %vm4379 = vcmp.eq.s32.totalorder %v4377, 0
    %v4380 = vxor.u32 %v4374, 2147483648
    %v4381 = vsel %vm4379, %v4366, %v4380
    %vm4382 = vcmp.eq.s32.totalorder %v4377, 2
    %v4383 = vxor.u32 %v4366, 2147483648
    %v4384 = vsel %vm4382, %v4383, %v4374
    %v4385 = vsel %vm4378, %v4381, %v4384
    %v4386 = vsel %vm4375, nan, %v4385
    %v4387 = vand.u32 2147483647, %v521
    %vm4388 = vcmp.le.f32.partialorder %v4387, 0.7853982
    %vm4389 = vcmp.lt.s32.totalorder %v521, 0
    %v4390 = vand.u32 %v521, 2139095040
    %v4391 = vshrl.u32 %v4390, 23
    %v4392 = vsub.s32 %v4391, 127
    %v4393 = vand.u32 2147483647, %v521
    %v4394 = vand.u32 %v4393, 8388607
    %v4395 = vor.u32 %v4394, 8388608
    %v4396 = vsub.s32 0, %v4395
    %v4397 = vadd.s32 %v4392, 1
    %vm4398 = vcmp.gt.s32.totalorder %v4397, 0
    %v4399 = vsel %vm4398, %v4397, 0
    %v4400 = vshrl.u32 %v4399, 5
    %v4401 = vand.u32 %v4399, 31
    %v4402 = vsub.s32 32, %v4401
    %v4403 = vshrl.u32 683565275, %v4402
    %v4404 = vshll.u32 683565275, %v4401
    %v4405 = vshrl.u32 2475754826, %v4402
    %v4406 = vor.u32 %v4404, %v4405
    %v4407 = vshll.u32 2475754826, %v4401
    %v4408 = vshrl.u32 2131351028, %v4402
    %v4409 = vor.u32 %v4407, %v4408
    %v4410 = vshll.u32 2131351028, %v4401
    %v4411 = vshrl.u32 2102212464, %v4402
    %v4412 = vor.u32 %v4410, %v4411
    %v4413 = vshll.u32 2102212464, %v4401
    %v4414 = vshrl.u32 920167782, %v4402
    %v4415 = vor.u32 %v4413, %v4414
    %v4416 = vshll.u32 920167782, %v4401
    %v4417 = vshrl.u32 1326507024, %v4402
    %v4418 = vor.u32 %v4416, %v4417
    %vm4419 = vcmp.lt.s32.totalorder %v4400, 1
    %vm4420 = vcmp.lt.s32.totalorder %v4400, 2
    %vm4421 = vcmp.lt.s32.totalorder %v4400, 3
    %vm4422 = vcmp.lt.s32.totalorder %v4400, 4
    %v4423 = vsel %vm4419, %v4403, %v4406
    %v4424 = vsel %vm4422, %v4412, 2102212464
    %v4425 = vsel %vm4421, %v4409, %v4424
    %v4426 = vsel %vm4420, %v4423, %v4425
    %v4427 = vsel %vm4419, %v4406, %v4409
    %v4428 = vsel %vm4422, %v4415, 920167782
    %v4429 = vsel %vm4421, %v4412, %v4428
    %v4430 = vsel %vm4420, %v4427, %v4429
    %v4431 = vsel %vm4419, %v4409, %v4412
    %v4432 = vsel %vm4422, %v4418, 1326507024
    %v4433 = vsel %vm4421, %v4415, %v4432
    %v4434 = vsel %vm4420, %v4431, %v4433
    %v4435 = vshll.u32 %v4395, 8
    %v4436 = vand.u32 %v4435, 65535
    %v4437 = vshrl.u32 %v4435, 16
    %v4438 = vand.u32 %v4434, 65535
    %v4439 = vshrl.u32 %v4434, 16
    %v4440 = vmul.u32 %v4436, %v4438
    %v4441 = vmul.u32 %v4436, %v4439
    %v4442 = vmul.u32 %v4437, %v4438
    %v4443 = vmul.u32 %v4437, %v4439
    %v4444 = vshll.u32 %v4441, 16
    %v4445 = vshrl.u32 %v4441, 16
    %v4446 = vshll.u32 %v4442, 16
    %v4447 = vshrl.u32 %v4442, 16
    %vm4448 = vc.u32 %v4440, %v4444
    %v4449 = vsel %vm4448, 1, 0
    %v4450 = vadd.s32 %v4440, %v4444
    %v4451 = vadd.s32 %v4443, %v4449
    %vm4452 = vc.u32 %v4450, %v4446
    %v4453 = vsel %vm4452, 1, 0
    %v4454 = vadd.s32 %v4450, %v4446
    %v4455 = vadd.s32 %v4451, %v4453
    %v4456 = vadd.s32 %v4455, %v4445
    %v4457 = vadd.s32 %v4456, %v4447
    %v4458 = vand.u32 %v4435, 65535
    %v4459 = vshrl.u32 %v4435, 16
    %v4460 = vand.u32 %v4430, 65535
    %v4461 = vshrl.u32 %v4430, 16
    %v4462 = vmul.u32 %v4458, %v4460
    %v4463 = vmul.u32 %v4458, %v4461
    %v4464 = vmul.u32 %v4459, %v4460
    %v4465 = vmul.u32 %v4459, %v4461
    %v4466 = vshll.u32 %v4463, 16
    %v4467 = vshrl.u32 %v4463, 16
    %v4468 = vshll.u32 %v4464, 16
    %v4469 = vshrl.u32 %v4464, 16
    %vm4470 = vc.u32 %v4462, %v4466
    %v4471 = vsel %vm4470, 1, 0
    %v4472 = vadd.s32 %v4462, %v4466
    %v4473 = vadd.s32 %v4465, %v4471
    %vm4474 = vc.u32 %v4472, %v4468
    %v4475 = vsel %vm4474, 1, 0
    %v4476 = vadd.s32 %v4472, %v4468
    %v4477 = vadd.s32 %v4473, %v4475
    %v4478 = vadd.s32 %v4477, %v4467
    %v4479 = vadd.s32 %v4478, %v4469
    %v4480 = vmul.u32 %v4435, %v4426
    %v4481 = vadd.s32 %v4457, %v4476
    %vm4482 = vc.u32 %v4457, %v4476
    %v4483 = vadd.s32 %v4479, 1
    %v4484 = vsel %vm4482, %v4483, %v4479
    %v4485 = vadd.s32 %v4480, %v4484
    %v4486 = vadd.s32 %v4485, 536870912
    %v4487 = vshrl.u32 %v4486, 30
    %v4488 = vshll.u32 %v4487, 30
    %v4489 = vsub.s32 %v4485, %v4488
    %vm4490 = vcmp.lt.s32.totalorder %v4489, 0
    %v4491 = vsub.s32 0, %v4489
    %v4492 = vsel %vm4490, %v4491, %v4489
    %v4493 = vclz %v4492
    %v4494 = vsub.s32 %v4493, 2
    %vm4495 = vcmp.gt.s32.totalorder 0, %v4494
    %v4496 = vsel %vm4495, 0, %v4494
    %v4497 = vsub.s32 32, %v4496
    %v4498 = vshll.u32 %v4489, %v4496
    %v4499 = vshrl.u32 %v4481, %v4497
    %v4500 = vor.u32 %v4498, %v4499
    %v4501 = vsub.s32 4294967266, %v4496
    %v4502 = vadd.s32 %v4501, 127
    %v4503 = vshll.u32 %v4502, 23
    %v4504 = vor.u32 4788187, %v4503
    %v4505 = vand.u32 2147483647, %v4504
    %v4507 = vcvt.s32.f32 %v4500
    %v4508 = vmul.f32 %v4507, %v4505
    %v4509 = vxor.u32 %v4508, 2147483648
    %v4510 = vsel %vm4389, %v4509, %v4508
    %v4511 = vsub.s32 4, %v4487
    %v4512 = vsel %vm4389, %v4511, %v4487
    %v4513 = vsel %vm4388, %v521, %v4510
    %v4514 = vsel %vm4388, 0, %v4512
    %v4515 = vmul.f32 %v4513, %v4513
    %v4516 = vmul.f32 %v4515, -0.001358992
    %v4517 = vadd.f32 %v4516, 0.041655596
    %v4518 = vmul.f32 %v4515, %v4517
    %v4519 = vadd.f32 %v4518, -0.4999988
    %v4520 = vmul.f32 %v4515, %v4519
    %v4521 = vadd.f32 1.0, %v4520
    %v4522 = vmul.f32 %v4513, %v4513
    %v4523 = vmul.f32 %v4522, -0.00019511016
    %v4524 = vadd.f32 %v4523, 0.008332121
    %v4525 = vmul.f32 %v4522, %v4524
    %v4526 = vadd.f32 %v4525, -0.16666654
    %v4527 = vmul.f32 %v4522, %v4526
    %v4528 = vadd.f32 %v4527, 1.0
    %v4529 = vmul.f32 %v4528, %v4513
    %vm4530 = vweird.f32 %v521
    %v4531 = vadd.s32 %v4514, 3
    %v4532 = vand.u32 %v4531, 3
    %vm4533 = vcmp.lt.s32.totalorder %v4532, 2
    %vm4534 = vcmp.eq.s32.totalorder %v4532, 0
    %v4535 = vxor.u32 %v4529, 2147483648
    %v4536 = vsel %vm4534, %v4521, %v4535
    %vm4537 = vcmp.eq.s32.totalorder %v4532, 2
    %v4538 = vxor.u32 %v4521, 2147483648
    %v4539 = vsel %vm4537, %v4538, %v4529
    %v4540 = vsel %vm4533, %v4536, %v4539
    %v4541 = vsel %vm4530, nan, %v4540
    %v4542 = vand.u32 2147483647, %v522
    %vm4543 = vcmp.le.f32.partialorder %v4542, 0.7853982
    %vm4544 = vcmp.lt.s32.totalorder %v522, 0
    %v4545 = vand.u32 %v522, 2139095040
    %v4546 = vshrl.u32 %v4545, 23
    %v4547 = vsub.s32 %v4546, 127
    %v4548 = vand.u32 2147483647, %v522
    %v4549 = vand.u32 %v4548, 8388607
    %v4550 = vor.u32 %v4549, 8388608
    %v4551 = vsub.s32 0, %v4550
    %v4552 = vadd.s32 %v4547, 1
    %vm4553 = vcmp.gt.s32.totalorder %v4552, 0
    %v4554 = vsel %vm4553, %v4552, 0
    %v4555 = vshrl.u32 %v4554, 5
    %v4556 = vand.u32 %v4554, 31
    %v4557 = vsub.s32 32, %v4556
    %v4558 = vshrl.u32 683565275, %v4557
    %v4559 = vshll.u32 683565275, %v4556
    %v4560 = vshrl.u32 2475754826, %v4557
    %v4561 = vor.u32 %v4559, %v4560
    %v4562 = vshll.u32 2475754826, %v4556
    %v4563 = vshrl.u32 2131351028, %v4557
    %v4564 = vor.u32 %v4562, %v4563
    %v4565 = vshll.u32 2131351028, %v4556
    %v4566 = vshrl.u32 2102212464, %v4557
    %v4567 = vor.u32 %v4565, %v4566
    %v4568 = vshll.u32 2102212464, %v4556
    %v4569 = vshrl.u32 920167782, %v4557
    %v4570 = vor.u32 %v4568, %v4569
    %v4571 = vshll.u32 920167782, %v4556
    %v4572 = vshrl.u32 1326507024, %v4557
    %v4573 = vor.u32 %v4571, %v4572
    %vm4574 = vcmp.lt.s32.totalorder %v4555, 1
    %vm4575 = vcmp.lt.s32.totalorder %v4555, 2
    %vm4576 = vcmp.lt.s32.totalorder %v4555, 3
    %vm4577 = vcmp.lt.s32.totalorder %v4555, 4
    %v4578 = vsel %vm4574, %v4558, %v4561
    %v4579 = vsel %vm4577, %v4567, 2102212464
    %v4580 = vsel %vm4576, %v4564, %v4579
    %v4581 = vsel %vm4575, %v4578, %v4580
    %v4582 = vsel %vm4574, %v4561, %v4564
    %v4583 = vsel %vm4577, %v4570, 920167782
    %v4584 = vsel %vm4576, %v4567, %v4583
    %v4585 = vsel %vm4575, %v4582, %v4584
    %v4586 = vsel %vm4574, %v4564, %v4567
    %v4587 = vsel %vm4577, %v4573, 1326507024
    %v4588 = vsel %vm4576, %v4570, %v4587
    %v4589 = vsel %vm4575, %v4586, %v4588
    %v4590 = vshll.u32 %v4550, 8
    %v4591 = vand.u32 %v4590, 65535
    %v4592 = vshrl.u32 %v4590, 16
    %v4593 = vand.u32 %v4589, 65535
    %v4594 = vshrl.u32 %v4589, 16
    %v4595 = vmul.u32 %v4591, %v4593
    %v4596 = vmul.u32 %v4591, %v4594
    %v4597 = vmul.u32 %v4592, %v4593
    %v4598 = vmul.u32 %v4592, %v4594
    %v4599 = vshll.u32 %v4596, 16
    %v4600 = vshrl.u32 %v4596, 16
    %v4601 = vshll.u32 %v4597, 16
    %v4602 = vshrl.u32 %v4597, 16
    %vm4603 = vc.u32 %v4595, %v4599
    %v4604 = vsel %vm4603, 1, 0
    %v4605 = vadd.s32 %v4595, %v4599
    %v4606 = vadd.s32 %v4598, %v4604
    %vm4607 = vc.u32 %v4605, %v4601
    %v4608 = vsel %vm4607, 1, 0
    %v4609 = vadd.s32 %v4605, %v4601
    %v4610 = vadd.s32 %v4606, %v4608
    %v4611 = vadd.s32 %v4610, %v4600
    %v4612 = vadd.s32 %v4611, %v4602
    %v4613 = vand.u32 %v4590, 65535
    %v4614 = vshrl.u32 %v4590, 16
    %v4615 = vand.u32 %v4585, 65535
    %v4616 = vshrl.u32 %v4585, 16
    %v4617 = vmul.u32 %v4613, %v4615
    %v4618 = vmul.u32 %v4613, %v4616
    %v4619 = vmul.u32 %v4614, %v4615
    %v4620 = vmul.u32 %v4614, %v4616
    %v4621 = vshll.u32 %v4618, 16
    %v4622 = vshrl.u32 %v4618, 16
    %v4623 = vshll.u32 %v4619, 16
    %v4624 = vshrl.u32 %v4619, 16
    %vm4625 = vc.u32 %v4617, %v4621
    %v4626 = vsel %vm4625, 1, 0
    %v4627 = vadd.s32 %v4617, %v4621
    %v4628 = vadd.s32 %v4620, %v4626
    %vm4629 = vc.u32 %v4627, %v4623
    %v4630 = vsel %vm4629, 1, 0
    %v4631 = vadd.s32 %v4627, %v4623
    %v4632 = vadd.s32 %v4628, %v4630
    %v4633 = vadd.s32 %v4632, %v4622
    %v4634 = vadd.s32 %v4633, %v4624
    %v4635 = vmul.u32 %v4590, %v4581
    %v4636 = vadd.s32 %v4612, %v4631
    %vm4637 = vc.u32 %v4612, %v4631
    %v4638 = vadd.s32 %v4634, 1
    %v4639 = vsel %vm4637, %v4638, %v4634
    %v4640 = vadd.s32 %v4635, %v4639
    %v4641 = vadd.s32 %v4640, 536870912
    %v4642 = vshrl.u32 %v4641, 30
    %v4643 = vshll.u32 %v4642, 30
    %v4644 = vsub.s32 %v4640, %v4643
    %vm4645 = vcmp.lt.s32.totalorder %v4644, 0
    %v4646 = vsub.s32 0, %v4644
    %v4647 = vsel %vm4645, %v4646, %v4644
    %v4648 = vclz %v4647
    %v4649 = vsub.s32 %v4648, 2
    %vm4650 = vcmp.gt.s32.totalorder 0, %v4649
    %v4651 = vsel %vm4650, 0, %v4649
    %v4652 = vsub.s32 32, %v4651
    %v4653 = vshll.u32 %v4644, %v4651
    %v4654 = vshrl.u32 %v4636, %v4652
    %v4655 = vor.u32 %v4653, %v4654
    %v4656 = vsub.s32 4294967266, %v4651
    %v4657 = vadd.s32 %v4656, 127
    %v4658 = vshll.u32 %v4657, 23
    %v4659 = vor.u32 4788187, %v4658
    %v4660 = vand.u32 2147483647, %v4659
    %v4662 = vcvt.s32.f32 %v4655
    %v4663 = vmul.f32 %v4662, %v4660
    %v4664 = vxor.u32 %v4663, 2147483648
    %v4665 = vsel %vm4544, %v4664, %v4663
    %v4666 = vsub.s32 4, %v4642
    %v4667 = vsel %vm4544, %v4666, %v4642
    %v4668 = vsel %vm4543, %v522, %v4665
    %v4669 = vsel %vm4543, 0, %v4667
    %v4670 = vmul.f32 %v4668, %v4668
    %v4671 = vmul.f32 %v4670, -0.001358992
    %v4672 = vadd.f32 %v4671, 0.041655596
    %v4673 = vmul.f32 %v4670, %v4672
    %v4674 = vadd.f32 %v4673, -0.4999988
    %v4675 = vmul.f32 %v4670, %v4674
    %v4676 = vadd.f32 1.0, %v4675
    %v4677 = vmul.f32 %v4668, %v4668
    %v4678 = vmul.f32 %v4677, -0.00019511016
    %v4679 = vadd.f32 %v4678, 0.008332121
    %v4680 = vmul.f32 %v4677, %v4679
    %v4681 = vadd.f32 %v4680, -0.16666654
    %v4682 = vmul.f32 %v4677, %v4681
    %v4683 = vadd.f32 %v4682, 1.0
    %v4684 = vmul.f32 %v4683, %v4668
    %vm4685 = vweird.f32 %v522
    %v4686 = vadd.s32 %v4669, 3
    %v4687 = vand.u32 %v4686, 3
    %vm4688 = vcmp.lt.s32.totalorder %v4687, 2
    %vm4689 = vcmp.eq.s32.totalorder %v4687, 0
    %v4690 = vxor.u32 %v4684, 2147483648
    %v4691 = vsel %vm4689, %v4676, %v4690
    %vm4692 = vcmp.eq.s32.totalorder %v4687, 2
    %v4693 = vxor.u32 %v4676, 2147483648
    %v4694 = vsel %vm4692, %v4693, %v4684
    %v4695 = vsel %vm4688, %v4691, %v4694
    %v4696 = vsel %vm4685, nan, %v4695
    %v4697 = vand.u32 2147483647, %v523
    %vm4698 = vcmp.le.f32.partialorder %v4697, 0.7853982
    %vm4699 = vcmp.lt.s32.totalorder %v523, 0
    %v4700 = vand.u32 %v523, 2139095040
    %v4701 = vshrl.u32 %v4700, 23
    %v4702 = vsub.s32 %v4701, 127
    %v4703 = vand.u32 2147483647, %v523
    %v4704 = vand.u32 %v4703, 8388607
    %v4705 = vor.u32 %v4704, 8388608
    %v4706 = vsub.s32 0, %v4705
    %v4707 = vadd.s32 %v4702, 1
    %vm4708 = vcmp.gt.s32.totalorder %v4707, 0
    %v4709 = vsel %vm4708, %v4707, 0
    %v4710 = vshrl.u32 %v4709, 5
    %v4711 = vand.u32 %v4709, 31
    %v4712 = vsub.s32 32, %v4711
    %v4713 = vshrl.u32 683565275, %v4712
    %v4714 = vshll.u32 683565275, %v4711
    %v4715 = vshrl.u32 2475754826, %v4712
    %v4716 = vor.u32 %v4714, %v4715
    %v4717 = vshll.u32 2475754826, %v4711
    %v4718 = vshrl.u32 2131351028, %v4712
    %v4719 = vor.u32 %v4717, %v4718
    %v4720 = vshll.u32 2131351028, %v4711
    %v4721 = vshrl.u32 2102212464, %v4712
    %v4722 = vor.u32 %v4720, %v4721
    %v4723 = vshll.u32 2102212464, %v4711
    %v4724 = vshrl.u32 920167782, %v4712
    %v4725 = vor.u32 %v4723, %v4724
    %v4726 = vshll.u32 920167782, %v4711
    %v4727 = vshrl.u32 1326507024, %v4712
    %v4728 = vor.u32 %v4726, %v4727
    %vm4729 = vcmp.lt.s32.totalorder %v4710, 1
    %vm4730 = vcmp.lt.s32.totalorder %v4710, 2
    %vm4731 = vcmp.lt.s32.totalorder %v4710, 3
    %vm4732 = vcmp.lt.s32.totalorder %v4710, 4
    %v4733 = vsel %vm4729, %v4713, %v4716
    %v4734 = vsel %vm4732, %v4722, 2102212464
    %v4735 = vsel %vm4731, %v4719, %v4734
    %v4736 = vsel %vm4730, %v4733, %v4735
    %v4737 = vsel %vm4729, %v4716, %v4719
    %v4738 = vsel %vm4732, %v4725, 920167782
    %v4739 = vsel %vm4731, %v4722, %v4738
    %v4740 = vsel %vm4730, %v4737, %v4739
    %v4741 = vsel %vm4729, %v4719, %v4722
    %v4742 = vsel %vm4732, %v4728, 1326507024
    %v4743 = vsel %vm4731, %v4725, %v4742
    %v4744 = vsel %vm4730, %v4741, %v4743
    %v4745 = vshll.u32 %v4705, 8
    %v4746 = vand.u32 %v4745, 65535
    %v4747 = vshrl.u32 %v4745, 16
    %v4748 = vand.u32 %v4744, 65535
    %v4749 = vshrl.u32 %v4744, 16
    %v4750 = vmul.u32 %v4746, %v4748
    %v4751 = vmul.u32 %v4746, %v4749
    %v4752 = vmul.u32 %v4747, %v4748
    %v4753 = vmul.u32 %v4747, %v4749
    %v4754 = vshll.u32 %v4751, 16
    %v4755 = vshrl.u32 %v4751, 16
    %v4756 = vshll.u32 %v4752, 16
    %v4757 = vshrl.u32 %v4752, 16
    %vm4758 = vc.u32 %v4750, %v4754
    %v4759 = vsel %vm4758, 1, 0
    %v4760 = vadd.s32 %v4750, %v4754
    %v4761 = vadd.s32 %v4753, %v4759
    %vm4762 = vc.u32 %v4760, %v4756
    %v4763 = vsel %vm4762, 1, 0
    %v4764 = vadd.s32 %v4760, %v4756
    %v4765 = vadd.s32 %v4761, %v4763
    %v4766 = vadd.s32 %v4765, %v4755
    %v4767 = vadd.s32 %v4766, %v4757
    %v4768 = vand.u32 %v4745, 65535
    %v4769 = vshrl.u32 %v4745, 16
    %v4770 = vand.u32 %v4740, 65535
    %v4771 = vshrl.u32 %v4740, 16
    %v4772 = vmul.u32 %v4768, %v4770
    %v4773 = vmul.u32 %v4768, %v4771
    %v4774 = vmul.u32 %v4769, %v4770
    %v4775 = vmul.u32 %v4769, %v4771
    %v4776 = vshll.u32 %v4773, 16
    %v4777 = vshrl.u32 %v4773, 16
    %v4778 = vshll.u32 %v4774, 16
    %v4779 = vshrl.u32 %v4774, 16
    %vm4780 = vc.u32 %v4772, %v4776
    %v4781 = vsel %vm4780, 1, 0
    %v4782 = vadd.s32 %v4772, %v4776
    %v4783 = vadd.s32 %v4775, %v4781
    %vm4784 = vc.u32 %v4782, %v4778
    %v4785 = vsel %vm4784, 1, 0
    %v4786 = vadd.s32 %v4782, %v4778
    %v4787 = vadd.s32 %v4783, %v4785
    %v4788 = vadd.s32 %v4787, %v4777
    %v4789 = vadd.s32 %v4788, %v4779
    %v4790 = vmul.u32 %v4745, %v4736
    %v4791 = vadd.s32 %v4767, %v4786
    %vm4792 = vc.u32 %v4767, %v4786
    %v4793 = vadd.s32 %v4789, 1
    %v4794 = vsel %vm4792, %v4793, %v4789
    %v4795 = vadd.s32 %v4790, %v4794
    %v4796 = vadd.s32 %v4795, 536870912
    %v4797 = vshrl.u32 %v4796, 30
    %v4798 = vshll.u32 %v4797, 30
    %v4799 = vsub.s32 %v4795, %v4798
    %vm4800 = vcmp.lt.s32.totalorder %v4799, 0
    %v4801 = vsub.s32 0, %v4799
    %v4802 = vsel %vm4800, %v4801, %v4799
    %v4803 = vclz %v4802
    %v4804 = vsub.s32 %v4803, 2
    %vm4805 = vcmp.gt.s32.totalorder 0, %v4804
    %v4806 = vsel %vm4805, 0, %v4804
    %v4807 = vsub.s32 32, %v4806
    %v4808 = vshll.u32 %v4799, %v4806
    %v4809 = vshrl.u32 %v4791, %v4807
    %v4810 = vor.u32 %v4808, %v4809
    %v4811 = vsub.s32 4294967266, %v4806
    %v4812 = vadd.s32 %v4811, 127
    %v4813 = vshll.u32 %v4812, 23
    %v4814 = vor.u32 4788187, %v4813
    %v4815 = vand.u32 2147483647, %v4814
    %v4817 = vcvt.s32.f32 %v4810
    %v4818 = vmul.f32 %v4817, %v4815
    %v4819 = vxor.u32 %v4818, 2147483648
    %v4820 = vsel %vm4699, %v4819, %v4818
    %v4821 = vsub.s32 4, %v4797
    %v4822 = vsel %vm4699, %v4821, %v4797
    %v4823 = vsel %vm4698, %v523, %v4820
    %v4824 = vsel %vm4698, 0, %v4822
    %v4825 = vmul.f32 %v4823, %v4823
    %v4826 = vmul.f32 %v4825, -0.001358992
    %v4827 = vadd.f32 %v4826, 0.041655596
    %v4828 = vmul.f32 %v4825, %v4827
    %v4829 = vadd.f32 %v4828, -0.4999988
    %v4830 = vmul.f32 %v4825, %v4829
    %v4831 = vadd.f32 1.0, %v4830
    %v4832 = vmul.f32 %v4823, %v4823
    %v4833 = vmul.f32 %v4832, -0.00019511016
    %v4834 = vadd.f32 %v4833, 0.008332121
    %v4835 = vmul.f32 %v4832, %v4834
    %v4836 = vadd.f32 %v4835, -0.16666654
    %v4837 = vmul.f32 %v4832, %v4836
    %v4838 = vadd.f32 %v4837, 1.0
    %v4839 = vmul.f32 %v4838, %v4823
    %vm4840 = vweird.f32 %v523
    %v4841 = vadd.s32 %v4824, 3
    %v4842 = vand.u32 %v4841, 3
    %vm4843 = vcmp.lt.s32.totalorder %v4842, 2
    %vm4844 = vcmp.eq.s32.totalorder %v4842, 0
    %v4845 = vxor.u32 %v4839, 2147483648
    %v4846 = vsel %vm4844, %v4831, %v4845
    %vm4847 = vcmp.eq.s32.totalorder %v4842, 2
    %v4848 = vxor.u32 %v4831, 2147483648
    %v4849 = vsel %vm4847, %v4848, %v4839
    %v4850 = vsel %vm4843, %v4846, %v4849
    %v4851 = vsel %vm4840, nan, %v4850
    %v4852 = vand.u32 2147483647, %v524
    %vm4853 = vcmp.le.f32.partialorder %v4852, 0.7853982
    %vm4854 = vcmp.lt.s32.totalorder %v524, 0
    %v4855 = vand.u32 %v524, 2139095040
    %v4856 = vshrl.u32 %v4855, 23
    %v4857 = vsub.s32 %v4856, 127
    %v4858 = vand.u32 2147483647, %v524
    %v4859 = vand.u32 %v4858, 8388607
    %v4860 = vor.u32 %v4859, 8388608
    %v4861 = vsub.s32 0, %v4860
    %v4862 = vadd.s32 %v4857, 1
    %vm4863 = vcmp.gt.s32.totalorder %v4862, 0
    %v4864 = vsel %vm4863, %v4862, 0
    %v4865 = vshrl.u32 %v4864, 5
    %v4866 = vand.u32 %v4864, 31
    %v4867 = vsub.s32 32, %v4866
    %v4868 = vshrl.u32 683565275, %v4867
    %v4869 = vshll.u32 683565275, %v4866
    %v4870 = vshrl.u32 2475754826, %v4867
    %v4871 = vor.u32 %v4869, %v4870
    %v4872 = vshll.u32 2475754826, %v4866
    %v4873 = vshrl.u32 2131351028, %v4867
    %v4874 = vor.u32 %v4872, %v4873
    %v4875 = vshll.u32 2131351028, %v4866
    %v4876 = vshrl.u32 2102212464, %v4867
    %v4877 = vor.u32 %v4875, %v4876
    %v4878 = vshll.u32 2102212464, %v4866
    %v4879 = vshrl.u32 920167782, %v4867
    %v4880 = vor.u32 %v4878, %v4879
    %v4881 = vshll.u32 920167782, %v4866
    %v4882 = vshrl.u32 1326507024, %v4867
    %v4883 = vor.u32 %v4881, %v4882
    %vm4884 = vcmp.lt.s32.totalorder %v4865, 1
    %vm4885 = vcmp.lt.s32.totalorder %v4865, 2
    %vm4886 = vcmp.lt.s32.totalorder %v4865, 3
    %vm4887 = vcmp.lt.s32.totalorder %v4865, 4
    %v4888 = vsel %vm4884, %v4868, %v4871
    %v4889 = vsel %vm4887, %v4877, 2102212464
    %v4890 = vsel %vm4886, %v4874, %v4889
    %v4891 = vsel %vm4885, %v4888, %v4890
    %v4892 = vsel %vm4884, %v4871, %v4874
    %v4893 = vsel %vm4887, %v4880, 920167782
    %v4894 = vsel %vm4886, %v4877, %v4893
    %v4895 = vsel %vm4885, %v4892, %v4894
    %v4896 = vsel %vm4884, %v4874, %v4877
    %v4897 = vsel %vm4887, %v4883, 1326507024
    %v4898 = vsel %vm4886, %v4880, %v4897
    %v4899 = vsel %vm4885, %v4896, %v4898
    %v4900 = vshll.u32 %v4860, 8
    %v4901 = vand.u32 %v4900, 65535
    %v4902 = vshrl.u32 %v4900, 16
    %v4903 = vand.u32 %v4899, 65535
    %v4904 = vshrl.u32 %v4899, 16
    %v4905 = vmul.u32 %v4901, %v4903
    %v4906 = vmul.u32 %v4901, %v4904
    %v4907 = vmul.u32 %v4902, %v4903
    %v4908 = vmul.u32 %v4902, %v4904
    %v4909 = vshll.u32 %v4906, 16
    %v4910 = vshrl.u32 %v4906, 16
    %v4911 = vshll.u32 %v4907, 16
    %v4912 = vshrl.u32 %v4907, 16
    %vm4913 = vc.u32 %v4905, %v4909
    %v4914 = vsel %vm4913, 1, 0
    %v4915 = vadd.s32 %v4905, %v4909
    %v4916 = vadd.s32 %v4908, %v4914
    %vm4917 = vc.u32 %v4915, %v4911
    %v4918 = vsel %vm4917, 1, 0
    %v4919 = vadd.s32 %v4915, %v4911
    %v4920 = vadd.s32 %v4916, %v4918
    %v4921 = vadd.s32 %v4920, %v4910
    %v4922 = vadd.s32 %v4921, %v4912
    %v4923 = vand.u32 %v4900, 65535
    %v4924 = vshrl.u32 %v4900, 16
    %v4925 = vand.u32 %v4895, 65535
    %v4926 = vshrl.u32 %v4895, 16
    %v4927 = vmul.u32 %v4923, %v4925
    %v4928 = vmul.u32 %v4923, %v4926
    %v4929 = vmul.u32 %v4924, %v4925
    %v4930 = vmul.u32 %v4924, %v4926
    %v4931 = vshll.u32 %v4928, 16
    %v4932 = vshrl.u32 %v4928, 16
    %v4933 = vshll.u32 %v4929, 16
    %v4934 = vshrl.u32 %v4929, 16
    %vm4935 = vc.u32 %v4927, %v4931
    %v4936 = vsel %vm4935, 1, 0
    %v4937 = vadd.s32 %v4927, %v4931
    %v4938 = vadd.s32 %v4930, %v4936
    %vm4939 = vc.u32 %v4937, %v4933
    %v4940 = vsel %vm4939, 1, 0
    %v4941 = vadd.s32 %v4937, %v4933
    %v4942 = vadd.s32 %v4938, %v4940
    %v4943 = vadd.s32 %v4942, %v4932
    %v4944 = vadd.s32 %v4943, %v4934
    %v4945 = vmul.u32 %v4900, %v4891
    %v4946 = vadd.s32 %v4922, %v4941
    %vm4947 = vc.u32 %v4922, %v4941
    %v4948 = vadd.s32 %v4944, 1
    %v4949 = vsel %vm4947, %v4948, %v4944
    %v4950 = vadd.s32 %v4945, %v4949
    %v4951 = vadd.s32 %v4950, 536870912
    %v4952 = vshrl.u32 %v4951, 30
    %v4953 = vshll.u32 %v4952, 30
    %v4954 = vsub.s32 %v4950, %v4953
    %vm4955 = vcmp.lt.s32.totalorder %v4954, 0
    %v4956 = vsub.s32 0, %v4954
    %v4957 = vsel %vm4955, %v4956, %v4954
    %v4958 = vclz %v4957
    %v4959 = vsub.s32 %v4958, 2
    %vm4960 = vcmp.gt.s32.totalorder 0, %v4959
    %v4961 = vsel %vm4960, 0, %v4959
    %v4962 = vsub.s32 32, %v4961
    %v4963 = vshll.u32 %v4954, %v4961
    %v4964 = vshrl.u32 %v4946, %v4962
    %v4965 = vor.u32 %v4963, %v4964
    %v4966 = vsub.s32 4294967266, %v4961
    %v4967 = vadd.s32 %v4966, 127
    %v4968 = vshll.u32 %v4967, 23
    %v4969 = vor.u32 4788187, %v4968
    %v4970 = vand.u32 2147483647, %v4969
    %v4972 = vcvt.s32.f32 %v4965
    %v4973 = vmul.f32 %v4972, %v4970
    %v4974 = vxor.u32 %v4973, 2147483648
    %v4975 = vsel %vm4854, %v4974, %v4973
    %v4976 = vsub.s32 4, %v4952
    %v4977 = vsel %vm4854, %v4976, %v4952
    %v4978 = vsel %vm4853, %v524, %v4975
    %v4979 = vsel %vm4853, 0, %v4977
    %v4980 = vmul.f32 %v4978, %v4978
    %v4981 = vmul.f32 %v4980, -0.001358992
    %v4982 = vadd.f32 %v4981, 0.041655596
    %v4983 = vmul.f32 %v4980, %v4982
    %v4984 = vadd.f32 %v4983, -0.4999988
    %v4985 = vmul.f32 %v4980, %v4984
    %v4986 = vadd.f32 1.0, %v4985
    %v4987 = vmul.f32 %v4978, %v4978
    %v4988 = vmul.f32 %v4987, -0.00019511016
    %v4989 = vadd.f32 %v4988, 0.008332121
    %v4990 = vmul.f32 %v4987, %v4989
    %v4991 = vadd.f32 %v4990, -0.16666654
    %v4992 = vmul.f32 %v4987, %v4991
    %v4993 = vadd.f32 %v4992, 1.0
    %v4994 = vmul.f32 %v4993, %v4978
    %vm4995 = vweird.f32 %v524
    %v4996 = vadd.s32 %v4979, 3
    %v4997 = vand.u32 %v4996, 3
    %vm4998 = vcmp.lt.s32.totalorder %v4997, 2
    %vm4999 = vcmp.eq.s32.totalorder %v4997, 0
    %v5000 = vxor.u32 %v4994, 2147483648
    %v5001 = vsel %vm4999, %v4986, %v5000
    %vm5002 = vcmp.eq.s32.totalorder %v4997, 2
    %v5003 = vxor.u32 %v4986, 2147483648
    %v5004 = vsel %vm5002, %v5003, %v4994
    %v5005 = vsel %vm4998, %v5001, %v5004
    %v5006 = vsel %vm4995, nan, %v5005
    %v5007 = vand.u32 2147483647, %v525
    %vm5008 = vcmp.le.f32.partialorder %v5007, 0.7853982
    %vm5009 = vcmp.lt.s32.totalorder %v525, 0
    %v5010 = vand.u32 %v525, 2139095040
    %v5011 = vshrl.u32 %v5010, 23
    %v5012 = vsub.s32 %v5011, 127
    %v5013 = vand.u32 2147483647, %v525
    %v5014 = vand.u32 %v5013, 8388607
    %v5015 = vor.u32 %v5014, 8388608
    %v5016 = vsub.s32 0, %v5015
    %v5017 = vadd.s32 %v5012, 1
    %vm5018 = vcmp.gt.s32.totalorder %v5017, 0
    %v5019 = vsel %vm5018, %v5017, 0
    %v5020 = vshrl.u32 %v5019, 5
    %v5021 = vand.u32 %v5019, 31
    %v5022 = vsub.s32 32, %v5021
    %v5023 = vshrl.u32 683565275, %v5022
    %v5024 = vshll.u32 683565275, %v5021
    %v5025 = vshrl.u32 2475754826, %v5022
    %v5026 = vor.u32 %v5024, %v5025
    %v5027 = vshll.u32 2475754826, %v5021
    %v5028 = vshrl.u32 2131351028, %v5022
    %v5029 = vor.u32 %v5027, %v5028
    %v5030 = vshll.u32 2131351028, %v5021
    %v5031 = vshrl.u32 2102212464, %v5022
    %v5032 = vor.u32 %v5030, %v5031
    %v5033 = vshll.u32 2102212464, %v5021
    %v5034 = vshrl.u32 920167782, %v5022
    %v5035 = vor.u32 %v5033, %v5034
    %v5036 = vshll.u32 920167782, %v5021
    %v5037 = vshrl.u32 1326507024, %v5022
    %v5038 = vor.u32 %v5036, %v5037
    %vm5039 = vcmp.lt.s32.totalorder %v5020, 1
    %vm5040 = vcmp.lt.s32.totalorder %v5020, 2
    %vm5041 = vcmp.lt.s32.totalorder %v5020, 3
    %vm5042 = vcmp.lt.s32.totalorder %v5020, 4
    %v5043 = vsel %vm5039, %v5023, %v5026
    %v5044 = vsel %vm5042, %v5032, 2102212464
    %v5045 = vsel %vm5041, %v5029, %v5044
    %v5046 = vsel %vm5040, %v5043, %v5045
    %v5047 = vsel %vm5039, %v5026, %v5029
    %v5048 = vsel %vm5042, %v5035, 920167782
    %v5049 = vsel %vm5041, %v5032, %v5048
    %v5050 = vsel %vm5040, %v5047, %v5049
    %v5051 = vsel %vm5039, %v5029, %v5032
    %v5052 = vsel %vm5042, %v5038, 1326507024
    %v5053 = vsel %vm5041, %v5035, %v5052
    %v5054 = vsel %vm5040, %v5051, %v5053
    %v5055 = vshll.u32 %v5015, 8
    %v5056 = vand.u32 %v5055, 65535
    %v5057 = vshrl.u32 %v5055, 16
    %v5058 = vand.u32 %v5054, 65535
    %v5059 = vshrl.u32 %v5054, 16
    %v5060 = vmul.u32 %v5056, %v5058
    %v5061 = vmul.u32 %v5056, %v5059
    %v5062 = vmul.u32 %v5057, %v5058
    %v5063 = vmul.u32 %v5057, %v5059
    %v5064 = vshll.u32 %v5061, 16
    %v5065 = vshrl.u32 %v5061, 16
    %v5066 = vshll.u32 %v5062, 16
    %v5067 = vshrl.u32 %v5062, 16
    %vm5068 = vc.u32 %v5060, %v5064
    %v5069 = vsel %vm5068, 1, 0
    %v5070 = vadd.s32 %v5060, %v5064
    %v5071 = vadd.s32 %v5063, %v5069
    %vm5072 = vc.u32 %v5070, %v5066
    %v5073 = vsel %vm5072, 1, 0
    %v5074 = vadd.s32 %v5070, %v5066
    %v5075 = vadd.s32 %v5071, %v5073
    %v5076 = vadd.s32 %v5075, %v5065
    %v5077 = vadd.s32 %v5076, %v5067
    %v5078 = vand.u32 %v5055, 65535
    %v5079 = vshrl.u32 %v5055, 16
    %v5080 = vand.u32 %v5050, 65535
    %v5081 = vshrl.u32 %v5050, 16
    %v5082 = vmul.u32 %v5078, %v5080
    %v5083 = vmul.u32 %v5078, %v5081
    %v5084 = vmul.u32 %v5079, %v5080
    %v5085 = vmul.u32 %v5079, %v5081
    %v5086 = vshll.u32 %v5083, 16
    %v5087 = vshrl.u32 %v5083, 16
    %v5088 = vshll.u32 %v5084, 16
    %v5089 = vshrl.u32 %v5084, 16
    %vm5090 = vc.u32 %v5082, %v5086
    %v5091 = vsel %vm5090, 1, 0
    %v5092 = vadd.s32 %v5082, %v5086
    %v5093 = vadd.s32 %v5085, %v5091
    %vm5094 = vc.u32 %v5092, %v5088
    %v5095 = vsel %vm5094, 1, 0
    %v5096 = vadd.s32 %v5092, %v5088
    %v5097 = vadd.s32 %v5093, %v5095
    %v5098 = vadd.s32 %v5097, %v5087
    %v5099 = vadd.s32 %v5098, %v5089
    %v5100 = vmul.u32 %v5055, %v5046
    %v5101 = vadd.s32 %v5077, %v5096
    %vm5102 = vc.u32 %v5077, %v5096
    %v5103 = vadd.s32 %v5099, 1
    %v5104 = vsel %vm5102, %v5103, %v5099
    %v5105 = vadd.s32 %v5100, %v5104
    %v5106 = vadd.s32 %v5105, 536870912
    %v5107 = vshrl.u32 %v5106, 30
    %v5108 = vshll.u32 %v5107, 30
    %v5109 = vsub.s32 %v5105, %v5108
    %vm5110 = vcmp.lt.s32.totalorder %v5109, 0
    %v5111 = vsub.s32 0, %v5109
    %v5112 = vsel %vm5110, %v5111, %v5109
    %v5113 = vclz %v5112
    %v5114 = vsub.s32 %v5113, 2
    %vm5115 = vcmp.gt.s32.totalorder 0, %v5114
    %v5116 = vsel %vm5115, 0, %v5114
    %v5117 = vsub.s32 32, %v5116
    %v5118 = vshll.u32 %v5109, %v5116
    %v5119 = vshrl.u32 %v5101, %v5117
    %v5120 = vor.u32 %v5118, %v5119
    %v5121 = vsub.s32 4294967266, %v5116
    %v5122 = vadd.s32 %v5121, 127
    %v5123 = vshll.u32 %v5122, 23
    %v5124 = vor.u32 4788187, %v5123
    %v5125 = vand.u32 2147483647, %v5124
    %v5127 = vcvt.s32.f32 %v5120
    %v5128 = vmul.f32 %v5127, %v5125
    %v5129 = vxor.u32 %v5128, 2147483648
    %v5130 = vsel %vm5009, %v5129, %v5128
    %v5131 = vsub.s32 4, %v5107
    %v5132 = vsel %vm5009, %v5131, %v5107
    %v5133 = vsel %vm5008, %v525, %v5130
    %v5134 = vsel %vm5008, 0, %v5132
    %v5135 = vmul.f32 %v5133, %v5133
    %v5136 = vmul.f32 %v5135, -0.001358992
    %v5137 = vadd.f32 %v5136, 0.041655596
    %v5138 = vmul.f32 %v5135, %v5137
    %v5139 = vadd.f32 %v5138, -0.4999988
    %v5140 = vmul.f32 %v5135, %v5139
    %v5141 = vadd.f32 1.0, %v5140
    %v5142 = vmul.f32 %v5133, %v5133
    %v5143 = vmul.f32 %v5142, -0.00019511016
    %v5144 = vadd.f32 %v5143, 0.008332121
    %v5145 = vmul.f32 %v5142, %v5144
    %v5146 = vadd.f32 %v5145, -0.16666654
    %v5147 = vmul.f32 %v5142, %v5146
    %v5148 = vadd.f32 %v5147, 1.0
    %v5149 = vmul.f32 %v5148, %v5133
    %vm5150 = vweird.f32 %v525
    %v5151 = vadd.s32 %v5134, 3
    %v5152 = vand.u32 %v5151, 3
    %vm5153 = vcmp.lt.s32.totalorder %v5152, 2
    %vm5154 = vcmp.eq.s32.totalorder %v5152, 0
    %v5155 = vxor.u32 %v5149, 2147483648
    %v5156 = vsel %vm5154, %v5141, %v5155
    %vm5157 = vcmp.eq.s32.totalorder %v5152, 2
    %v5158 = vxor.u32 %v5141, 2147483648
    %v5159 = vsel %vm5157, %v5158, %v5149
    %v5160 = vsel %vm5153, %v5156, %v5159
    %v5161 = vsel %vm5150, nan, %v5160
    %v5162 = vand.u32 2147483647, %v526
    %vm5163 = vcmp.le.f32.partialorder %v5162, 0.7853982
    %vm5164 = vcmp.lt.s32.totalorder %v526, 0
    %v5165 = vand.u32 %v526, 2139095040
    %v5166 = vshrl.u32 %v5165, 23
    %v5167 = vsub.s32 %v5166, 127
    %v5168 = vand.u32 2147483647, %v526
    %v5169 = vand.u32 %v5168, 8388607
    %v5170 = vor.u32 %v5169, 8388608
    %v5171 = vsub.s32 0, %v5170
    %v5172 = vadd.s32 %v5167, 1
    %vm5173 = vcmp.gt.s32.totalorder %v5172, 0
    %v5174 = vsel %vm5173, %v5172, 0
    %v5175 = vshrl.u32 %v5174, 5
    %v5176 = vand.u32 %v5174, 31
    %v5177 = vsub.s32 32, %v5176
    %v5178 = vshrl.u32 683565275, %v5177
    %v5179 = vshll.u32 683565275, %v5176
    %v5180 = vshrl.u32 2475754826, %v5177
    %v5181 = vor.u32 %v5179, %v5180
    %v5182 = vshll.u32 2475754826, %v5176
    %v5183 = vshrl.u32 2131351028, %v5177
    %v5184 = vor.u32 %v5182, %v5183
    %v5185 = vshll.u32 2131351028, %v5176
    %v5186 = vshrl.u32 2102212464, %v5177
    %v5187 = vor.u32 %v5185, %v5186
    %v5188 = vshll.u32 2102212464, %v5176
    %v5189 = vshrl.u32 920167782, %v5177
    %v5190 = vor.u32 %v5188, %v5189
    %v5191 = vshll.u32 920167782, %v5176
    %v5192 = vshrl.u32 1326507024, %v5177
    %v5193 = vor.u32 %v5191, %v5192
    %vm5194 = vcmp.lt.s32.totalorder %v5175, 1
    %vm5195 = vcmp.lt.s32.totalorder %v5175, 2
    %vm5196 = vcmp.lt.s32.totalorder %v5175, 3
    %vm5197 = vcmp.lt.s32.totalorder %v5175, 4
    %v5198 = vsel %vm5194, %v5178, %v5181
    %v5199 = vsel %vm5197, %v5187, 2102212464
    %v5200 = vsel %vm5196, %v5184, %v5199
    %v5201 = vsel %vm5195, %v5198, %v5200
    %v5202 = vsel %vm5194, %v5181, %v5184
    %v5203 = vsel %vm5197, %v5190, 920167782
    %v5204 = vsel %vm5196, %v5187, %v5203
    %v5205 = vsel %vm5195, %v5202, %v5204
    %v5206 = vsel %vm5194, %v5184, %v5187
    %v5207 = vsel %vm5197, %v5193, 1326507024
    %v5208 = vsel %vm5196, %v5190, %v5207
    %v5209 = vsel %vm5195, %v5206, %v5208
    %v5210 = vshll.u32 %v5170, 8
    %v5211 = vand.u32 %v5210, 65535
    %v5212 = vshrl.u32 %v5210, 16
    %v5213 = vand.u32 %v5209, 65535
    %v5214 = vshrl.u32 %v5209, 16
    %v5215 = vmul.u32 %v5211, %v5213
    %v5216 = vmul.u32 %v5211, %v5214
    %v5217 = vmul.u32 %v5212, %v5213
    %v5218 = vmul.u32 %v5212, %v5214
    %v5219 = vshll.u32 %v5216, 16
    %v5220 = vshrl.u32 %v5216, 16
    %v5221 = vshll.u32 %v5217, 16
    %v5222 = vshrl.u32 %v5217, 16
    %vm5223 = vc.u32 %v5215, %v5219
    %v5224 = vsel %vm5223, 1, 0
    %v5225 = vadd.s32 %v5215, %v5219
    %v5226 = vadd.s32 %v5218, %v5224
    %vm5227 = vc.u32 %v5225, %v5221
    %v5228 = vsel %vm5227, 1, 0
    %v5229 = vadd.s32 %v5225, %v5221
    %v5230 = vadd.s32 %v5226, %v5228
    %v5231 = vadd.s32 %v5230, %v5220
    %v5232 = vadd.s32 %v5231, %v5222
    %v5233 = vand.u32 %v5210, 65535
    %v5234 = vshrl.u32 %v5210, 16
    %v5235 = vand.u32 %v5205, 65535
    %v5236 = vshrl.u32 %v5205, 16
    %v5237 = vmul.u32 %v5233, %v5235
    %v5238 = vmul.u32 %v5233, %v5236
    %v5239 = vmul.u32 %v5234, %v5235
    %v5240 = vmul.u32 %v5234, %v5236
    %v5241 = vshll.u32 %v5238, 16
    %v5242 = vshrl.u32 %v5238, 16
    %v5243 = vshll.u32 %v5239, 16
    %v5244 = vshrl.u32 %v5239, 16
    %vm5245 = vc.u32 %v5237, %v5241
    %v5246 = vsel %vm5245, 1, 0
    %v5247 = vadd.s32 %v5237, %v5241
    %v5248 = vadd.s32 %v5240, %v5246
    %vm5249 = vc.u32 %v5247, %v5243
    %v5250 = vsel %vm5249, 1, 0
    %v5251 = vadd.s32 %v5247, %v5243
    %v5252 = vadd.s32 %v5248, %v5250
    %v5253 = vadd.s32 %v5252, %v5242
    %v5254 = vadd.s32 %v5253, %v5244
    %v5255 = vmul.u32 %v5210, %v5201
    %v5256 = vadd.s32 %v5232, %v5251
    %vm5257 = vc.u32 %v5232, %v5251
    %v5258 = vadd.s32 %v5254, 1
    %v5259 = vsel %vm5257, %v5258, %v5254
    %v5260 = vadd.s32 %v5255, %v5259
    %v5261 = vadd.s32 %v5260, 536870912
    %v5262 = vshrl.u32 %v5261, 30
    %v5263 = vshll.u32 %v5262, 30
    %v5264 = vsub.s32 %v5260, %v5263
    %vm5265 = vcmp.lt.s32.totalorder %v5264, 0
    %v5266 = vsub.s32 0, %v5264
    %v5267 = vsel %vm5265, %v5266, %v5264
    %v5268 = vclz %v5267
    %v5269 = vsub.s32 %v5268, 2
    %vm5270 = vcmp.gt.s32.totalorder 0, %v5269
    %v5271 = vsel %vm5270, 0, %v5269
    %v5272 = vsub.s32 32, %v5271
    %v5273 = vshll.u32 %v5264, %v5271
    %v5274 = vshrl.u32 %v5256, %v5272
    %v5275 = vor.u32 %v5273, %v5274
    %v5276 = vsub.s32 4294967266, %v5271
    %v5277 = vadd.s32 %v5276, 127
    %v5278 = vshll.u32 %v5277, 23
    %v5279 = vor.u32 4788187, %v5278
    %v5280 = vand.u32 2147483647, %v5279
    %v5282 = vcvt.s32.f32 %v5275
    %v5283 = vmul.f32 %v5282, %v5280
    %v5284 = vxor.u32 %v5283, 2147483648
    %v5285 = vsel %vm5164, %v5284, %v5283
    %v5286 = vsub.s32 4, %v5262
    %v5287 = vsel %vm5164, %v5286, %v5262
    %v5288 = vsel %vm5163, %v526, %v5285
    %v5289 = vsel %vm5163, 0, %v5287
    %v5290 = vmul.f32 %v5288, %v5288
    %v5291 = vmul.f32 %v5290, -0.001358992
    %v5292 = vadd.f32 %v5291, 0.041655596
    %v5293 = vmul.f32 %v5290, %v5292
    %v5294 = vadd.f32 %v5293, -0.4999988
    %v5295 = vmul.f32 %v5290, %v5294
    %v5296 = vadd.f32 1.0, %v5295
    %v5297 = vmul.f32 %v5288, %v5288
    %v5298 = vmul.f32 %v5297, -0.00019511016
    %v5299 = vadd.f32 %v5298, 0.008332121
    %v5300 = vmul.f32 %v5297, %v5299
    %v5301 = vadd.f32 %v5300, -0.16666654
    %v5302 = vmul.f32 %v5297, %v5301
    %v5303 = vadd.f32 %v5302, 1.0
    %v5304 = vmul.f32 %v5303, %v5288
    %vm5305 = vweird.f32 %v526
    %v5306 = vadd.s32 %v5289, 3
    %v5307 = vand.u32 %v5306, 3
    %vm5308 = vcmp.lt.s32.totalorder %v5307, 2
    %vm5309 = vcmp.eq.s32.totalorder %v5307, 0
    %v5310 = vxor.u32 %v5304, 2147483648
    %v5311 = vsel %vm5309, %v5296, %v5310
    %vm5312 = vcmp.eq.s32.totalorder %v5307, 2
    %v5313 = vxor.u32 %v5296, 2147483648
    %v5314 = vsel %vm5312, %v5313, %v5304
    %v5315 = vsel %vm5308, %v5311, %v5314
    %v5316 = vsel %vm5305, nan, %v5315
    %v5317 = vand.u32 2147483647, %v527
    %vm5318 = vcmp.le.f32.partialorder %v5317, 0.7853982
    %vm5319 = vcmp.lt.s32.totalorder %v527, 0
    %v5320 = vand.u32 %v527, 2139095040
    %v5321 = vshrl.u32 %v5320, 23
    %v5322 = vsub.s32 %v5321, 127
    %v5323 = vand.u32 2147483647, %v527
    %v5324 = vand.u32 %v5323, 8388607
    %v5325 = vor.u32 %v5324, 8388608
    %v5326 = vsub.s32 0, %v5325
    %v5327 = vadd.s32 %v5322, 1
    %vm5328 = vcmp.gt.s32.totalorder %v5327, 0
    %v5329 = vsel %vm5328, %v5327, 0
    %v5330 = vshrl.u32 %v5329, 5
    %v5331 = vand.u32 %v5329, 31
    %v5332 = vsub.s32 32, %v5331
    %v5333 = vshrl.u32 683565275, %v5332
    %v5334 = vshll.u32 683565275, %v5331
    %v5335 = vshrl.u32 2475754826, %v5332
    %v5336 = vor.u32 %v5334, %v5335
    %v5337 = vshll.u32 2475754826, %v5331
    %v5338 = vshrl.u32 2131351028, %v5332
    %v5339 = vor.u32 %v5337, %v5338
    %v5340 = vshll.u32 2131351028, %v5331
    %v5341 = vshrl.u32 2102212464, %v5332
    %v5342 = vor.u32 %v5340, %v5341
    %v5343 = vshll.u32 2102212464, %v5331
    %v5344 = vshrl.u32 920167782, %v5332
    %v5345 = vor.u32 %v5343, %v5344
    %v5346 = vshll.u32 920167782, %v5331
    %v5347 = vshrl.u32 1326507024, %v5332
    %v5348 = vor.u32 %v5346, %v5347
    %vm5349 = vcmp.lt.s32.totalorder %v5330, 1
    %vm5350 = vcmp.lt.s32.totalorder %v5330, 2
    %vm5351 = vcmp.lt.s32.totalorder %v5330, 3
    %vm5352 = vcmp.lt.s32.totalorder %v5330, 4
    %v5353 = vsel %vm5349, %v5333, %v5336
    %v5354 = vsel %vm5352, %v5342, 2102212464
    %v5355 = vsel %vm5351, %v5339, %v5354
    %v5356 = vsel %vm5350, %v5353, %v5355
    %v5357 = vsel %vm5349, %v5336, %v5339
    %v5358 = vsel %vm5352, %v5345, 920167782
    %v5359 = vsel %vm5351, %v5342, %v5358
    %v5360 = vsel %vm5350, %v5357, %v5359
    %v5361 = vsel %vm5349, %v5339, %v5342
    %v5362 = vsel %vm5352, %v5348, 1326507024
    %v5363 = vsel %vm5351, %v5345, %v5362
    %v5364 = vsel %vm5350, %v5361, %v5363
    %v5365 = vshll.u32 %v5325, 8
    %v5366 = vand.u32 %v5365, 65535
    %v5367 = vshrl.u32 %v5365, 16
    %v5368 = vand.u32 %v5364, 65535
    %v5369 = vshrl.u32 %v5364, 16
    %v5370 = vmul.u32 %v5366, %v5368
    %v5371 = vmul.u32 %v5366, %v5369
    %v5372 = vmul.u32 %v5367, %v5368
    %v5373 = vmul.u32 %v5367, %v5369
    %v5374 = vshll.u32 %v5371, 16
    %v5375 = vshrl.u32 %v5371, 16
    %v5376 = vshll.u32 %v5372, 16
    %v5377 = vshrl.u32 %v5372, 16
    %vm5378 = vc.u32 %v5370, %v5374
    %v5379 = vsel %vm5378, 1, 0
    %v5380 = vadd.s32 %v5370, %v5374
    %v5381 = vadd.s32 %v5373, %v5379
    %vm5382 = vc.u32 %v5380, %v5376
    %v5383 = vsel %vm5382, 1, 0
    %v5384 = vadd.s32 %v5380, %v5376
    %v5385 = vadd.s32 %v5381, %v5383
    %v5386 = vadd.s32 %v5385, %v5375
    %v5387 = vadd.s32 %v5386, %v5377
    %v5388 = vand.u32 %v5365, 65535
    %v5389 = vshrl.u32 %v5365, 16
    %v5390 = vand.u32 %v5360, 65535
    %v5391 = vshrl.u32 %v5360, 16
    %v5392 = vmul.u32 %v5388, %v5390
    %v5393 = vmul.u32 %v5388, %v5391
    %v5394 = vmul.u32 %v5389, %v5390
    %v5395 = vmul.u32 %v5389, %v5391
    %v5396 = vshll.u32 %v5393, 16
    %v5397 = vshrl.u32 %v5393, 16
    %v5398 = vshll.u32 %v5394, 16
    %v5399 = vshrl.u32 %v5394, 16
    %vm5400 = vc.u32 %v5392, %v5396
    %v5401 = vsel %vm5400, 1, 0
    %v5402 = vadd.s32 %v5392, %v5396
    %v5403 = vadd.s32 %v5395, %v5401
    %vm5404 = vc.u32 %v5402, %v5398
    %v5405 = vsel %vm5404, 1, 0
    %v5406 = vadd.s32 %v5402, %v5398
    %v5407 = vadd.s32 %v5403, %v5405
    %v5408 = vadd.s32 %v5407, %v5397
    %v5409 = vadd.s32 %v5408, %v5399
    %v5410 = vmul.u32 %v5365, %v5356
    %v5411 = vadd.s32 %v5387, %v5406
    %vm5412 = vc.u32 %v5387, %v5406
    %v5413 = vadd.s32 %v5409, 1
    %v5414 = vsel %vm5412, %v5413, %v5409
    %v5415 = vadd.s32 %v5410, %v5414
    %v5416 = vadd.s32 %v5415, 536870912
    %v5417 = vshrl.u32 %v5416, 30
    %v5418 = vshll.u32 %v5417, 30
    %v5419 = vsub.s32 %v5415, %v5418
    %vm5420 = vcmp.lt.s32.totalorder %v5419, 0
    %v5421 = vsub.s32 0, %v5419
    %v5422 = vsel %vm5420, %v5421, %v5419
    %v5423 = vclz %v5422
    %v5424 = vsub.s32 %v5423, 2
    %vm5425 = vcmp.gt.s32.totalorder 0, %v5424
    %v5426 = vsel %vm5425, 0, %v5424
    %v5427 = vsub.s32 32, %v5426
    %v5428 = vshll.u32 %v5419, %v5426
    %v5429 = vshrl.u32 %v5411, %v5427
    %v5430 = vor.u32 %v5428, %v5429
    %v5431 = vsub.s32 4294967266, %v5426
    %v5432 = vadd.s32 %v5431, 127
    %v5433 = vshll.u32 %v5432, 23
    %v5434 = vor.u32 4788187, %v5433
    %v5435 = vand.u32 2147483647, %v5434
    %v5437 = vcvt.s32.f32 %v5430
    %v5438 = vmul.f32 %v5437, %v5435
    %v5439 = vxor.u32 %v5438, 2147483648
    %v5440 = vsel %vm5319, %v5439, %v5438
    %v5441 = vsub.s32 4, %v5417
    %v5442 = vsel %vm5319, %v5441, %v5417
    %v5443 = vsel %vm5318, %v527, %v5440
    %v5444 = vsel %vm5318, 0, %v5442
    %v5445 = vmul.f32 %v5443, %v5443
    %v5446 = vmul.f32 %v5445, -0.001358992
    %v5447 = vadd.f32 %v5446, 0.041655596
    %v5448 = vmul.f32 %v5445, %v5447
    %v5449 = vadd.f32 %v5448, -0.4999988
    %v5450 = vmul.f32 %v5445, %v5449
    %v5451 = vadd.f32 1.0, %v5450
    %v5452 = vmul.f32 %v5443, %v5443
    %v5453 = vmul.f32 %v5452, -0.00019511016
    %v5454 = vadd.f32 %v5453, 0.008332121
    %v5455 = vmul.f32 %v5452, %v5454
    %v5456 = vadd.f32 %v5455, -0.16666654
    %v5457 = vmul.f32 %v5452, %v5456
    %v5458 = vadd.f32 %v5457, 1.0
    %v5459 = vmul.f32 %v5458, %v5443
    %vm5460 = vweird.f32 %v527
    %v5461 = vadd.s32 %v5444, 3
    %v5462 = vand.u32 %v5461, 3
    %vm5463 = vcmp.lt.s32.totalorder %v5462, 2
    %vm5464 = vcmp.eq.s32.totalorder %v5462, 0
    %v5465 = vxor.u32 %v5459, 2147483648
    %v5466 = vsel %vm5464, %v5451, %v5465
    %vm5467 = vcmp.eq.s32.totalorder %v5462, 2
    %v5468 = vxor.u32 %v5451, 2147483648
    %v5469 = vsel %vm5467, %v5468, %v5459
    %v5470 = vsel %vm5463, %v5466, %v5469
    %v5471 = vsel %vm5460, nan, %v5470
    %v5472 = vmul.f32 %v218, %v681
    %v5473 = vmul.f32 %v221, %v835
    %v5474 = vmul.f32 %v224, %v989
    %v5475 = vmul.f32 %v227, %v1143
    %v5476 = vmul.f32 %v230, %v1297
    %v5477 = vmul.f32 %v233, %v1451
    %v5478 = vmul.f32 %v236, %v1605
    %v5479 = vmul.f32 %v239, %v1759
    %v5480 = vmul.f32 %v242, %v1913
    %v5481 = vmul.f32 %v245, %v2067
    %v5482 = vmul.f32 %v248, %v2221
    %v5483 = vmul.f32 %v251, %v2375
    %v5484 = vmul.f32 %v254, %v2529
    %v5485 = vmul.f32 %v257, %v2683
    %v5486 = vmul.f32 %v260, %v2837
    %v5487 = vmul.f32 %v263, %v2991
    %v5488 = vlaneseq
    %v5489 = vand.u32 %v5488, 127
    %vm5490 = vcmp.lt.s32.totalorder %v5489, 64
    %v5491 = vsel %vm5490, -1.0, 1.0
    %5492 = vrot.lane.b32.xlu0 %v218, 64
    %v5493 = vpop.permute.xlu0 %5492
    %5494 = vrot.lane.b32.xlu0 %v221, 64
    %v5495 = vpop.permute.xlu0 %5494
    %5496 = vrot.lane.b32.xlu0 %v224, 64
    %v5497 = vpop.permute.xlu0 %5496
    %5498 = vrot.lane.b32.xlu0 %v227, 64
    %v5499 = vpop.permute.xlu0 %5498
    %5500 = vrot.lane.b32.xlu0 %v230, 64
    %v5501 = vpop.permute.xlu0 %5500
    %5502 = vrot.lane.b32.xlu0 %v233, 64
    %v5503 = vpop.permute.xlu0 %5502
    %5504 = vrot.lane.b32.xlu0 %v236, 64
    %v5505 = vpop.permute.xlu0 %5504
    %5506 = vrot.lane.b32.xlu0 %v239, 64
    %v5507 = vpop.permute.xlu0 %5506
    %5508 = vrot.lane.b32.xlu0 %v242, 64
    %v5509 = vpop.permute.xlu0 %5508
    %5510 = vrot.lane.b32.xlu0 %v245, 64
    %v5511 = vpop.permute.xlu0 %5510
    %5512 = vrot.lane.b32.xlu0 %v248, 64
    %v5513 = vpop.permute.xlu0 %5512
    %5514 = vrot.lane.b32.xlu0 %v251, 64
    %v5515 = vpop.permute.xlu0 %5514
    %5516 = vrot.lane.b32.xlu0 %v254, 64
    %v5517 = vpop.permute.xlu0 %5516
    %5518 = vrot.lane.b32.xlu0 %v257, 64
    %v5519 = vpop.permute.xlu0 %5518
    %5520 = vrot.lane.b32.xlu0 %v260, 64
    %v5521 = vpop.permute.xlu0 %5520
    %5522 = vrot.lane.b32.xlu0 %v263, 64
    %v5523 = vpop.permute.xlu0 %5522
    %v5524 = vmul.f32 %v5493, %v5491
    %v5525 = vmul.f32 %v5495, %v5491
    %v5526 = vmul.f32 %v5497, %v5491
    %v5527 = vmul.f32 %v5499, %v5491
    %v5528 = vmul.f32 %v5501, %v5491
    %v5529 = vmul.f32 %v5503, %v5491
    %v5530 = vmul.f32 %v5505, %v5491
    %v5531 = vmul.f32 %v5507, %v5491
    %v5532 = vmul.f32 %v5509, %v5491
    %v5533 = vmul.f32 %v5511, %v5491
    %v5534 = vmul.f32 %v5513, %v5491
    %v5535 = vmul.f32 %v5515, %v5491
    %v5536 = vmul.f32 %v5517, %v5491
    %v5537 = vmul.f32 %v5519, %v5491
    %v5538 = vmul.f32 %v5521, %v5491
    %v5539 = vmul.f32 %v5523, %v5491
    %v5540 = vmul.f32 %v5524, %v3146
    %v5541 = vmul.f32 %v5525, %v3301
    %v5542 = vmul.f32 %v5526, %v3456
    %v5543 = vmul.f32 %v5527, %v3611
    %v5544 = vmul.f32 %v5528, %v3766
    %v5545 = vmul.f32 %v5529, %v3921
    %v5546 = vmul.f32 %v5530, %v4076
    %v5547 = vmul.f32 %v5531, %v4231
    %v5548 = vmul.f32 %v5532, %v4386
    %v5549 = vmul.f32 %v5533, %v4541
    %v5550 = vmul.f32 %v5534, %v4696
    %v5551 = vmul.f32 %v5535, %v4851
    %v5552 = vmul.f32 %v5536, %v5006
    %v5553 = vmul.f32 %v5537, %v5161
    %v5554 = vmul.f32 %v5538, %v5316
    %v5555 = vmul.f32 %v5539, %v5471
    %v5556 = vadd.f32 %v5472, %v5540
    %v5557 = vadd.f32 %v5473, %v5541
    %v5558 = vadd.f32 %v5474, %v5542
    %v5559 = vadd.f32 %v5475, %v5543
    %v5560 = vadd.f32 %v5476, %v5544
    %v5561 = vadd.f32 %v5477, %v5545
    %v5562 = vadd.f32 %v5478, %v5546
    %v5563 = vadd.f32 %v5479, %v5547
    %v5564 = vadd.f32 %v5480, %v5548
    %v5565 = vadd.f32 %v5481, %v5549
    %v5566 = vadd.f32 %v5482, %v5550
    %v5567 = vadd.f32 %v5483, %v5551
    %v5568 = vadd.f32 %v5484, %v5552
    %v5569 = vadd.f32 %v5485, %v5553
    %v5570 = vadd.f32 %v5486, %v5554
    %v5571 = vadd.f32 %v5487, %v5555
    %5572 = vst [vmem:[#allocation2] sm:$0xff] %v5556
    %5573 = vst [vmem:[#allocation2 + $0x8] sm:$0xff] %v5557
    %5574 = vst [vmem:[#allocation2 + $0x10] sm:$0xff] %v5558
    %5575 = vst [vmem:[#allocation2 + $0x18] sm:$0xff] %v5559
    %5576 = vst [vmem:[#allocation2 + $0x20] sm:$0xff] %v5560
    %5577 = vst [vmem:[#allocation2 + $0x28] sm:$0xff] %v5561
    %5578 = vst [vmem:[#allocation2 + $0x30] sm:$0xff] %v5562
    %5579 = vst [vmem:[#allocation2 + $0x38] sm:$0xff] %v5563
    %5580 = vst [vmem:[#allocation2 + $0x40] sm:$0xff] %v5564
    %5581 = vst [vmem:[#allocation2 + $0x48] sm:$0xff] %v5565
    %5582 = vst [vmem:[#allocation2 + $0x50] sm:$0xff] %v5566
    %5583 = vst [vmem:[#allocation2 + $0x58] sm:$0xff] %v5567
    %5584 = vst [vmem:[#allocation2 + $0x60] sm:$0xff] %v5568
    %5585 = vst [vmem:[#allocation2 + $0x68] sm:$0xff] %v5569
    %5586 = vst [vmem:[#allocation2 + $0x70] sm:$0xff] %v5570
    %5587 = vst [vmem:[#allocation2 + $0x78] sm:$0xff] %v5571
    // Predicated region
    $region26: #{tpu_custom_call.1} parent=1 // pred_check
      _
    $region27: #{tpu_custom_call.1} parent=1 // pred_check_branch
      %5589 = sbr.rel (0) target = $region29
    $region28: #{tpu_custom_call.1} parent=1 // pred_region
      %5591 = vsyncadd [#allocation3], 0
      %s5592 = sshll.u32 [#allocation2], 4
      %s5593 = int_to_ptr.vmem [resolvable:$true] %s5592
      %s5594 = sshll.u32 %s6, 4
      %s5595 = int_to_ptr.hbm [resolvable:$true] %s5594
      %5600 = dma.vmem_to_hbm [thread:$0]  %s5593, 2048, %s5595, [#allocation3], 128, 128, 8
    $region29: #{tpu_custom_call.1} parent=1 // pred_fallthru
      _
    // Predicated region
    $region30: #{tpu_custom_call.1} parent=1 // pred_check
      _
    $region31: #{tpu_custom_call.1} parent=1 // pred_check_branch
      %5602 = sbr.rel (0) target = $region33
    $region32: #{tpu_custom_call.1} parent=1 // pred_region
      %5604 = dma.done [#allocation3], 2048
    $region33: #{tpu_custom_call.1} parent=1 // pred_fallthru
      _
    %5605 = vsyncpa [#allocation3], 1

</llo_original>
